<compile_context>
chip_gen: v6e
topology: v6e:2x2x1
jax: 0.10.0
libtpu: 0.0.40
codegen_flags: <defaults>
</compile_context>

<pallas_src>
import functools
import math

import jax
import jax.numpy as jnp
from jax import lax
from jax.experimental import pallas as pl
from jax.experimental.pallas import tpu as pltpu


# ----------------------------- tiling helpers --------------------------------

def _pick_tile(dim, candidates):
    """Largest candidate that evenly divides `dim`, else the full dim."""
    for c in candidates:
        if dim % c == 0:
            return c
    return dim


def _budget_tile(dim, other, itemsize, candidates, budget_bytes=2 << 20):
    """Largest candidate dividing `dim` whose (c, other) tile fits the budget."""
    divisors = [c for c in candidates if dim % c == 0]
    for c in divisors:                       # candidates are large -> small
        if c * other * itemsize <= budget_bytes:
            return c
    if divisors:                             # nothing fits: take the smallest divisor
        return divisors[-1]
    return dim                               # tiny/odd dims: use the full extent


def _attn_q_tile(sq, sk, budget_bytes=2 << 20):
    """q-tile so the f32 (tq, Sk) score block stays within budget."""
    for c in (512, 256, 128, 64, 32, 16, 8):
        if sq % c == 0 and c * sk * 4 <= budget_bytes:
            return c
    return sq


# --------------------- fused (tiled) matmul + bias kernel -------------------

def _matmul_bias_kernel_f32(x_ref, w_ref, b_ref, o_ref):
    # f32 output: accumulate directly into the resident output block (no scratch).
    k = pl.program_id(2)

    @pl.when(k == 0)
    def _():
        o_ref[...] = jnp.zeros_like(o_ref)

    o_ref[...] += jnp.dot(x_ref[...], w_ref[...],
                          preferred_element_type=jnp.float32)

    @pl.when(k == pl.num_programs(2) - 1)
    def _():
        o_ref[...] += b_ref[...]


def _matmul_bias_kernel_acc(x_ref, w_ref, b_ref, o_ref, acc_ref):
    # Low-precision output: keep an f32 accumulator scratch.
    k = pl.program_id(2)

    @pl.when(k == 0)
    def _():
        acc_ref[...] = jnp.zeros_like(acc_ref)

    acc_ref[...] += jnp.dot(x_ref[...], w_ref[...],
                            preferred_element_type=jnp.float32)

    @pl.when(k == pl.num_programs(2) - 1)
    def _():
        o_ref[...] = (acc_ref[...] + b_ref[...]).astype(o_ref.dtype)


def matmul_bias(x2d, w, b):
    """y = x2d @ w + b, tiled over (M, N, K) with f32 accumulation."""
    M, K = x2d.shape
    N = w.shape[1]
    isz = x2d.dtype.itemsize
    tn = _pick_tile(N, (512, 256, 128))
    tk = _budget_tile(K, tn, isz, (1024, 512, 256, 128))
    tm = _budget_tile(M, max(tk, tn), isz, (512, 256, 128))
    grid = (M // tm, N // tn, K // tk)

    out_is_f32 = x2d.dtype == jnp.float32
    kernel = _matmul_bias_kernel_f32 if out_is_f32 else _matmul_bias_kernel_acc
    scratch = [] if out_is_f32 else [pltpu.VMEM((tm, tn), jnp.float32)]

    return pl.pallas_call(
        kernel,
        grid=grid,
        in_specs=[
            pl.BlockSpec((tm, tk), lambda i, j, k: (i, k)),
            pl.BlockSpec((tk, tn), lambda i, j, k: (k, j)),
            pl.BlockSpec((1, tn), lambda i, j, k: (0, j)),
        ],
        out_specs=pl.BlockSpec((tm, tn), lambda i, j, k: (i, j)),
        out_shape=jax.ShapeDtypeStruct((M, N), x2d.dtype),
        scratch_shapes=scratch,
        compiler_params=pltpu.CompilerParams(
            dimension_semantics=("parallel", "parallel", "arbitrary")),
    )(x2d, w, b.reshape(1, N))


# -------- output projection fused with residual-add + LayerNorm -------------

def _proj_add_ln_kernel(x_ref, w_ref, b_ref, r_ref, g_ref, be_ref,
                        o_ref, acc_ref, *, eps):
    # x: (tm, tk), w: (tk, D), b/g/be: (1, D), r: (tm, D) -> o: (tm, D)
    k = pl.program_id(1)

    @pl.when(k == 0)
    def _():
        acc_ref[...] = jnp.zeros_like(acc_ref)

    acc_ref[...] += jnp.dot(x_ref[...], w_ref[...],
                            preferred_element_type=jnp.float32)

    @pl.when(k == pl.num_programs(1) - 1)
    def _():
        z = acc_ref[...] + b_ref[...] + r_ref[...].astype(jnp.float32)
        mu = jnp.mean(z, axis=-1, keepdims=True)
        var = jnp.mean((z - mu) ** 2, axis=-1, keepdims=True)
        zn = (z - mu) * lax.rsqrt(var + eps)
        o_ref[...] = (zn * g_ref[...] + be_ref[...]).astype(o_ref.dtype)


def proj_add_ln(x2d, w, b, resid2d, gamma, beta, eps=1e-5):
    """LayerNorm(resid + x2d @ w + b), fused in one kernel."""
    M, K = x2d.shape
    D = w.shape[1]
    isz = x2d.dtype.itemsize
    tk = _budget_tile(K, D, isz, (1024, 512, 256, 128))          # weight tile (tk, D)
    tm = _budget_tile(M, D, 4, (256, 128), budget_bytes=1 << 20)  # f32 (tm, D) rows
    grid = (M // tm, K // tk)
    kernel = functools.partial(_proj_add_ln_kernel, eps=eps)
    return pl.pallas_call(
        kernel,
        grid=grid,
        in_specs=[
            pl.BlockSpec((tm, tk), lambda i, k: (i, k)),
            pl.BlockSpec((tk, D), lambda i, k: (k, 0)),
            pl.BlockSpec((1, D), lambda i, k: (0, 0)),
            pl.BlockSpec((tm, D), lambda i, k: (i, 0)),
            pl.BlockSpec((1, D), lambda i, k: (0, 0)),
            pl.BlockSpec((1, D), lambda i, k: (0, 0)),
        ],
        out_specs=pl.BlockSpec((tm, D), lambda i, k: (i, 0)),
        out_shape=jax.ShapeDtypeStruct((M, D), x2d.dtype),
        scratch_shapes=[pltpu.VMEM((tm, D), jnp.float32)],
        compiler_params=pltpu.CompilerParams(
            dimension_semantics=("parallel", "arbitrary")),
    )(x2d, w, b.reshape(1, D), resid2d, gamma.reshape(1, D), beta.reshape(1, D))


# -------------- FFN (Linear->ReLU->Linear) fused with Add&LN -----------------

def _ffn_add_ln_kernel(x_ref, w1_ref, b1_ref, w2_ref, b2_ref, r_ref,
                       g_ref, be_ref, o_ref, acc_ref, *, eps):
    # x/r: (tm, D), w1: (D, tf), b1: (1, tf), w2: (tf, D), b2/g/be: (1, D)
    f = pl.program_id(1)

    @pl.when(f == 0)
    def _():
        acc_ref[...] = jnp.zeros_like(acc_ref)

    h = jnp.dot(x_ref[...], w1_ref[...],
                preferred_element_type=jnp.float32) + b1_ref[...]
    h = jnp.maximum(h, 0.0).astype(w2_ref.dtype)   # ReLU; feed MXU in weight dtype
    acc_ref[...] += jnp.dot(h, w2_ref[...], preferred_element_type=jnp.float32)

    @pl.when(f == pl.num_programs(1) - 1)
    def _():
        z = acc_ref[...] + b2_ref[...] + r_ref[...].astype(jnp.float32)
        mu = jnp.mean(z, axis=-1, keepdims=True)
        var = jnp.mean((z - mu) ** 2, axis=-1, keepdims=True)
        zn = (z - mu) * lax.rsqrt(var + eps)
        o_ref[...] = (zn * g_ref[...] + be_ref[...]).astype(o_ref.dtype)


def ffn_add_ln(x2d, w1, b1, w2, b2, resid2d, gamma, beta, eps=1e-5):
    """LayerNorm(resid + relu(x2d @ w1 + b1) @ w2 + b2), fused, F-tiled."""
    M, D = x2d.shape
    F = w1.shape[1]
    isz = x2d.dtype.itemsize
    tf = _budget_tile(F, D, isz, (1024, 512, 256, 128))                  # w1/w2 tiles
    tm = _budget_tile(M, max(D, tf), 4, (256, 128), budget_bytes=1 << 20)
    grid = (M // tm, F // tf)
    kernel = functools.partial(_ffn_add_ln_kernel, eps=eps)
    return pl.pallas_call(
        kernel,
        grid=grid,
        in_specs=[
            pl.BlockSpec((tm, D), lambda i, f: (i, 0)),
            pl.BlockSpec((D, tf), lambda i, f: (0, f)),
            pl.BlockSpec((1, tf), lambda i, f: (0, f)),
            pl.BlockSpec((tf, D), lambda i, f: (f, 0)),
            pl.BlockSpec((1, D), lambda i, f: (0, 0)),
            pl.BlockSpec((tm, D), lambda i, f: (i, 0)),
            pl.BlockSpec((1, D), lambda i, f: (0, 0)),
            pl.BlockSpec((1, D), lambda i, f: (0, 0)),
        ],
        out_specs=pl.BlockSpec((tm, D), lambda i, f: (i, 0)),
        out_shape=jax.ShapeDtypeStruct((M, D), x2d.dtype),
        scratch_shapes=[pltpu.VMEM((tm, D), jnp.float32)],
        compiler_params=pltpu.CompilerParams(
            dimension_semantics=("parallel", "arbitrary")),
    )(x2d, w1, b1.reshape(1, F), w2, b2.reshape(1, D), resid2d,
      gamma.reshape(1, D), beta.reshape(1, D))


# ---------------- attention: per-(batch, head, q-tile) grid ------------------

def _attn_kernel(q_ref, k_ref, v_ref, o_ref, w_ref, *, causal, scale, tq):
    # blocks: q (1,1,tq,Dh), k/v (1,1,Sk,Dh) -> o (1,1,tq,Dh), w (1,1,tq,Sk)
    q = q_ref[0, 0] * scale            # fold 1/sqrt(Dh) into q (Sq*Dh, not Sq*Sk)
    k = k_ref[0, 0]
    v = v_ref[0, 0]

    # q @ k^T contracting the Dh axes, f32 accumulation (inputs stay native dtype).
    s = lax.dot_general(q, k, (((1,), (1,)), ((), ())),
                        preferred_element_type=jnp.float32)        # (tq, Sk)

    if causal:
        q_start = pl.program_id(2) * tq
        row = q_start + lax.broadcasted_iota(jnp.int32, s.shape, 0)
        col = lax.broadcasted_iota(jnp.int32, s.shape, 1)
        s = jnp.where(col <= row, s, -1e30)

    # Exact softmax in f32 (returned weights sum to 1).
    m = jnp.max(s, axis=-1, keepdims=True)
    e = jnp.exp(s - m)
    p = e / jnp.sum(e, axis=-1, keepdims=True)                     # (tq, Sk)
    w_ref[0, 0] = p.astype(w_ref.dtype)

    ctx = jnp.dot(p.astype(v.dtype), v, preferred_element_type=jnp.float32)
    o_ref[0, 0] = ctx.astype(o_ref.dtype)


def attention(q, k, v, *, causal):
    """q,k,v: [B, H, S, Dh]. Returns (context [B,H,Sq,Dh], weights [B,H,Sq,Sk])."""
    B, H, Sq, Dh = q.shape
    Sk = k.shape[2]
    tq = _attn_q_tile(Sq, Sk)
    scale = 1.0 / math.sqrt(Dh)
    kernel = functools.partial(_attn_kernel, causal=causal, scale=scale, tq=tq)
    ctx, weights = pl.pallas_call(
        kernel,
        grid=(B, H, Sq // tq),
        in_specs=[
            pl.BlockSpec((1, 1, tq, Dh), lambda b, h, i: (b, h, i, 0)),
            pl.BlockSpec((1, 1, Sk, Dh), lambda b, h, i: (b, h, 0, 0)),
            pl.BlockSpec((1, 1, Sk, Dh), lambda b, h, i: (b, h, 0, 0)),
        ],
        out_specs=[
            pl.BlockSpec((1, 1, tq, Dh), lambda b, h, i: (b, h, i, 0)),
            pl.BlockSpec((1, 1, tq, Sk), lambda b, h, i: (b, h, i, 0)),
        ],
        out_shape=[
            jax.ShapeDtypeStruct((B, H, Sq, Dh), q.dtype),
            jax.ShapeDtypeStruct((B, H, Sq, Sk), q.dtype),
        ],
        compiler_params=pltpu.CompilerParams(
            dimension_semantics=("parallel", "parallel", "parallel")),
    )(q, k, v)
    return ctx, weights


# ------------------------------ module glue ----------------------------------

def decoder_layer(params, x, encoder_output, num_heads):
    B, Sq, D = x.shape
    Sk = encoder_output.shape[1]
    Dh = D // num_heads
    x2d = x.reshape(-1, D)
    enc2d = encoder_output.reshape(-1, D)

    # ---- masked (causal) self-attention: fused QKV projection ----
    p = params["self_attn"]
    qkv = matmul_bias(x2d, p["wqkv"], p["bqkv"])
    qkv = qkv.reshape(B, Sq, 3, num_heads, Dh).transpose(2, 0, 3, 1, 4)  # (3,B,H,Sq,Dh)
    ctx, sa_w = attention(qkv[0], qkv[1], qkv[2], causal=True)
    ctx2d = ctx.transpose(0, 2, 1, 3).reshape(-1, D)
    # output projection + residual add + LayerNorm, fused
    x2d = proj_add_ln(ctx2d, p["wo"], p["bo"], x2d,
                      params["ln1_g"], params["ln1_b"])

    # ---- cross-attention over encoder output: fused KV projection ----
    p = params["cross_attn"]
    q = matmul_bias(x2d, p["wq"], p["bq"]).reshape(B, Sq, num_heads, Dh)
    q = q.transpose(0, 2, 1, 3)                                          # (B,H,Sq,Dh)
    kv = matmul_bias(enc2d, p["wkv"], p["bkv"])
    kv = kv.reshape(B, Sk, 2, num_heads, Dh).transpose(2, 0, 3, 1, 4)    # (2,B,H,Sk,Dh)
    ctx, ca_w = attention(q, kv[0], kv[1], causal=False)
    ctx2d = ctx.transpose(0, 2, 1, 3).reshape(-1, D)
    x2d = proj_add_ln(ctx2d, p["wo"], p["bo"], x2d,
                      params["ln2_g"], params["ln2_b"])

    # ---- feed-forward (Linear -> ReLU -> Linear) + residual + LN, fused ----
    out2d = ffn_add_ln(x2d, params["w1"], params["b1"],
                       params["w2"], params["b2"],
                       x2d, params["ln3_g"], params["ln3_b"])
    return out2d.reshape(B, Sq, D), (sa_w, ca_w)


def init_params(key, d_model, d_ff):
    def dense(k, din, dout):
        w = jax.random.normal(k, (din, dout), jnp.float32) * 0.02
        b = jnp.zeros((dout,), jnp.float32)
        return w, b

    keys = jax.random.split(key, 10)

    # self-attention: fused Q|K|V weight [D, 3D]
    wq, bq = dense(keys[0], d_model, d_model)
    wk, bk = dense(keys[1], d_model, d_model)
    wv, bv = dense(keys[2], d_model, d_model)
    wo, bo = dense(keys[3], d_model, d_model)
    self_attn = dict(wqkv=jnp.concatenate([wq, wk, wv], axis=1),
                     bqkv=jnp.concatenate([bq, bk, bv]),
                     wo=wo, bo=bo)

    # cross-attention: separate Q (from x), fused K|V (from encoder output)
    cwq, cbq = dense(keys[4], d_model, d_model)
    cwk, cbk = dense(keys[5], d_model, d_model)
    cwv, cbv = dense(keys[6], d_model, d_model)
    cwo, cbo = dense(keys[7], d_model, d_model)
    cross_attn = dict(wq=cwq, bq=cbq,
                      wkv=jnp.concatenate([cwk, cwv], axis=1),
                      bkv=jnp.concatenate([cbk, cbv]),
                      wo=cwo, bo=cbo)

    w1, b1 = dense(keys[8], d_model, d_ff)
    w2, b2 = dense(keys[9], d_ff, d_model)
    return dict(
        self_attn=self_attn,
        cross_attn=cross_attn,
        ln1_g=jnp.ones((d_model,), jnp.float32), ln1_b=jnp.zeros((d_model,), jnp.float32),
        ln2_g=jnp.ones((d_model,), jnp.float32), ln2_b=jnp.zeros((d_model,), jnp.float32),
        ln3_g=jnp.ones((d_model,), jnp.float32), ln3_b=jnp.zeros((d_model,), jnp.float32),
        w1=w1, b1=b1, w2=w2, b2=b2,
    )


if __name__ == "__main__":
    d_model, num_heads, d_ff = 32, 4, 64
    batch, tgt_len, src_len = 2, 8, 8

    root = jax.random.PRNGKey(0)
    k_params, k_x, k_enc = jax.random.split(root, 3)
    params = init_params(k_params, d_model, d_ff)
    x = jax.random.normal(k_x, (batch, tgt_len, d_model), jnp.float32)
    encoder_output = jax.random.normal(k_enc, (batch, src_len, d_model), jnp.float32)

    layer = jax.jit(functools.partial(decoder_layer, num_heads=num_heads))
    out, (self_attn_w, cross_attn_w) = layer(params, x, encoder_output)
    jax.block_until_ready((out, self_attn_w, cross_attn_w))

    assert out.shape == (batch, tgt_len, d_model)
    assert self_attn_w.shape == (batch, num_heads, tgt_len, tgt_len)
    assert cross_attn_w.shape == (batch, num_heads, tgt_len, src_len)
    print("KERNEL_OK")
</pallas_src>

<mosaic_0001>
module attributes {stable_mosaic.version = 11 : i64} {
  func.func @_matmul_bias_kernel_f32(%arg0: i32, %arg1: i32, %arg2: i32, %arg3: memref<16x32xf32, #tpu.memory_space<vmem>>, %arg4: memref<32x96xf32, #tpu.memory_space<vmem>>, %arg5: memref<1x96xf32, #tpu.memory_space<vmem>>, %arg6: memref<16x96xf32, #tpu.memory_space<vmem>>) attributes {dimension_semantics = [#tpu.dimension_semantics<parallel>, #tpu.dimension_semantics<parallel>, #tpu.dimension_semantics<arbitrary>], iteration_bounds = array<i64: 1, 1, 1>, scalar_prefetch = 0 : i64, scratch_operands = 0 : i64, tpu.core_type = #tpu.core_type<tc>, window_params = [{transform_indices = @transform_0, window_bounds = array<i64: 16, 32>}, {transform_indices = @transform_1, window_bounds = array<i64: 32, 96>}, {transform_indices = @transform_2, window_bounds = array<i64: 1, 96>}, {transform_indices = @transform_3, window_bounds = array<i64: 16, 96>}]} {
    %c0_i32 = arith.constant 0 : i32
    %0 = arith.cmpi eq, %arg2, %c0_i32 : i32
    %1 = arith.extui %0 : i1 to i32
    %c0_i32_0 = arith.constant 0 : i32
    %2 = arith.cmpi ne, %1, %c0_i32_0 : i32
    scf.if %2 {
      %cst_10 = arith.constant 0.000000e+00 : f32
      %12 = vector.broadcast %cst_10 : f32 to vector<16x96xf32>
      %c0_11 = arith.constant 0 : index
      %c0_12 = arith.constant 0 : index
      %13 = vector.load %arg6[%c0_11, %c0_12] : memref<16x96xf32, #tpu.memory_space<vmem>>, vector<16x96xf32>
      tpu.vector_store %arg6[%c0_11, %c0_12], %12 {strides = array<i32>} : memref<16x96xf32, #tpu.memory_space<vmem>>, vector<16x96xf32>,
    } else {
    }
    %c0 = arith.constant 0 : index
    %c0_1 = arith.constant 0 : index
    %3 = vector.load %arg6[%c0, %c0_1] : memref<16x96xf32, #tpu.memory_space<vmem>>, vector<16x96xf32>
    %c0_2 = arith.constant 0 : index
    %c0_3 = arith.constant 0 : index
    %4 = vector.load %arg3[%c0_2, %c0_3] : memref<16x32xf32, #tpu.memory_space<vmem>>, vector<16x32xf32>
    %c0_4 = arith.constant 0 : index
    %c0_5 = arith.constant 0 : index
    %5 = vector.load %arg4[%c0_4, %c0_5] : memref<32x96xf32, #tpu.memory_space<vmem>>, vector<32x96xf32>
    %cst = arith.constant dense<0.000000e+00> : vector<16x96xf32>
    %6 = tpu.matmul %4, %5, %cst {dimension_numbers = #tpu.dot_dimension_numbers<[1], [0], [0], [1], [0, 0, 1, 1], [], []>} : vector<16x32xf32>, vector<32x96xf32>, vector<16x96xf32> -> vector<16x96xf32>
    %7 = arith.addf %3, %6 : vector<16x96xf32>
    %c0_6 = arith.constant 0 : index
    %c0_7 = arith.constant 0 : index
    %8 = vector.load %arg6[%c0_6, %c0_7] : memref<16x96xf32, #tpu.memory_space<vmem>>, vector<16x96xf32>
    tpu.vector_store %arg6[%c0_6, %c0_7], %7 {strides = array<i32>} : memref<16x96xf32, #tpu.memory_space<vmem>>, vector<16x96xf32>,
    %c0_i32_8 = arith.constant 0 : i32
    %9 = arith.cmpi eq, %arg2, %c0_i32_8 : i32
    %10 = arith.extui %9 : i1 to i32
    %c0_i32_9 = arith.constant 0 : i32
    %11 = arith.cmpi ne, %10, %c0_i32_9 : i32
    scf.if %11 {
      %c0_10 = arith.constant 0 : index
      %c0_11 = arith.constant 0 : index
      %12 = vector.load %arg6[%c0_10, %c0_11] : memref<16x96xf32, #tpu.memory_space<vmem>>, vector<16x96xf32>
      %c0_12 = arith.constant 0 : index
      %c0_13 = arith.constant 0 : index
      %13 = vector.load %arg5[%c0_12, %c0_13] : memref<1x96xf32, #tpu.memory_space<vmem>>, vector<1x96xf32>
      %14 = vector.broadcast %13 : vector<1x96xf32> to vector<16x96xf32>
      %15 = arith.addf %12, %14 : vector<16x96xf32>
      %c0_14 = arith.constant 0 : index
      %c0_15 = arith.constant 0 : index
      %16 = vector.load %arg6[%c0_14, %c0_15] : memref<16x96xf32, #tpu.memory_space<vmem>>, vector<16x96xf32>
      tpu.vector_store %arg6[%c0_14, %c0_15], %15 {strides = array<i32>} : memref<16x96xf32, #tpu.memory_space<vmem>>, vector<16x96xf32>,
    } else {
    }
    return
  }
  func.func @transform_0(%arg0: i32, %arg1: i32, %arg2: i32) -> (i32, i32) {
    %c0_i32 = arith.constant 0 : i32
    return %arg0, %arg2 : i32, i32
  }
  func.func @transform_1(%arg0: i32, %arg1: i32, %arg2: i32) -> (i32, i32) {
    %c0_i32 = arith.constant 0 : i32
    return %arg2, %arg1 : i32, i32
  }
  func.func @transform_2(%arg0: i32, %arg1: i32, %arg2: i32) -> (i32, i32) {
    %c0_i32 = arith.constant 0 : i32
    %c0_i32_0 = arith.constant 0 : i32
    return %c0_i32, %arg1 : i32, i32
  }
  func.func @transform_3(%arg0: i32, %arg1: i32, %arg2: i32) -> (i32, i32) {
    %c0_i32 = arith.constant 0 : i32
    return %arg0, %arg1 : i32, i32
  }
}

module attributes {stable_mosaic.version = 11 : i64} {
  func.func @_attn_kernel(%arg0: i32, %arg1: i32, %arg2: i32, %arg3: memref<1x1x8x8xf32, #tpu.memory_space<vmem>>, %arg4: memref<1x1x8x8xf32, #tpu.memory_space<vmem>>, %arg5: memref<1x1x8x8xf32, #tpu.memory_space<vmem>>, %arg6: memref<1x1x8x8xf32, #tpu.memory_space<vmem>>, %arg7: memref<1x1x8x8xf32, #tpu.memory_space<vmem>>) attributes {dimension_semantics = [#tpu.dimension_semantics<parallel>, #tpu.dimension_semantics<parallel>, #tpu.dimension_semantics<parallel>], iteration_bounds = array<i64: 2, 4, 1>, scalar_prefetch = 0 : i64, scratch_operands = 0 : i64, tpu.core_type = #tpu.core_type<tc>, window_params = [{transform_indices = @transform_0, window_bounds = array<i64: 1, 1, 8, 8>}, {transform_indices = @transform_1, window_bounds = array<i64: 1, 1, 8, 8>}, {transform_indices = @transform_2, window_bounds = array<i64: 1, 1, 8, 8>}, {transform_indices = @transform_3, window_bounds = array<i64: 1, 1, 8, 8>}, {transform_indices = @transform_4, window_bounds = array<i64: 1, 1, 8, 8>}]} {
    %c0 = arith.constant 0 : index
    %c0_0 = arith.constant 0 : index
    %c0_1 = arith.constant 0 : index
    %c0_2 = arith.constant 0 : index
    %0 = vector.load %arg3[%c0, %c0_0, %c0_1, %c0_2] : memref<1x1x8x8xf32, #tpu.memory_space<vmem>>, vector<1x1x8x8xf32>
    %1 = vector.shape_cast %0 : vector<1x1x8x8xf32> to vector<8x8xf32>
    %cst = arith.constant 0.353553385 : f32
    %2 = vector.broadcast %cst : f32 to vector<8x8xf32>
    %3 = arith.mulf %1, %2 : vector<8x8xf32>
    %c0_3 = arith.constant 0 : index
    %c0_4 = arith.constant 0 : index
    %c0_5 = arith.constant 0 : index
    %c0_6 = arith.constant 0 : index
    %4 = vector.load %arg4[%c0_3, %c0_4, %c0_5, %c0_6] : memref<1x1x8x8xf32, #tpu.memory_space<vmem>>, vector<1x1x8x8xf32>
    %5 = vector.shape_cast %4 : vector<1x1x8x8xf32> to vector<8x8xf32>
    %c0_7 = arith.constant 0 : index
    %c0_8 = arith.constant 0 : index
    %c0_9 = arith.constant 0 : index
    %c0_10 = arith.constant 0 : index
    %6 = vector.load %arg5[%c0_7, %c0_8, %c0_9, %c0_10] : memref<1x1x8x8xf32, #tpu.memory_space<vmem>>, vector<1x1x8x8xf32>
    %7 = vector.shape_cast %6 : vector<1x1x8x8xf32> to vector<8x8xf32>
    %cst_11 = arith.constant dense<0.000000e+00> : vector<8x8xf32>
    %8 = tpu.matmul %3, %5, %cst_11 {dimension_numbers = #tpu.dot_dimension_numbers<[1], [1], [0], [0], [0, 0, 1, 0], [], []>} : vector<8x8xf32>, vector<8x8xf32>, vector<8x8xf32> -> vector<8x8xf32>
    %c8_i32 = arith.constant 8 : i32
    %9 = arith.muli %arg2, %c8_i32 : i32
    %10 = tpu.iota {dimensions = array<i32: 0>} : vector<8x8xi32>
    %11 = vector.broadcast %9 : i32 to vector<8x8xi32>
    %12 = arith.addi %11, %10 : vector<8x8xi32>
    %13 = tpu.iota {dimensions = array<i32: 1>} : vector<8x8xi32>
    %14 = arith.cmpi sle, %13, %12 : vector<8x8xi32>
    %cst_12 = arith.constant -1.000000e+30 : f32
    %15 = vector.broadcast %cst_12 : f32 to vector<8x8xf32>
    %16 = arith.select %14, %8, %15 : vector<8x8xi1>, vector<8x8xf32>
    %cst_13 = arith.constant dense<0xFF800000> : vector<8xf32>
    %17 = vector.multi_reduction <maximumf>, %16, %cst_13 [1] : vector<8x8xf32> to vector<8xf32>
    %18 = vector.shape_cast %17 : vector<8xf32> to vector<8x1xf32>
    %19 = vector.broadcast %18 : vector<8x1xf32> to vector<8x8xf32>
    %20 = arith.subf %16, %19 : vector<8x8xf32>
    %21 = math.exp %20 : vector<8x8xf32>
    %cst_14 = arith.constant dense<0.000000e+00> : vector<8xf32>
    %22 = vector.multi_reduction <add>, %21, %cst_14 [1] : vector<8x8xf32> to vector<8xf32>
    %23 = vector.shape_cast %22 : vector<8xf32> to vector<8x1xf32>
    %24 = vector.broadcast %23 : vector<8x1xf32> to vector<8x8xf32>
    %25 = arith.divf %21, %24 : vector<8x8xf32>
    %c0_15 = arith.constant 0 : index
    %c0_16 = arith.constant 0 : index
    %c0_17 = arith.constant 0 : index
    %c0_18 = arith.constant 0 : index
    %26 = vector.load %arg7[%c0_15, %c0_16, %c0_17, %c0_18] : memref<1x1x8x8xf32, #tpu.memory_space<vmem>>, vector<1x1x8x8xf32>
    %27 = vector.shape_cast %26 : vector<1x1x8x8xf32> to vector<8x8xf32>
    %28 = vector.shape_cast %25 : vector<8x8xf32> to vector<1x1x8x8xf32>
    tpu.vector_store %arg7[%c0_15, %c0_16, %c0_17, %c0_18], %28 {strides = array<i32>} : memref<1x1x8x8xf32, #tpu.memory_space<vmem>>, vector<1x1x8x8xf32>,
    %cst_19 = arith.constant dense<0.000000e+00> : vector<8x8xf32>
    %29 = tpu.matmul %25, %7, %cst_19 {dimension_numbers = #tpu.dot_dimension_numbers<[1], [0], [0], [1], [0, 0, 1, 1], [], []>} : vector<8x8xf32>, vector<8x8xf32>, vector<8x8xf32> -> vector<8x8xf32>
    %c0_20 = arith.constant 0 : index
    %c0_21 = arith.constant 0 : index
    %c0_22 = arith.constant 0 : index
    %c0_23 = arith.constant 0 : index
    %30 = vector.load %arg6[%c0_20, %c0_21, %c0_22, %c0_23] : memref<1x1x8x8xf32, #tpu.memory_space<vmem>>, vector<1x1x8x8xf32>
    %31 = vector.shape_cast %30 : vector<1x1x8x8xf32> to vector<8x8xf32>
    %32 = vector.shape_cast %29 : vector<8x8xf32> to vector<1x1x8x8xf32>
    tpu.vector_store %arg6[%c0_20, %c0_21, %c0_22, %c0_23], %32 {strides = array<i32>} : memref<1x1x8x8xf32, #tpu.memory_space<vmem>>, vector<1x1x8x8xf32>,
    return
  }
  func.func @transform_0(%arg0: i32, %arg1: i32, %arg2: i32) -> (i32, i32, i32, i32) {
    %c0_i32 = arith.constant 0 : i32
    %c0_i32_0 = arith.constant 0 : i32
    return %arg0, %arg1, %arg2, %c0_i32 : i32, i32, i32, i32
  }
  func.func @transform_1(%arg0: i32, %arg1: i32, %arg2: i32) -> (i32, i32, i32, i32) {
    %c0_i32 = arith.constant 0 : i32
    %c0_i32_0 = arith.constant 0 : i32
    %c0_i32_1 = arith.constant 0 : i32
    return %arg0, %arg1, %c0_i32, %c0_i32_0 : i32, i32, i32, i32
  }
  func.func @transform_2(%arg0: i32, %arg1: i32, %arg2: i32) -> (i32, i32, i32, i32) {
    %c0_i32 = arith.constant 0 : i32
    %c0_i32_0 = arith.constant 0 : i32
    %c0_i32_1 = arith.constant 0 : i32
    return %arg0, %arg1, %c0_i32, %c0_i32_0 : i32, i32, i32, i32
  }
  func.func @transform_3(%arg0: i32, %arg1: i32, %arg2: i32) -> (i32, i32, i32, i32) {
    %c0_i32 = arith.constant 0 : i32
    %c0_i32_0 = arith.constant 0 : i32
    return %arg0, %arg1, %arg2, %c0_i32 : i32, i32, i32, i32
  }
  func.func @transform_4(%arg0: i32, %arg1: i32, %arg2: i32) -> (i32, i32, i32, i32) {
    %c0_i32 = arith.constant 0 : i32
    %c0_i32_0 = arith.constant 0 : i32
    return %arg0, %arg1, %arg2, %c0_i32 : i32, i32, i32, i32
  }
}

module attributes {stable_mosaic.version = 11 : i64} {
  func.func @_proj_add_ln_kernel(%arg0: i32, %arg1: i32, %arg2: memref<16x32xf32, #tpu.memory_space<vmem>>, %arg3: memref<32x32xf32, #tpu.memory_space<vmem>>, %arg4: memref<1x32xf32, #tpu.memory_space<vmem>>, %arg5: memref<16x32xf32, #tpu.memory_space<vmem>>, %arg6: memref<1x32xf32, #tpu.memory_space<vmem>>, %arg7: memref<1x32xf32, #tpu.memory_space<vmem>>, %arg8: memref<16x32xf32, #tpu.memory_space<vmem>>, %arg9: memref<16x32xf32, #tpu.memory_space<vmem>>) attributes {dimension_semantics = [#tpu.dimension_semantics<parallel>, #tpu.dimension_semantics<arbitrary>], iteration_bounds = array<i64: 1, 1>, scalar_prefetch = 0 : i64, scratch_operands = 1 : i64, tpu.core_type = #tpu.core_type<tc>, window_params = [{transform_indices = @transform_0, window_bounds = array<i64: 16, 32>}, {transform_indices = @transform_1, window_bounds = array<i64: 32, 32>}, {pipeline_mode = #tpu.pipeline_mode<synchronous>, transform_indices = @transform_2, window_bounds = array<i64: 1, 32>}, {transform_indices = @transform_3, window_bounds = array<i64: 16, 32>}, {pipeline_mode = #tpu.pipeline_mode<synchronous>, transform_indices = @transform_4, window_bounds = array<i64: 1, 32>}, {pipeline_mode = #tpu.pipeline_mode<synchronous>, transform_indices = @transform_5, window_bounds = array<i64: 1, 32>}, {transform_indices = @transform_6, window_bounds = array<i64: 16, 32>}]} {
    %c0_i32 = arith.constant 0 : i32
    %0 = arith.cmpi eq, %arg1, %c0_i32 : i32
    %1 = arith.extui %0 : i1 to i32
    %c0_i32_0 = arith.constant 0 : i32
    %2 = arith.cmpi ne, %1, %c0_i32_0 : i32
    scf.if %2 {
      %cst_10 = arith.constant 0.000000e+00 : f32
      %12 = vector.broadcast %cst_10 : f32 to vector<16x32xf32>
      %c0_11 = arith.constant 0 : index
      %c0_12 = arith.constant 0 : index
      %13 = vector.load %arg9[%c0_11, %c0_12] : memref<16x32xf32, #tpu.memory_space<vmem>>, vector<16x32xf32>
      tpu.vector_store %arg9[%c0_11, %c0_12], %12 {strides = array<i32>} : memref<16x32xf32, #tpu.memory_space<vmem>>, vector<16x32xf32>,
    } else {
    }
    %c0 = arith.constant 0 : index
    %c0_1 = arith.constant 0 : index
    %3 = vector.load %arg9[%c0, %c0_1] : memref<16x32xf32, #tpu.memory_space<vmem>>, vector<16x32xf32>
    %c0_2 = arith.constant 0 : index
    %c0_3 = arith.constant 0 : index
    %4 = vector.load %arg2[%c0_2, %c0_3] : memref<16x32xf32, #tpu.memory_space<vmem>>, vector<16x32xf32>
    %c0_4 = arith.constant 0 : index
    %c0_5 = arith.constant 0 : index
    %5 = vector.load %arg3[%c0_4, %c0_5] : memref<32x32xf32, #tpu.memory_space<vmem>>, vector<32x32xf32>
    %cst = arith.constant dense<0.000000e+00> : vector<16x32xf32>
    %6 = tpu.matmul %4, %5, %cst {dimension_numbers = #tpu.dot_dimension_numbers<[1], [0], [0], [1], [0, 0, 1, 1], [], []>} : vector<16x32xf32>, vector<32x32xf32>, vector<16x32xf32> -> vector<16x32xf32>
    %7 = arith.addf %3, %6 : vector<16x32xf32>
    %c0_6 = arith.constant 0 : index
    %c0_7 = arith.constant 0 : index
    %8 = vector.load %arg9[%c0_6, %c0_7] : memref<16x32xf32, #tpu.memory_space<vmem>>, vector<16x32xf32>
    tpu.vector_store %arg9[%c0_6, %c0_7], %7 {strides = array<i32>} : memref<16x32xf32, #tpu.memory_space<vmem>>, vector<16x32xf32>,
    %c0_i32_8 = arith.constant 0 : i32
    %9 = arith.cmpi eq, %arg1, %c0_i32_8 : i32
    %10 = arith.extui %9 : i1 to i32
    %c0_i32_9 = arith.constant 0 : i32
    %11 = arith.cmpi ne, %10, %c0_i32_9 : i32
    scf.if %11 {
      %c0_10 = arith.constant 0 : index
      %c0_11 = arith.constant 0 : index
      %12 = vector.load %arg9[%c0_10, %c0_11] : memref<16x32xf32, #tpu.memory_space<vmem>>, vector<16x32xf32>
      %c0_12 = arith.constant 0 : index
      %c0_13 = arith.constant 0 : index
      %13 = vector.load %arg4[%c0_12, %c0_13] : memref<1x32xf32, #tpu.memory_space<vmem>>, vector<1x32xf32>
      %14 = vector.broadcast %13 : vector<1x32xf32> to vector<16x32xf32>
      %15 = arith.addf %12, %14 : vector<16x32xf32>
      %c0_14 = arith.constant 0 : index
      %c0_15 = arith.constant 0 : index
      %16 = vector.load %arg5[%c0_14, %c0_15] : memref<16x32xf32, #tpu.memory_space<vmem>>, vector<16x32xf32>
      %17 = arith.addf %15, %16 : vector<16x32xf32>
      %cst_16 = arith.constant dense<0.000000e+00> : vector<16xf32>
      %18 = vector.multi_reduction <add>, %17, %cst_16 [1] : vector<16x32xf32> to vector<16xf32>
      %19 = vector.shape_cast %18 : vector<16xf32> to vector<16x1xf32>
      %cst_17 = arith.constant 3.200000e+01 : f32
      %20 = vector.broadcast %cst_17 : f32 to vector<16x1xf32>
      %21 = arith.divf %19, %20 : vector<16x1xf32>
      %22 = vector.broadcast %21 : vector<16x1xf32> to vector<16x32xf32>
      %23 = arith.subf %17, %22 : vector<16x32xf32>
      %24 = arith.mulf %23, %23 : vector<16x32xf32>
      %cst_18 = arith.constant dense<0.000000e+00> : vector<16xf32>
      %25 = vector.multi_reduction <add>, %24, %cst_18 [1] : vector<16x32xf32> to vector<16xf32>
      %26 = vector.shape_cast %25 : vector<16xf32> to vector<16x1xf32>
      %cst_19 = arith.constant 3.200000e+01 : f32
      %27 = vector.broadcast %cst_19 : f32 to vector<16x1xf32>
      %28 = arith.divf %26, %27 : vector<16x1xf32>
      %29 = vector.broadcast %21 : vector<16x1xf32> to vector<16x32xf32>
      %30 = arith.subf %17, %29 : vector<16x32xf32>
      %cst_20 = arith.constant 9.99999974E-6 : f32
      %31 = vector.broadcast %cst_20 : f32 to vector<16x1xf32>
      %32 = arith.addf %28, %31 : vector<16x1xf32>
      %33 = math.rsqrt %32 : vector<16x1xf32>
      %34 = vector.broadcast %33 : vector<16x1xf32> to vector<16x32xf32>
      %35 = arith.mulf %30, %34 : vector<16x32xf32>
      %c0_21 = arith.constant 0 : index
      %c0_22 = arith.constant 0 : index
      %36 = vector.load %arg6[%c0_21, %c0_22] : memref<1x32xf32, #tpu.memory_space<vmem>>, vector<1x32xf32>
      %37 = vector.broadcast %36 : vector<1x32xf32> to vector<16x32xf32>
      %38 = arith.mulf %35, %37 : vector<16x32xf32>
      %c0_23 = arith.constant 0 : index
      %c0_24 = arith.constant 0 : index
      %39 = vector.load %arg7[%c0_23, %c0_24] : memref<1x32xf32, #tpu.memory_space<vmem>>, vector<1x32xf32>
      %40 = vector.broadcast %39 : vector<1x32xf32> to vector<16x32xf32>
      %41 = arith.addf %38, %40 : vector<16x32xf32>
      %c0_25 = arith.constant 0 : index
      %c0_26 = arith.constant 0 : index
      %42 = vector.load %arg8[%c0_25, %c0_26] : memref<16x32xf32, #tpu.memory_space<vmem>>, vector<16x32xf32>
      tpu.vector_store %arg8[%c0_25, %c0_26], %41 {strides = array<i32>} : memref<16x32xf32, #tpu.memory_space<vmem>>, vector<16x32xf32>,
    } else {
    }
    return
  }
  func.func @transform_0(%arg0: i32, %arg1: i32) -> (i32, i32) {
    %c0_i32 = arith.constant 0 : i32
    return %arg0, %arg1 : i32, i32
  }
  func.func @transform_1(%arg0: i32, %arg1: i32) -> (i32, i32) {
    %c0_i32 = arith.constant 0 : i32
    %c0_i32_0 = arith.constant 0 : i32
    return %arg1, %c0_i32 : i32, i32
  }
  func.func @transform_2(%arg0: i32, %arg1: i32) -> (i32, i32) {
    %c0_i32 = arith.constant 0 : i32
    %c0_i32_0 = arith.constant 0 : i32
    %c0_i32_1 = arith.constant 0 : i32
    return %c0_i32, %c0_i32_0 : i32, i32
  }
  func.func @transform_3(%arg0: i32, %arg1: i32) -> (i32, i32) {
    %c0_i32 = arith.constant 0 : i32
    %c0_i32_0 = arith.constant 0 : i32
    return %arg0, %c0_i32 : i32, i32
  }
  func.func @transform_4(%arg0: i32, %arg1: i32) -> (i32, i32) {
    %c0_i32 = arith.constant 0 : i32
    %c0_i32_0 = arith.constant 0 : i32
    %c0_i32_1 = arith.constant 0 : i32
    return %c0_i32, %c0_i32_0 : i32, i32
  }
  func.func @transform_5(%arg0: i32, %arg1: i32) -> (i32, i32) {
    %c0_i32 = arith.constant 0 : i32
    %c0_i32_0 = arith.constant 0 : i32
    %c0_i32_1 = arith.constant 0 : i32
    return %c0_i32, %c0_i32_0 : i32, i32
  }
  func.func @transform_6(%arg0: i32, %arg1: i32) -> (i32, i32) {
    %c0_i32 = arith.constant 0 : i32
    %c0_i32_0 = arith.constant 0 : i32
    return %arg0, %c0_i32 : i32, i32
  }
}

module attributes {stable_mosaic.version = 11 : i64} {
  func.func @_matmul_bias_kernel_f32(%arg0: i32, %arg1: i32, %arg2: i32, %arg3: memref<16x32xf32, #tpu.memory_space<vmem>>, %arg4: memref<32x32xf32, #tpu.memory_space<vmem>>, %arg5: memref<1x32xf32, #tpu.memory_space<vmem>>, %arg6: memref<16x32xf32, #tpu.memory_space<vmem>>) attributes {dimension_semantics = [#tpu.dimension_semantics<parallel>, #tpu.dimension_semantics<parallel>, #tpu.dimension_semantics<arbitrary>], iteration_bounds = array<i64: 1, 1, 1>, scalar_prefetch = 0 : i64, scratch_operands = 0 : i64, tpu.core_type = #tpu.core_type<tc>, window_params = [{transform_indices = @transform_0, window_bounds = array<i64: 16, 32>}, {transform_indices = @transform_1, window_bounds = array<i64: 32, 32>}, {transform_indices = @transform_2, window_bounds = array<i64: 1, 32>}, {transform_indices = @transform_3, window_bounds = array<i64: 16, 32>}]} {
    %c0_i32 = arith.constant 0 : i32
    %0 = arith.cmpi eq, %arg2, %c0_i32 : i32
    %1 = arith.extui %0 : i1 to i32
    %c0_i32_0 = arith.constant 0 : i32
    %2 = arith.cmpi ne, %1, %c0_i32_0 : i32
    scf.if %2 {
      %cst_10 = arith.constant 0.000000e+00 : f32
      %12 = vector.broadcast %cst_10 : f32 to vector<16x32xf32>
      %c0_11 = arith.constant 0 : index
      %c0_12 = arith.constant 0 : index
      %13 = vector.load %arg6[%c0_11, %c0_12] : memref<16x32xf32, #tpu.memory_space<vmem>>, vector<16x32xf32>
      tpu.vector_store %arg6[%c0_11, %c0_12], %12 {strides = array<i32>} : memref<16x32xf32, #tpu.memory_space<vmem>>, vector<16x32xf32>,
    } else {
    }
    %c0 = arith.constant 0 : index
    %c0_1 = arith.constant 0 : index
    %3 = vector.load %arg6[%c0, %c0_1] : memref<16x32xf32, #tpu.memory_space<vmem>>, vector<16x32xf32>
    %c0_2 = arith.constant 0 : index
    %c0_3 = arith.constant 0 : index
    %4 = vector.load %arg3[%c0_2, %c0_3] : memref<16x32xf32, #tpu.memory_space<vmem>>, vector<16x32xf32>
    %c0_4 = arith.constant 0 : index
    %c0_5 = arith.constant 0 : index
    %5 = vector.load %arg4[%c0_4, %c0_5] : memref<32x32xf32, #tpu.memory_space<vmem>>, vector<32x32xf32>
    %cst = arith.constant dense<0.000000e+00> : vector<16x32xf32>
    %6 = tpu.matmul %4, %5, %cst {dimension_numbers = #tpu.dot_dimension_numbers<[1], [0], [0], [1], [0, 0, 1, 1], [], []>} : vector<16x32xf32>, vector<32x32xf32>, vector<16x32xf32> -> vector<16x32xf32>
    %7 = arith.addf %3, %6 : vector<16x32xf32>
    %c0_6 = arith.constant 0 : index
    %c0_7 = arith.constant 0 : index
    %8 = vector.load %arg6[%c0_6, %c0_7] : memref<16x32xf32, #tpu.memory_space<vmem>>, vector<16x32xf32>
    tpu.vector_store %arg6[%c0_6, %c0_7], %7 {strides = array<i32>} : memref<16x32xf32, #tpu.memory_space<vmem>>, vector<16x32xf32>,
    %c0_i32_8 = arith.constant 0 : i32
    %9 = arith.cmpi eq, %arg2, %c0_i32_8 : i32
    %10 = arith.extui %9 : i1 to i32
    %c0_i32_9 = arith.constant 0 : i32
    %11 = arith.cmpi ne, %10, %c0_i32_9 : i32
    scf.if %11 {
      %c0_10 = arith.constant 0 : index
      %c0_11 = arith.constant 0 : index
      %12 = vector.load %arg6[%c0_10, %c0_11] : memref<16x32xf32, #tpu.memory_space<vmem>>, vector<16x32xf32>
      %c0_12 = arith.constant 0 : index
      %c0_13 = arith.constant 0 : index
      %13 = vector.load %arg5[%c0_12, %c0_13] : memref<1x32xf32, #tpu.memory_space<vmem>>, vector<1x32xf32>
      %14 = vector.broadcast %13 : vector<1x32xf32> to vector<16x32xf32>
      %15 = arith.addf %12, %14 : vector<16x32xf32>
      %c0_14 = arith.constant 0 : index
      %c0_15 = arith.constant 0 : index
      %16 = vector.load %arg6[%c0_14, %c0_15] : memref<16x32xf32, #tpu.memory_space<vmem>>, vector<16x32xf32>
      tpu.vector_store %arg6[%c0_14, %c0_15], %15 {strides = array<i32>} : memref<16x32xf32, #tpu.memory_space<vmem>>, vector<16x32xf32>,
    } else {
    }
    return
  }
  func.func @transform_0(%arg0: i32, %arg1: i32, %arg2: i32) -> (i32, i32) {
    %c0_i32 = arith.constant 0 : i32
    return %arg0, %arg2 : i32, i32
  }
  func.func @transform_1(%arg0: i32, %arg1: i32, %arg2: i32) -> (i32, i32) {
    %c0_i32 = arith.constant 0 : i32
    return %arg2, %arg1 : i32, i32
  }
  func.func @transform_2(%arg0: i32, %arg1: i32, %arg2: i32) -> (i32, i32) {
    %c0_i32 = arith.constant 0 : i32
    %c0_i32_0 = arith.constant 0 : i32
    return %c0_i32, %arg1 : i32, i32
  }
  func.func @transform_3(%arg0: i32, %arg1: i32, %arg2: i32) -> (i32, i32) {
    %c0_i32 = arith.constant 0 : i32
    return %arg0, %arg1 : i32, i32
  }
}

module attributes {stable_mosaic.version = 11 : i64} {
  func.func @_matmul_bias_kernel_f32(%arg0: i32, %arg1: i32, %arg2: i32, %arg3: memref<16x32xf32, #tpu.memory_space<vmem>>, %arg4: memref<32x64xf32, #tpu.memory_space<vmem>>, %arg5: memref<1x64xf32, #tpu.memory_space<vmem>>, %arg6: memref<16x64xf32, #tpu.memory_space<vmem>>) attributes {dimension_semantics = [#tpu.dimension_semantics<parallel>, #tpu.dimension_semantics<parallel>, #tpu.dimension_semantics<arbitrary>], iteration_bounds = array<i64: 1, 1, 1>, scalar_prefetch = 0 : i64, scratch_operands = 0 : i64, tpu.core_type = #tpu.core_type<tc>, window_params = [{transform_indices = @transform_0, window_bounds = array<i64: 16, 32>}, {transform_indices = @transform_1, window_bounds = array<i64: 32, 64>}, {transform_indices = @transform_2, window_bounds = array<i64: 1, 64>}, {transform_indices = @transform_3, window_bounds = array<i64: 16, 64>}]} {
    %c0_i32 = arith.constant 0 : i32
    %0 = arith.cmpi eq, %arg2, %c0_i32 : i32
    %1 = arith.extui %0 : i1 to i32
    %c0_i32_0 = arith.constant 0 : i32
    %2 = arith.cmpi ne, %1, %c0_i32_0 : i32
    scf.if %2 {
      %cst_10 = arith.constant 0.000000e+00 : f32
      %12 = vector.broadcast %cst_10 : f32 to vector<16x64xf32>
      %c0_11 = arith.constant 0 : index
      %c0_12 = arith.constant 0 : index
      %13 = vector.load %arg6[%c0_11, %c0_12] : memref<16x64xf32, #tpu.memory_space<vmem>>, vector<16x64xf32>
      tpu.vector_store %arg6[%c0_11, %c0_12], %12 {strides = array<i32>} : memref<16x64xf32, #tpu.memory_space<vmem>>, vector<16x64xf32>,
    } else {
    }
    %c0 = arith.constant 0 : index
    %c0_1 = arith.constant 0 : index
    %3 = vector.load %arg6[%c0, %c0_1] : memref<16x64xf32, #tpu.memory_space<vmem>>, vector<16x64xf32>
    %c0_2 = arith.constant 0 : index
    %c0_3 = arith.constant 0 : index
    %4 = vector.load %arg3[%c0_2, %c0_3] : memref<16x32xf32, #tpu.memory_space<vmem>>, vector<16x32xf32>
    %c0_4 = arith.constant 0 : index
    %c0_5 = arith.constant 0 : index
    %5 = vector.load %arg4[%c0_4, %c0_5] : memref<32x64xf32, #tpu.memory_space<vmem>>, vector<32x64xf32>
    %cst = arith.constant dense<0.000000e+00> : vector<16x64xf32>
    %6 = tpu.matmul %4, %5, %cst {dimension_numbers = #tpu.dot_dimension_numbers<[1], [0], [0], [1], [0, 0, 1, 1], [], []>} : vector<16x32xf32>, vector<32x64xf32>, vector<16x64xf32> -> vector<16x64xf32>
    %7 = arith.addf %3, %6 : vector<16x64xf32>
    %c0_6 = arith.constant 0 : index
    %c0_7 = arith.constant 0 : index
    %8 = vector.load %arg6[%c0_6, %c0_7] : memref<16x64xf32, #tpu.memory_space<vmem>>, vector<16x64xf32>
    tpu.vector_store %arg6[%c0_6, %c0_7], %7 {strides = array<i32>} : memref<16x64xf32, #tpu.memory_space<vmem>>, vector<16x64xf32>,
    %c0_i32_8 = arith.constant 0 : i32
    %9 = arith.cmpi eq, %arg2, %c0_i32_8 : i32
    %10 = arith.extui %9 : i1 to i32
    %c0_i32_9 = arith.constant 0 : i32
    %11 = arith.cmpi ne, %10, %c0_i32_9 : i32
    scf.if %11 {
      %c0_10 = arith.constant 0 : index
      %c0_11 = arith.constant 0 : index
      %12 = vector.load %arg6[%c0_10, %c0_11] : memref<16x64xf32, #tpu.memory_space<vmem>>, vector<16x64xf32>
      %c0_12 = arith.constant 0 : index
      %c0_13 = arith.constant 0 : index
      %13 = vector.load %arg5[%c0_12, %c0_13] : memref<1x64xf32, #tpu.memory_space<vmem>>, vector<1x64xf32>
      %14 = vector.broadcast %13 : vector<1x64xf32> to vector<16x64xf32>
      %15 = arith.addf %12, %14 : vector<16x64xf32>
      %c0_14 = arith.constant 0 : index
      %c0_15 = arith.constant 0 : index
      %16 = vector.load %arg6[%c0_14, %c0_15] : memref<16x64xf32, #tpu.memory_space<vmem>>, vector<16x64xf32>
      tpu.vector_store %arg6[%c0_14, %c0_15], %15 {strides = array<i32>} : memref<16x64xf32, #tpu.memory_space<vmem>>, vector<16x64xf32>,
    } else {
    }
    return
  }
  func.func @transform_0(%arg0: i32, %arg1: i32, %arg2: i32) -> (i32, i32) {
    %c0_i32 = arith.constant 0 : i32
    return %arg0, %arg2 : i32, i32
  }
  func.func @transform_1(%arg0: i32, %arg1: i32, %arg2: i32) -> (i32, i32) {
    %c0_i32 = arith.constant 0 : i32
    return %arg2, %arg1 : i32, i32
  }
  func.func @transform_2(%arg0: i32, %arg1: i32, %arg2: i32) -> (i32, i32) {
    %c0_i32 = arith.constant 0 : i32
    %c0_i32_0 = arith.constant 0 : i32
    return %c0_i32, %arg1 : i32, i32
  }
  func.func @transform_3(%arg0: i32, %arg1: i32, %arg2: i32) -> (i32, i32) {
    %c0_i32 = arith.constant 0 : i32
    return %arg0, %arg1 : i32, i32
  }
}

module attributes {stable_mosaic.version = 11 : i64} {
  func.func @_ffn_add_ln_kernel(%arg0: i32, %arg1: i32, %arg2: memref<16x32xf32, #tpu.memory_space<vmem>>, %arg3: memref<32x64xf32, #tpu.memory_space<vmem>>, %arg4: memref<1x64xf32, #tpu.memory_space<vmem>>, %arg5: memref<64x32xf32, #tpu.memory_space<vmem>>, %arg6: memref<1x32xf32, #tpu.memory_space<vmem>>, %arg7: memref<16x32xf32, #tpu.memory_space<vmem>>, %arg8: memref<1x32xf32, #tpu.memory_space<vmem>>, %arg9: memref<1x32xf32, #tpu.memory_space<vmem>>, %arg10: memref<16x32xf32, #tpu.memory_space<vmem>>, %arg11: memref<16x32xf32, #tpu.memory_space<vmem>>) attributes {dimension_semantics = [#tpu.dimension_semantics<parallel>, #tpu.dimension_semantics<arbitrary>], iteration_bounds = array<i64: 1, 1>, scalar_prefetch = 0 : i64, scratch_operands = 1 : i64, tpu.core_type = #tpu.core_type<tc>, window_params = [{transform_indices = @transform_0, window_bounds = array<i64: 16, 32>}, {transform_indices = @transform_1, window_bounds = array<i64: 32, 64>}, {transform_indices = @transform_2, window_bounds = array<i64: 1, 64>}, {transform_indices = @transform_3, window_bounds = array<i64: 64, 32>}, {pipeline_mode = #tpu.pipeline_mode<synchronous>, transform_indices = @transform_4, window_bounds = array<i64: 1, 32>}, {transform_indices = @transform_5, window_bounds = array<i64: 16, 32>}, {pipeline_mode = #tpu.pipeline_mode<synchronous>, transform_indices = @transform_6, window_bounds = array<i64: 1, 32>}, {pipeline_mode = #tpu.pipeline_mode<synchronous>, transform_indices = @transform_7, window_bounds = array<i64: 1, 32>}, {transform_indices = @transform_8, window_bounds = array<i64: 16, 32>}]} {
    %c0_i32 = arith.constant 0 : i32
    %0 = arith.cmpi eq, %arg1, %c0_i32 : i32
    %1 = arith.extui %0 : i1 to i32
    %c0_i32_0 = arith.constant 0 : i32
    %2 = arith.cmpi ne, %1, %c0_i32_0 : i32
    scf.if %2 {
      %cst_16 = arith.constant 0.000000e+00 : f32
      %19 = vector.broadcast %cst_16 : f32 to vector<16x32xf32>
      %c0_17 = arith.constant 0 : index
      %c0_18 = arith.constant 0 : index
      %20 = vector.load %arg11[%c0_17, %c0_18] : memref<16x32xf32, #tpu.memory_space<vmem>>, vector<16x32xf32>
      tpu.vector_store %arg11[%c0_17, %c0_18], %19 {strides = array<i32>} : memref<16x32xf32, #tpu.memory_space<vmem>>, vector<16x32xf32>,
    } else {
    }
    %c0 = arith.constant 0 : index
    %c0_1 = arith.constant 0 : index
    %3 = vector.load %arg2[%c0, %c0_1] : memref<16x32xf32, #tpu.memory_space<vmem>>, vector<16x32xf32>
    %c0_2 = arith.constant 0 : index
    %c0_3 = arith.constant 0 : index
    %4 = vector.load %arg3[%c0_2, %c0_3] : memref<32x64xf32, #tpu.memory_space<vmem>>, vector<32x64xf32>
    %cst = arith.constant dense<0.000000e+00> : vector<16x64xf32>
    %5 = tpu.matmul %3, %4, %cst {dimension_numbers = #tpu.dot_dimension_numbers<[1], [0], [0], [1], [0, 0, 1, 1], [], []>} : vector<16x32xf32>, vector<32x64xf32>, vector<16x64xf32> -> vector<16x64xf32>
    %c0_4 = arith.constant 0 : index
    %c0_5 = arith.constant 0 : index
    %6 = vector.load %arg4[%c0_4, %c0_5] : memref<1x64xf32, #tpu.memory_space<vmem>>, vector<1x64xf32>
    %7 = vector.broadcast %6 : vector<1x64xf32> to vector<16x64xf32>
    %8 = arith.addf %5, %7 : vector<16x64xf32>
    %cst_6 = arith.constant 0.000000e+00 : f32
    %9 = vector.broadcast %cst_6 : f32 to vector<16x64xf32>
    %10 = arith.maximumf %8, %9 : vector<16x64xf32>
    %c0_7 = arith.constant 0 : index
    %c0_8 = arith.constant 0 : index
    %11 = vector.load %arg11[%c0_7, %c0_8] : memref<16x32xf32, #tpu.memory_space<vmem>>, vector<16x32xf32>
    %c0_9 = arith.constant 0 : index
    %c0_10 = arith.constant 0 : index
    %12 = vector.load %arg5[%c0_9, %c0_10] : memref<64x32xf32, #tpu.memory_space<vmem>>, vector<64x32xf32>
    %cst_11 = arith.constant dense<0.000000e+00> : vector<16x32xf32>
    %13 = tpu.matmul %10, %12, %cst_11 {dimension_numbers = #tpu.dot_dimension_numbers<[1], [0], [0], [1], [0, 0, 1, 1], [], []>} : vector<16x64xf32>, vector<64x32xf32>, vector<16x32xf32> -> vector<16x32xf32>
    %14 = arith.addf %11, %13 : vector<16x32xf32>
    %c0_12 = arith.constant 0 : index
    %c0_13 = arith.constant 0 : index
    %15 = vector.load %arg11[%c0_12, %c0_13] : memref<16x32xf32, #tpu.memory_space<vmem>>, vector<16x32xf32>
    tpu.vector_store %arg11[%c0_12, %c0_13], %14 {strides = array<i32>} : memref<16x32xf32, #tpu.memory_space<vmem>>, vector<16x32xf32>,
    %c0_i32_14 = arith.constant 0 : i32
    %16 = arith.cmpi eq, %arg1, %c0_i32_14 : i32
    %17 = arith.extui %16 : i1 to i32
    %c0_i32_15 = arith.constant 0 : i32
    %18 = arith.cmpi ne, %17, %c0_i32_15 : i32
    scf.if %18 {
      %c0_16 = arith.constant 0 : index
      %c0_17 = arith.constant 0 : index
      %19 = vector.load %arg11[%c0_16, %c0_17] : memref<16x32xf32, #tpu.memory_space<vmem>>, vector<16x32xf32>
      %c0_18 = arith.constant 0 : index
      %c0_19 = arith.constant 0 : index
      %20 = vector.load %arg6[%c0_18, %c0_19] : memref<1x32xf32, #tpu.memory_space<vmem>>, vector<1x32xf32>
      %21 = vector.broadcast %20 : vector<1x32xf32> to vector<16x32xf32>
      %22 = arith.addf %19, %21 : vector<16x32xf32>
      %c0_20 = arith.constant 0 : index
      %c0_21 = arith.constant 0 : index
      %23 = vector.load %arg7[%c0_20, %c0_21] : memref<16x32xf32, #tpu.memory_space<vmem>>, vector<16x32xf32>
      %24 = arith.addf %22, %23 : vector<16x32xf32>
      %cst_22 = arith.constant dense<0.000000e+00> : vector<16xf32>
      %25 = vector.multi_reduction <add>, %24, %cst_22 [1] : vector<16x32xf32> to vector<16xf32>
      %26 = vector.shape_cast %25 : vector<16xf32> to vector<16x1xf32>
      %cst_23 = arith.constant 3.200000e+01 : f32
      %27 = vector.broadcast %cst_23 : f32 to vector<16x1xf32>
      %28 = arith.divf %26, %27 : vector<16x1xf32>
      %29 = vector.broadcast %28 : vector<16x1xf32> to vector<16x32xf32>
      %30 = arith.subf %24, %29 : vector<16x32xf32>
      %31 = arith.mulf %30, %30 : vector<16x32xf32>
      %cst_24 = arith.constant dense<0.000000e+00> : vector<16xf32>
      %32 = vector.multi_reduction <add>, %31, %cst_24 [1] : vector<16x32xf32> to vector<16xf32>
      %33 = vector.shape_cast %32 : vector<16xf32> to vector<16x1xf32>
      %cst_25 = arith.constant 3.200000e+01 : f32
      %34 = vector.broadcast %cst_25 : f32 to vector<16x1xf32>
      %35 = arith.divf %33, %34 : vector<16x1xf32>
      %36 = vector.broadcast %28 : vector<16x1xf32> to vector<16x32xf32>
      %37 = arith.subf %24, %36 : vector<16x32xf32>
      %cst_26 = arith.constant 9.99999974E-6 : f32
      %38 = vector.broadcast %cst_26 : f32 to vector<16x1xf32>
      %39 = arith.addf %35, %38 : vector<16x1xf32>
      %40 = math.rsqrt %39 : vector<16x1xf32>
      %41 = vector.broadcast %40 : vector<16x1xf32> to vector<16x32xf32>
      %42 = arith.mulf %37, %41 : vector<16x32xf32>
      %c0_27 = arith.constant 0 : index
      %c0_28 = arith.constant 0 : index
      %43 = vector.load %arg8[%c0_27, %c0_28] : memref<1x32xf32, #tpu.memory_space<vmem>>, vector<1x32xf32>
      %44 = vector.broadcast %43 : vector<1x32xf32> to vector<16x32xf32>
      %45 = arith.mulf %42, %44 : vector<16x32xf32>
      %c0_29 = arith.constant 0 : index
      %c0_30 = arith.constant 0 : index
      %46 = vector.load %arg9[%c0_29, %c0_30] : memref<1x32xf32, #tpu.memory_space<vmem>>, vector<1x32xf32>
      %47 = vector.broadcast %46 : vector<1x32xf32> to vector<16x32xf32>
      %48 = arith.addf %45, %47 : vector<16x32xf32>
      %c0_31 = arith.constant 0 : index
      %c0_32 = arith.constant 0 : index
      %49 = vector.load %arg10[%c0_31, %c0_32] : memref<16x32xf32, #tpu.memory_space<vmem>>, vector<16x32xf32>
      tpu.vector_store %arg10[%c0_31, %c0_32], %48 {strides = array<i32>} : memref<16x32xf32, #tpu.memory_space<vmem>>, vector<16x32xf32>,
    } else {
    }
    return
  }
  func.func @transform_0(%arg0: i32, %arg1: i32) -> (i32, i32) {
    %c0_i32 = arith.constant 0 : i32
    %c0_i32_0 = arith.constant 0 : i32
    return %arg0, %c0_i32 : i32, i32
  }
  func.func @transform_1(%arg0: i32, %arg1: i32) -> (i32, i32) {
    %c0_i32 = arith.constant 0 : i32
    %c0_i32_0 = arith.constant 0 : i32
    return %c0_i32, %arg1 : i32, i32
  }
  func.func @transform_2(%arg0: i32, %arg1: i32) -> (i32, i32) {
    %c0_i32 = arith.constant 0 : i32
    %c0_i32_0 = arith.constant 0 : i32
    return %c0_i32, %arg1 : i32, i32
  }
  func.func @transform_3(%arg0: i32, %arg1: i32) -> (i32, i32) {
    %c0_i32 = arith.constant 0 : i32
    %c0_i32_0 = arith.constant 0 : i32
    return %arg1, %c0_i32 : i32, i32
  }
  func.func @transform_4(%arg0: i32, %arg1: i32) -> (i32, i32) {
    %c0_i32 = arith.constant 0 : i32
    %c0_i32_0 = arith.constant 0 : i32
    %c0_i32_1 = arith.constant 0 : i32
    return %c0_i32, %c0_i32_0 : i32, i32
  }
  func.func @transform_5(%arg0: i32, %arg1: i32) -> (i32, i32) {
    %c0_i32 = arith.constant 0 : i32
    %c0_i32_0 = arith.constant 0 : i32
    return %arg0, %c0_i32 : i32, i32
  }
  func.func @transform_6(%arg0: i32, %arg1: i32) -> (i32, i32) {
    %c0_i32 = arith.constant 0 : i32
    %c0_i32_0 = arith.constant 0 : i32
    %c0_i32_1 = arith.constant 0 : i32
    return %c0_i32, %c0_i32_0 : i32, i32
  }
  func.func @transform_7(%arg0: i32, %arg1: i32) -> (i32, i32) {
    %c0_i32 = arith.constant 0 : i32
    %c0_i32_0 = arith.constant 0 : i32
    %c0_i32_1 = arith.constant 0 : i32
    return %c0_i32, %c0_i32_0 : i32, i32
  }
  func.func @transform_8(%arg0: i32, %arg1: i32) -> (i32, i32) {
    %c0_i32 = arith.constant 0 : i32
    %c0_i32_0 = arith.constant 0 : i32
    return %arg0, %c0_i32 : i32, i32
  }
}

module attributes {stable_mosaic.version = 11 : i64} {
  func.func @_attn_kernel(%arg0: i32, %arg1: i32, %arg2: i32, %arg3: memref<1x1x8x8xf32, #tpu.memory_space<vmem>>, %arg4: memref<1x1x8x8xf32, #tpu.memory_space<vmem>>, %arg5: memref<1x1x8x8xf32, #tpu.memory_space<vmem>>, %arg6: memref<1x1x8x8xf32, #tpu.memory_space<vmem>>, %arg7: memref<1x1x8x8xf32, #tpu.memory_space<vmem>>) attributes {dimension_semantics = [#tpu.dimension_semantics<parallel>, #tpu.dimension_semantics<parallel>, #tpu.dimension_semantics<parallel>], iteration_bounds = array<i64: 2, 4, 1>, scalar_prefetch = 0 : i64, scratch_operands = 0 : i64, tpu.core_type = #tpu.core_type<tc>, window_params = [{transform_indices = @transform_0, window_bounds = array<i64: 1, 1, 8, 8>}, {transform_indices = @transform_1, window_bounds = array<i64: 1, 1, 8, 8>}, {transform_indices = @transform_2, window_bounds = array<i64: 1, 1, 8, 8>}, {transform_indices = @transform_3, window_bounds = array<i64: 1, 1, 8, 8>}, {transform_indices = @transform_4, window_bounds = array<i64: 1, 1, 8, 8>}]} {
    %c0 = arith.constant 0 : index
    %c0_0 = arith.constant 0 : index
    %c0_1 = arith.constant 0 : index
    %c0_2 = arith.constant 0 : index
    %0 = vector.load %arg3[%c0, %c0_0, %c0_1, %c0_2] : memref<1x1x8x8xf32, #tpu.memory_space<vmem>>, vector<1x1x8x8xf32>
    %1 = vector.shape_cast %0 : vector<1x1x8x8xf32> to vector<8x8xf32>
    %cst = arith.constant 0.353553385 : f32
    %2 = vector.broadcast %cst : f32 to vector<8x8xf32>
    %3 = arith.mulf %1, %2 : vector<8x8xf32>
    %c0_3 = arith.constant 0 : index
    %c0_4 = arith.constant 0 : index
    %c0_5 = arith.constant 0 : index
    %c0_6 = arith.constant 0 : index
    %4 = vector.load %arg4[%c0_3, %c0_4, %c0_5, %c0_6] : memref<1x1x8x8xf32, #tpu.memory_space<vmem>>, vector<1x1x8x8xf32>
    %5 = vector.shape_cast %4 : vector<1x1x8x8xf32> to vector<8x8xf32>
    %c0_7 = arith.constant 0 : index
    %c0_8 = arith.constant 0 : index
    %c0_9 = arith.constant 0 : index
    %c0_10 = arith.constant 0 : index
    %6 = vector.load %arg5[%c0_7, %c0_8, %c0_9, %c0_10] : memref<1x1x8x8xf32, #tpu.memory_space<vmem>>, vector<1x1x8x8xf32>
    %7 = vector.shape_cast %6 : vector<1x1x8x8xf32> to vector<8x8xf32>
    %cst_11 = arith.constant dense<0.000000e+00> : vector<8x8xf32>
    %8 = tpu.matmul %3, %5, %cst_11 {dimension_numbers = #tpu.dot_dimension_numbers<[1], [1], [0], [0], [0, 0, 1, 0], [], []>} : vector<8x8xf32>, vector<8x8xf32>, vector<8x8xf32> -> vector<8x8xf32>
    %cst_12 = arith.constant dense<0xFF800000> : vector<8xf32>
    %9 = vector.multi_reduction <maximumf>, %8, %cst_12 [1] : vector<8x8xf32> to vector<8xf32>
    %10 = vector.shape_cast %9 : vector<8xf32> to vector<8x1xf32>
    %11 = vector.broadcast %10 : vector<8x1xf32> to vector<8x8xf32>
    %12 = arith.subf %8, %11 : vector<8x8xf32>
    %13 = math.exp %12 : vector<8x8xf32>
    %cst_13 = arith.constant dense<0.000000e+00> : vector<8xf32>
    %14 = vector.multi_reduction <add>, %13, %cst_13 [1] : vector<8x8xf32> to vector<8xf32>
    %15 = vector.shape_cast %14 : vector<8xf32> to vector<8x1xf32>
    %16 = vector.broadcast %15 : vector<8x1xf32> to vector<8x8xf32>
    %17 = arith.divf %13, %16 : vector<8x8xf32>
    %c0_14 = arith.constant 0 : index
    %c0_15 = arith.constant 0 : index
    %c0_16 = arith.constant 0 : index
    %c0_17 = arith.constant 0 : index
    %18 = vector.load %arg7[%c0_14, %c0_15, %c0_16, %c0_17] : memref<1x1x8x8xf32, #tpu.memory_space<vmem>>, vector<1x1x8x8xf32>
    %19 = vector.shape_cast %18 : vector<1x1x8x8xf32> to vector<8x8xf32>
    %20 = vector.shape_cast %17 : vector<8x8xf32> to vector<1x1x8x8xf32>
    tpu.vector_store %arg7[%c0_14, %c0_15, %c0_16, %c0_17], %20 {strides = array<i32>} : memref<1x1x8x8xf32, #tpu.memory_space<vmem>>, vector<1x1x8x8xf32>,
    %cst_18 = arith.constant dense<0.000000e+00> : vector<8x8xf32>
    %21 = tpu.matmul %17, %7, %cst_18 {dimension_numbers = #tpu.dot_dimension_numbers<[1], [0], [0], [1], [0, 0, 1, 1], [], []>} : vector<8x8xf32>, vector<8x8xf32>, vector<8x8xf32> -> vector<8x8xf32>
    %c0_19 = arith.constant 0 : index
    %c0_20 = arith.constant 0 : index
    %c0_21 = arith.constant 0 : index
    %c0_22 = arith.constant 0 : index
    %22 = vector.load %arg6[%c0_19, %c0_20, %c0_21, %c0_22] : memref<1x1x8x8xf32, #tpu.memory_space<vmem>>, vector<1x1x8x8xf32>
    %23 = vector.shape_cast %22 : vector<1x1x8x8xf32> to vector<8x8xf32>
    %24 = vector.shape_cast %21 : vector<8x8xf32> to vector<1x1x8x8xf32>
    tpu.vector_store %arg6[%c0_19, %c0_20, %c0_21, %c0_22], %24 {strides = array<i32>} : memref<1x1x8x8xf32, #tpu.memory_space<vmem>>, vector<1x1x8x8xf32>,
    return
  }
  func.func @transform_0(%arg0: i32, %arg1: i32, %arg2: i32) -> (i32, i32, i32, i32) {
    %c0_i32 = arith.constant 0 : i32
    %c0_i32_0 = arith.constant 0 : i32
    return %arg0, %arg1, %arg2, %c0_i32 : i32, i32, i32, i32
  }
  func.func @transform_1(%arg0: i32, %arg1: i32, %arg2: i32) -> (i32, i32, i32, i32) {
    %c0_i32 = arith.constant 0 : i32
    %c0_i32_0 = arith.constant 0 : i32
    %c0_i32_1 = arith.constant 0 : i32
    return %arg0, %arg1, %c0_i32, %c0_i32_0 : i32, i32, i32, i32
  }
  func.func @transform_2(%arg0: i32, %arg1: i32, %arg2: i32) -> (i32, i32, i32, i32) {
    %c0_i32 = arith.constant 0 : i32
    %c0_i32_0 = arith.constant 0 : i32
    %c0_i32_1 = arith.constant 0 : i32
    return %arg0, %arg1, %c0_i32, %c0_i32_0 : i32, i32, i32, i32
  }
  func.func @transform_3(%arg0: i32, %arg1: i32, %arg2: i32) -> (i32, i32, i32, i32) {
    %c0_i32 = arith.constant 0 : i32
    %c0_i32_0 = arith.constant 0 : i32
    return %arg0, %arg1, %arg2, %c0_i32 : i32, i32, i32, i32
  }
  func.func @transform_4(%arg0: i32, %arg1: i32, %arg2: i32) -> (i32, i32, i32, i32) {
    %c0_i32 = arith.constant 0 : i32
    %c0_i32_0 = arith.constant 0 : i32
    return %arg0, %arg1, %arg2, %c0_i32 : i32, i32, i32, i32
  }
}

</mosaic_0001>

<llo_original>
// kernel: decoder_layer.9
$region0: #{decoder_layer.9}
  #allocation0 [shape = 'u32[]', space=smem, size = 0x4, offset = 0x4, fixed_abs, tag = 'smem constant byte address 0x4 - core index']
  #allocation1 [shape = 'u32[144,128]{1,0:T(1,128)}', space=vmem, size = 0x12000, scoped, tag = 'internal scratch']
  %s0 = inlined_call_operand.vmem [shape: f32[2,4,8,8], index: 0, kind: input, shape index: {}]
  %s1 = inlined_call_operand.vmem [shape: f32[2,4,8,8], index: 1, kind: input, shape index: {}]
  %s2 = inlined_call_operand.vmem [shape: f32[2,4,8,8], index: 2, kind: input, shape index: {}]
  %s3 = inlined_call_operand.vmem [shape: f32[2,4,8,8], index: 3, kind: output, shape index: {0}]
  %s4 = inlined_call_operand.hbm [shape: f32[2,4,8,8], index: 4, kind: output, shape index: {1}]
  %5 = xla_tuple %s3, %s4
  %s6 = sld [smem:[#allocation0]]
  $region53: #{decoder_layer.9} parent=0
    _
  %s8 = ssub.s32 1, %s6
  %s9 = scalar_select 0, %s8, %s6
  $region1: #{decoder_layer.9} parent=0
    #allocation2 [shape = 'u8[8192]{0}', space=vmem, size = 0x2000, scoped, tag = 'output window, operand 1']
    #allocation3 [shape = 's32[2]{0}', space=sflag, size = 0x8, scoped, tag = 'scoped memory for decoder_layer.9']
    %10 = vsyncpa [#allocation3], 0
    %s11 = scalar_lea.sflag [#allocation3], 1
    %12 = vsyncpa %s11, 0
    loop: start=0, step=1, limit=10
    $region2: #{decoder_layer.9} parent=1 // loop_pre_header
      _
    $region3: #{decoder_layer.9} parent=1 // loop_header
      %s14 = sphi 0, %s18
      %p15 = scmp.ge.s32.totalorder %s14, 10
      %s21 = sphi 0, %s40
      %s22 = sphi 0, %s36
      %s23 = sphi 0, %s32
      %s24 = sphi 0, %s21
      %s25 = sphi 0, %s22
      %s26 = sphi 0, %s23
      %s27 = sphi 0, %s24
      %s28 = sphi 0, %s25
      %s29 = sphi 0, %s26
      %s47 = sphi 0, %s49
      %s50 = sphi 0, %s47
      %s51 = sphi 0, %s50
      %s67 = sphi 0, %s51
      %s75 = sphi 0, %s77
      %s78 = sphi 0, %s75
      %s79 = sphi 0, %s78
      %s95 = sphi 0, %s79
      %s103 = sphi 0, %s105
      %s106 = sphi 0, %s103
      %s107 = sphi 0, %s106
      %s123 = sphi 0, %s107
      %s133 = sphi 0, %s135
      %s136 = sphi 0, %s133
      %s137 = sphi 0, %s136
      %s153 = sphi 0, %s137
      %s163 = sphi 0, %s165
      %s166 = sphi 0, %s163
      %s167 = sphi 0, %s166
      %s183 = sphi 0, %s167
    $region4: #{decoder_layer.9} parent=1 // loop_header_branch
      %17 = sbr.rel (%p15) target = $region8
    $region5: #{decoder_layer.9} parent=1 // loop_body
      %s19 = ssub.s32 %s14, 1
      %s20 = ssub.s32 %s14, 2
      %s30 = sadd.s32 1, %s23
      %p31 = scmp.ge.s32.totalorder %s30, 1
      %s32 = scalar_select %p31, 0, %s30
      %s33 = sadd.s32 1, %s22
      %s34 = scalar_select %p31, %s33, %s22
      %p35 = scmp.ge.s32.totalorder %s34, 4
      %s36 = scalar_select %p35, 0, %s34
      %s37 = sadd.s32 1, %s21
      %s38 = scalar_select %p35, %s37, %s21
      %p39 = scmp.ge.s32.totalorder %s38, 2
      %s40 = scalar_select %p39, 0, %s38
      %s41 = ssub.s32 %s21, %s40
      %s42 = ssub.s32 %s22, %s36
      %s43 = sor.u32 %s41, %s42
      %s44 = ssub.s32 %s23, %s32
      %s45 = sor.u32 %s43, %s44
      %p46 = scmp.eq.s32.totalorder %s45, 0
      %s48 = sadd.s32 %s47, 1
      %s49 = scalar_select %p46, %s47, %s48
      %p52 = pneg %p46
      %p53 = scmp.eq.s32.totalorder %s14, 7
      %p54 = por %p52, %p53
      %p55 = scmp.ne.s32.totalorder %s47, %s50
      %p56 = scmp.eq.s32.totalorder %s14, 0
      %p57 = por %p55, %p56
      %p58 = scmp.ne.s32.totalorder %s47, %s50
      %p59 = scmp.eq.s32.totalorder %s19, 7
      %p60 = por %p58, %p59
      %p61 = scmp.ne.s32.totalorder %s50, %s51
      %p62 = scmp.eq.s32.totalorder %s19, 0
      %p63 = por %p61, %p62
      %p64 = scmp.ne.s32.totalorder %s50, %s51
      %p65 = scmp.eq.s32.totalorder %s20, 7
      %p66 = por %p64, %p65
      %p68 = scmp.ne.s32.totalorder %s51, %s67
      %p69 = scmp.eq.s32.totalorder %s20, 0
      %p70 = por %p68, %p69
      %s71 = ssub.s32 %s21, %s40
      %s72 = ssub.s32 %s22, %s36
      %s73 = sor.u32 %s71, %s72
      %p74 = scmp.eq.s32.totalorder %s73, 0
      %s76 = sadd.s32 %s75, 1
      %s77 = scalar_select %p74, %s75, %s76
      %p80 = pneg %p74
      %p81 = scmp.eq.s32.totalorder %s14, 7
      %p82 = por %p80, %p81
      %p83 = scmp.ne.s32.totalorder %s75, %s78
      %p84 = scmp.eq.s32.totalorder %s14, 0
      %p85 = por %p83, %p84
      %p86 = scmp.ne.s32.totalorder %s75, %s78
      %p87 = scmp.eq.s32.totalorder %s19, 7
      %p88 = por %p86, %p87
      %p89 = scmp.ne.s32.totalorder %s78, %s79
      %p90 = scmp.eq.s32.totalorder %s19, 0
      %p91 = por %p89, %p90
      %p92 = scmp.ne.s32.totalorder %s78, %s79
      %p93 = scmp.eq.s32.totalorder %s20, 7
      %p94 = por %p92, %p93
      %p96 = scmp.ne.s32.totalorder %s79, %s95
      %p97 = scmp.eq.s32.totalorder %s20, 0
      %p98 = por %p96, %p97
      %s99 = ssub.s32 %s21, %s40
      %s100 = ssub.s32 %s22, %s36
      %s101 = sor.u32 %s99, %s100
      %p102 = scmp.eq.s32.totalorder %s101, 0
      %s104 = sadd.s32 %s103, 1
      %s105 = scalar_select %p102, %s103, %s104
      %p108 = pneg %p102
      %p109 = scmp.eq.s32.totalorder %s14, 7
      %p110 = por %p108, %p109
      %p111 = scmp.ne.s32.totalorder %s103, %s106
      %p112 = scmp.eq.s32.totalorder %s14, 0
      %p113 = por %p111, %p112
      %p114 = scmp.ne.s32.totalorder %s103, %s106
      %p115 = scmp.eq.s32.totalorder %s19, 7
      %p116 = por %p114, %p115
      %p117 = scmp.ne.s32.totalorder %s106, %s107
      %p118 = scmp.eq.s32.totalorder %s19, 0
      %p119 = por %p117, %p118
      %p120 = scmp.ne.s32.totalorder %s106, %s107
      %p121 = scmp.eq.s32.totalorder %s20, 7
      %p122 = por %p120, %p121
      %p124 = scmp.ne.s32.totalorder %s107, %s123
      %p125 = scmp.eq.s32.totalorder %s20, 0
      %p126 = por %p124, %p125
      %s127 = ssub.s32 %s21, %s40
      %s128 = ssub.s32 %s22, %s36
      %s129 = sor.u32 %s127, %s128
      %s130 = ssub.s32 %s23, %s32
      %s131 = sor.u32 %s129, %s130
      %p132 = scmp.eq.s32.totalorder %s131, 0
      %s134 = sadd.s32 %s133, 1
      %s135 = scalar_select %p132, %s133, %s134
      %p138 = pneg %p132
      %p139 = scmp.eq.s32.totalorder %s14, 7
      %p140 = por %p138, %p139
      %p141 = scmp.ne.s32.totalorder %s133, %s136
      %p142 = scmp.eq.s32.totalorder %s14, 0
      %p143 = por %p141, %p142
      %p144 = scmp.ne.s32.totalorder %s133, %s136
      %p145 = scmp.eq.s32.totalorder %s19, 7
      %p146 = por %p144, %p145
      %p147 = scmp.ne.s32.totalorder %s136, %s137
      %p148 = scmp.eq.s32.totalorder %s19, 0
      %p149 = por %p147, %p148
      %p150 = scmp.ne.s32.totalorder %s136, %s137
      %p151 = scmp.eq.s32.totalorder %s20, 7
      %p152 = por %p150, %p151
      %p154 = scmp.ne.s32.totalorder %s137, %s153
      %p155 = scmp.eq.s32.totalorder %s20, 0
      %p156 = por %p154, %p155
      %s157 = ssub.s32 %s21, %s40
      %s158 = ssub.s32 %s22, %s36
      %s159 = sor.u32 %s157, %s158
      %s160 = ssub.s32 %s23, %s32
      %s161 = sor.u32 %s159, %s160
      %p162 = scmp.eq.s32.totalorder %s161, 0
      %s164 = sadd.s32 %s163, 1
      %s165 = scalar_select %p162, %s163, %s164
      %p168 = pneg %p162
      %p169 = scmp.eq.s32.totalorder %s14, 7
      %p170 = por %p168, %p169
      %p171 = scmp.ne.s32.totalorder %s163, %s166
      %p172 = scmp.eq.s32.totalorder %s14, 0
      %p173 = por %p171, %p172
      %p174 = scmp.ne.s32.totalorder %s163, %s166
      %p175 = scmp.eq.s32.totalorder %s19, 7
      %p176 = por %p174, %p175
      %p177 = scmp.ne.s32.totalorder %s166, %s167
      %p178 = scmp.eq.s32.totalorder %s19, 0
      %p179 = por %p177, %p178
      %p180 = scmp.ne.s32.totalorder %s166, %s167
      %p181 = scmp.eq.s32.totalorder %s20, 7
      %p182 = por %p180, %p181
      %p184 = scmp.ne.s32.totalorder %s167, %s183
      %p185 = scmp.eq.s32.totalorder %s20, 0
      %p186 = por %p184, %p185
      %p187 = scmp.le.s32.totalorder 1, %s14
      %p188 = scmp.lt.s32.totalorder %s14, 9
      %p189 = pnand %p187, %p188
      %p190 = pneg %p189
      // Predicated region
      $region9: #{decoder_layer.9} parent=5 // pred_check
        _
      $region10: #{decoder_layer.9} parent=5 // pred_check_branch
        %192 = sbr.rel (%p189) target = $region12
      $region11: #{decoder_layer.9} parent=5 // pred_region
        %s193 = ssub.s32 %s14, 1
      $region12: #{decoder_layer.9} parent=5 // pred_fallthru
        _
      %p194 = scmp.lt.s32.totalorder %s14, 8
      // Predicated region
      $region13: #{decoder_layer.9} parent=5 // pred_check
        %p195 = pneg %p194
      $region14: #{decoder_layer.9} parent=5 // pred_check_branch
        %197 = sbr.rel (%p195) target = $region16
      $region15: #{decoder_layer.9} parent=5 // pred_region
        // Predicated region
        $region17: #{decoder_layer.9} parent=15 // pred_check
          %p198 = pneg %p57
        $region18: #{decoder_layer.9} parent=15 // pred_check_branch
          %200 = sbr.rel (%p198) target = $region20
        $region19: #{decoder_layer.9} parent=15 // pred_region
          %p201 = scmp.lt.s32.totalorder %s21, 1
          %s202 = scalar_select %p201, %s21, 1
          %p203 = scmp.lt.s32.totalorder %s22, 3
          %s204 = scalar_select %p203, %s22, 3
          %p205 = scmp.lt.s32.totalorder %s23, 0
          %s206 = scalar_select %p205, %s23, 0
          %s207 = sadd.s32 %s206, %s204
          %s208 = smul.addr %s202, 4
          %s209 = sadd.s32 %s207, %s208
          %s210 = smul.addr %s209, 8
          %s211 = scalar_lea.vmem %s0, %s210
        $region20: #{decoder_layer.9} parent=15 // pred_fallthru
          _
        // Predicated region
        $region21: #{decoder_layer.9} parent=15 // pred_check
          %p212 = pneg %p85
        $region22: #{decoder_layer.9} parent=15 // pred_check_branch
          %214 = sbr.rel (%p212) target = $region24
        $region23: #{decoder_layer.9} parent=15 // pred_region
          %p215 = scmp.lt.s32.totalorder %s21, 1
          %s216 = scalar_select %p215, %s21, 1
          %p217 = scmp.lt.s32.totalorder %s22, 3
          %s218 = scalar_select %p217, %s22, 3
          %s219 = smul.addr %s216, 4
          %s220 = sadd.s32 %s218, %s219
          %s221 = smul.addr %s220, 8
          %s222 = scalar_lea.vmem %s1, %s221
        $region24: #{decoder_layer.9} parent=15 // pred_fallthru
          _
        // Predicated region
        $region25: #{decoder_layer.9} parent=15 // pred_check
          %p223 = pneg %p113
        $region26: #{decoder_layer.9} parent=15 // pred_check_branch
          %225 = sbr.rel (%p223) target = $region28
        $region27: #{decoder_layer.9} parent=15 // pred_region
          %p226 = scmp.lt.s32.totalorder %s21, 1
          %s227 = scalar_select %p226, %s21, 1
          %p228 = scmp.lt.s32.totalorder %s22, 3
          %s229 = scalar_select %p228, %s22, 3
          %s230 = smul.addr %s227, 4
          %s231 = sadd.s32 %s229, %s230
          %s232 = smul.addr %s231, 8
          %s233 = scalar_lea.vmem %s2, %s232
        $region28: #{decoder_layer.9} parent=15 // pred_fallthru
          _
      $region16: #{decoder_layer.9} parent=5 // pred_fallthru
        _
      %p234 = scmp.le.s32.totalorder 1, %s14
      %p235 = scmp.lt.s32.totalorder %s14, 9
      %p236 = pnand %p234, %p235
      %p237 = pneg %p236
      // Predicated region
      $region29: #{decoder_layer.9} parent=5 // pred_check
        _
      $region30: #{decoder_layer.9} parent=5 // pred_check_branch
        %239 = sbr.rel (%p236) target = $region32
      $region31: #{decoder_layer.9} parent=5 // pred_region
        %s240 = ssub.s32 %s14, 1
        %p241 = scmp.lt.s32.totalorder %s24, 1
        %s242 = scalar_select %p241, %s24, 1
        %p243 = scmp.lt.s32.totalorder %s25, 3
        %s244 = scalar_select %p243, %s25, 3
        %p245 = scmp.lt.s32.totalorder %s26, 0
        %s246 = scalar_select %p245, %s26, 0
        %s247 = sadd.s32 %s246, %s244
        %s248 = smul.addr %s242, 4
        %s249 = sadd.s32 %s247, %s248
        %s250 = smul.addr %s249, 8
        %s251 = scalar_lea.vmem %s0, %s250
        %p252 = pneg %p63
        %p253 = pneg %p60
        %p254 = scmp.lt.s32.totalorder %s24, 1
        %s255 = scalar_select %p254, %s24, 1
        %p256 = scmp.lt.s32.totalorder %s25, 3
        %s257 = scalar_select %p256, %s25, 3
        %s258 = smul.addr %s255, 4
        %s259 = sadd.s32 %s257, %s258
        %s260 = smul.addr %s259, 8
        %s261 = scalar_lea.vmem %s1, %s260
        %p262 = pneg %p91
        %p263 = pneg %p88
        %p264 = scmp.lt.s32.totalorder %s24, 1
        %s265 = scalar_select %p264, %s24, 1
        %p266 = scmp.lt.s32.totalorder %s25, 3
        %s267 = scalar_select %p266, %s25, 3
        %s268 = smul.addr %s265, 4
        %s269 = sadd.s32 %s267, %s268
        %s270 = smul.addr %s269, 8
        %s271 = scalar_lea.vmem %s2, %s270
        %p272 = pneg %p119
        %p273 = pneg %p116
        %p274 = pneg %p149
        %p275 = pneg %p146
        %p276 = scmp.lt.s32.totalorder %s24, 1
        %s277 = scalar_select %p276, %s24, 1
        %p278 = scmp.lt.s32.totalorder %s25, 3
        %s279 = scalar_select %p278, %s25, 3
        %p280 = scmp.lt.s32.totalorder %s26, 0
        %s281 = scalar_select %p280, %s26, 0
        %s282 = sadd.s32 %s281, %s279
        %s283 = smul.addr %s277, 4
        %s284 = sadd.s32 %s282, %s283
        %s285 = smul.addr %s284, 8
        %s286 = scalar_lea.vmem %s3, %s285
        %p287 = pneg %p179
        %p288 = pneg %p176
        %s289 = sand.u32 %s166, 1
        %s290 = scalar_lea.sflag [#allocation3], %s289
        %s291 = sand.u32 %s166, 1
        %s292 = smul.addr %s291, 8
        %s293 = scalar_lea.vmem [#allocation2], %s292
        %p294 = scmp.lt.s32.totalorder %s24, 1
        %s295 = scalar_select %p294, %s24, 1
        %p296 = scmp.lt.s32.totalorder %s25, 3
        %s297 = scalar_select %p296, %s25, 3
        %p298 = scmp.lt.s32.totalorder %s26, 0
        %s299 = scalar_select %p298, %s26, 0
        %s300 = sadd.s32 %s299, %s297
        %s301 = smul.addr %s295, 4
        %s302 = sadd.s32 %s300, %s301
        %s303 = smul.addr %s302, 8
        %s304 = scalar_lea.vmem %s0, %s303
        %p305 = scmp.lt.s32.totalorder %s24, 1
        %s306 = scalar_select %p305, %s24, 1
        %p307 = scmp.lt.s32.totalorder %s25, 3
        %s308 = scalar_select %p307, %s25, 3
        %s309 = smul.addr %s306, 4
        %s310 = sadd.s32 %s308, %s309
        %s311 = smul.addr %s310, 8
        %s312 = scalar_lea.vmem %s1, %s311
        %p313 = scmp.lt.s32.totalorder %s24, 1
        %s314 = scalar_select %p313, %s24, 1
        %p315 = scmp.lt.s32.totalorder %s25, 3
        %s316 = scalar_select %p315, %s25, 3
        %s317 = smul.addr %s314, 4
        %s318 = sadd.s32 %s316, %s317
        %s319 = smul.addr %s318, 8
        %s320 = scalar_lea.vmem %s2, %s319
        %p321 = scmp.lt.s32.totalorder %s24, 1
        %s322 = scalar_select %p321, %s24, 1
        %p323 = scmp.lt.s32.totalorder %s25, 3
        %s324 = scalar_select %p323, %s25, 3
        %p325 = scmp.lt.s32.totalorder %s26, 0
        %s326 = scalar_select %p325, %s26, 0
        %s327 = sadd.s32 %s326, %s324
        %s328 = smul.addr %s322, 4
        %s329 = sadd.s32 %s327, %s328
        %s330 = smul.addr %s329, 8
        %s331 = scalar_lea.vmem %s3, %s330
        %v332 = vld [vmem:[%s304] sm:$0xff]
        %v333 = vmul.f32 %v332, 0.35355338
        %v334 = vld [vmem:[%s312] sm:$0xff]
        %v335 = vld [vmem:[%s320] sm:$0xff]
        %vm336 = vcmask 64512
        %v338 = vsel %vm336, %v333, 0
        %v341 = vsel %vm336, %v334, 0
        %343 = vmatprep.subr.mxu0 0.0
        %344 = vmatpush1.xpose.msra.mxu0 0.0
        %345 = vmatprep.subr.mxu0 0.0
        %346 = vmatpush1.xpose.msra.mxu0 0.0
        %347 = vmatprep.subr.mxu0 0.0
        %348 = vmatpush1.xpose.msra.mxu0 0.0
        %349 = vmatprep.subr.mxu0 0.0
        %350 = vmatpush1.xpose.msra.mxu0 0.0
        %351 = vmatprep.subr.mxu0 0.0
        %352 = vmatpush1.xpose.msra.mxu0 0.0
        %353 = vmatprep.subr.mxu0 0.0
        %354 = vmatpush1.xpose.msra.mxu0 0.0
        %355 = vmatprep.subr.mxu0 0.0
        %356 = vmatpush1.xpose.msra.mxu0 0.0
        %357 = vmatprep.subr.mxu0 0.0
        %358 = vmatpush1.xpose.msra.mxu0 0.0
        %359 = vmatprep.subr.mxu0 0.0
        %360 = vmatpush1.xpose.msra.mxu0 0.0
        %361 = vmatprep.subr.mxu0 0.0
        %362 = vmatpush1.xpose.msra.mxu0 0.0
        %363 = vmatprep.subr.mxu0 0.0
        %364 = vmatpush1.xpose.msra.mxu0 0.0
        %365 = vmatprep.subr.mxu0 0.0
        %366 = vmatpush1.xpose.msra.mxu0 0.0
        %367 = vmatprep.subr.mxu0 0.0
        %368 = vmatpush1.xpose.msra.mxu0 0.0
        %369 = vmatprep.subr.mxu0 0.0
        %370 = vmatpush1.xpose.msra.mxu0 0.0
        %371 = vmatprep.subr.mxu0 0.0
        %372 = vmatpush1.xpose.msra.mxu0 0.0
        %373 = vmatprep.subr.mxu0 0.0
        %374 = vmatpush1.xpose.msra.mxu0 %v341
        %375 = vmatprep.subr.mxu0 0.0
        %376 = vmatpush2.xpose.msra.mxu0 0.0
        %377 = vmatprep.subr.mxu0 0.0
        %378 = vmatpush2.xpose.msra.mxu0 0.0
        %379 = vmatprep.subr.mxu0 0.0
        %380 = vmatpush2.xpose.msra.mxu0 0.0
        %381 = vmatprep.subr.mxu0 0.0
        %382 = vmatpush2.xpose.msra.mxu0 0.0
        %383 = vmatprep.subr.mxu0 0.0
        %384 = vmatpush2.xpose.msra.mxu0 0.0
        %385 = vmatprep.subr.mxu0 0.0
        %386 = vmatpush2.xpose.msra.mxu0 0.0
        %387 = vmatprep.subr.mxu0 0.0
        %388 = vmatpush2.xpose.msra.mxu0 0.0
        %389 = vmatprep.subr.mxu0 0.0
        %390 = vmatpush2.xpose.msra.mxu0 0.0
        %391 = vmatprep.subr.mxu0 0.0
        %392 = vmatpush2.xpose.msra.mxu0 0.0
        %393 = vmatprep.subr.mxu0 0.0
        %394 = vmatpush2.xpose.msra.mxu0 0.0
        %395 = vmatprep.subr.mxu0 0.0
        %396 = vmatpush2.xpose.msra.mxu0 0.0
        %397 = vmatprep.subr.mxu0 0.0
        %398 = vmatpush2.xpose.msra.mxu0 0.0
        %399 = vmatprep.subr.mxu0 0.0
        %400 = vmatpush2.xpose.msra.mxu0 0.0
        %401 = vmatprep.subr.mxu0 0.0
        %402 = vmatpush2.xpose.msra.mxu0 0.0
        %403 = vmatprep.subr.mxu0 0.0
        %404 = vmatpush2.xpose.msra.mxu0 0.0
        %405 = vmatprep.subr.mxu0 0.0
        %406 = vmatpush2.xpose.msra.mxu0 0.0
        %407 = vmatprep.mubr.f32.mxu0 0.0
        %408 = vmatmul.mubr.f32.gmra.mxu0 %v338
        %v409 = vpop.f32.mrf.mxu0
        %v410 = vadd.f32 0.0, %v409
        %v411 = vpop.f32.mrf.mxu0
        %412 = vdwg.mxu0
        %s413 = smul.u32 %s26, 8
        %v414 = vlaneseq
        %v415 = vshrl.u32 %v414, 7
        %v416 = vstv %s413
        %v417 = vadd.s32 %v416, %v415
        %v418 = vlaneseq
        %v419 = vand.u32 %v418, 127
        %vm420 = vcmp.le.s32.totalorder %v419, %v417
        %v421 = vsel %vm420, %v410, -1e+30
        %v422 = vsel %vm336, %v421, -inf
        %423 = vmax.xlane.f32.xlu0 %v422
        %v424 = vpop.xlane.xlu0 %423
        %v425 = vsub.f32 %v421, %v424
        %v426 = vmul.f32 %v425, 1.442695
        %v427 = vpow.pop %v426
        %v428 = vsel %vm336, %v427, 0.0
        %429 = vadd.xlane.f32.xlu0 %v428
        %v430 = vpop.xlane.xlu0 %429
        %v431 = vrcp.pop %v430
        %v432 = vmul.f32 %v427, %v431
        %433 = vst.msk [vmem:[%s293] sm:$0xff] %vm336, %v432
        %v435 = vsel %vm336, %v432, 0
        %437 = vmatprep.subr.mxu0 0.0
        %438 = vmatpush1.msra.mxu0 0.0
        %439 = vmatprep.subr.mxu0 0.0
        %440 = vmatpush1.msra.mxu0 0.0
        %441 = vmatprep.subr.mxu0 0.0
        %442 = vmatpush1.msra.mxu0 0.0
        %443 = vmatprep.subr.mxu0 0.0
        %444 = vmatpush1.msra.mxu0 0.0
        %445 = vmatprep.subr.mxu0 0.0
        %446 = vmatpush1.msra.mxu0 0.0
        %447 = vmatprep.subr.mxu0 0.0
        %448 = vmatpush1.msra.mxu0 0.0
        %449 = vmatprep.subr.mxu0 0.0
        %450 = vmatpush1.msra.mxu0 0.0
        %451 = vmatprep.subr.mxu0 0.0
        %452 = vmatpush1.msra.mxu0 0.0
        %453 = vmatprep.subr.mxu0 0.0
        %454 = vmatpush1.msra.mxu0 0.0
        %455 = vmatprep.subr.mxu0 0.0
        %456 = vmatpush1.msra.mxu0 0.0
        %457 = vmatprep.subr.mxu0 0.0
        %458 = vmatpush1.msra.mxu0 0.0
        %459 = vmatprep.subr.mxu0 0.0
        %460 = vmatpush1.msra.mxu0 0.0
        %461 = vmatprep.subr.mxu0 0.0
        %462 = vmatpush1.msra.mxu0 0.0
        %463 = vmatprep.subr.mxu0 0.0
        %464 = vmatpush1.msra.mxu0 0.0
        %465 = vmatprep.subr.mxu0 0.0
        %466 = vmatpush1.msra.mxu0 0.0
        %467 = vmatprep.subr.mxu0 0.0
        %468 = vmatpush1.msra.mxu0 %v335
        %469 = vmatprep.subr.mxu0 0.0
        %470 = vmatpush2.msra.mxu0 0.0
        %471 = vmatprep.subr.mxu0 0.0
        %472 = vmatpush2.msra.mxu0 0.0
        %473 = vmatprep.subr.mxu0 0.0
        %474 = vmatpush2.msra.mxu0 0.0
        %475 = vmatprep.subr.mxu0 0.0
        %476 = vmatpush2.msra.mxu0 0.0
        %477 = vmatprep.subr.mxu0 0.0
        %478 = vmatpush2.msra.mxu0 0.0
        %479 = vmatprep.subr.mxu0 0.0
        %480 = vmatpush2.msra.mxu0 0.0
        %481 = vmatprep.subr.mxu0 0.0
        %482 = vmatpush2.msra.mxu0 0.0
        %483 = vmatprep.subr.mxu0 0.0
        %484 = vmatpush2.msra.mxu0 0.0
        %485 = vmatprep.subr.mxu0 0.0
        %486 = vmatpush2.msra.mxu0 0.0
        %487 = vmatprep.subr.mxu0 0.0
        %488 = vmatpush2.msra.mxu0 0.0
        %489 = vmatprep.subr.mxu0 0.0
        %490 = vmatpush2.msra.mxu0 0.0
        %491 = vmatprep.subr.mxu0 0.0
        %492 = vmatpush2.msra.mxu0 0.0
        %493 = vmatprep.subr.mxu0 0.0
        %494 = vmatpush2.msra.mxu0 0.0
        %495 = vmatprep.subr.mxu0 0.0
        %496 = vmatpush2.msra.mxu0 0.0
        %497 = vmatprep.subr.mxu0 0.0
        %498 = vmatpush2.msra.mxu0 0.0
        %499 = vmatprep.subr.mxu0 0.0
        %500 = vmatpush2.msra.mxu0 0.0
        %501 = vmatprep.mubr.f32.mxu0 0.0
        %502 = vmatmul.mubr.f32.gmra.mxu0 %v435
        %v503 = vpop.f32.mrf.mxu0
        %v504 = vadd.f32 0.0, %v503
        %v505 = vpop.f32.mrf.mxu0
        %506 = vdwg.mxu0
        %507 = vst.msk [vmem:[%s331] sm:$0xff] %vm336, %v504
        %p508 = scmp.lt.s32.totalorder %s24, 1
        %s509 = scalar_select %p508, %s24, 1
        %p510 = scmp.lt.s32.totalorder %s25, 3
        %s511 = scalar_select %p510, %s25, 3
        %p512 = scmp.lt.s32.totalorder %s26, 0
        %s513 = scalar_select %p512, %s26, 0
        %s514 = sadd.s32 %s513, %s511
        %s515 = smul.addr %s509, 4
        %s516 = sadd.s32 %s514, %s515
        %s517 = smul.addr %s516, 8
        %s518 = scalar_lea.vmem %s3, %s517
        %s519 = sand.u32 %s166, 1
        %s520 = scalar_lea.sflag [#allocation3], %s519
        %s521 = sand.u32 %s166, 1
        %s522 = smul.addr %s521, 8
        %s523 = scalar_lea.vmem [#allocation2], %s522
        // Predicated region
        $region33: #{decoder_layer.9} parent=31 // pred_check
          %p524 = pneg %p146
        $region34: #{decoder_layer.9} parent=31 // pred_check_branch
          %526 = sbr.rel (%p524) target = $region36
        $region35: #{decoder_layer.9} parent=31 // pred_region
          _
        $region36: #{decoder_layer.9} parent=31 // pred_fallthru
          _
        // Predicated region
        $region37: #{decoder_layer.9} parent=31 // pred_check
          %p527 = pneg %p176
        $region38: #{decoder_layer.9} parent=31 // pred_check_branch
          %529 = sbr.rel (%p527) target = $region40
        $region39: #{decoder_layer.9} parent=31 // pred_region
          %s531 = ssub.s32 128, 128
          %532 = vsyncadd %s520, %s531
          %s533 = sadd.s32 %s26, %s25
          %s534 = smul.addr %s24, 4
          %s535 = sadd.s32 %s533, %s534
          %s536 = smul.addr %s535, 128
          %s537 = scalar_lea.hbm %s4, %s536
          %s539 = sshll.u32 %s523, 4
          %s540 = int_to_ptr.vmem [resolvable:$true] %s539
          %542 = dma.vmem_to_hbm [thread:$0]  %s540, 128, %s537, %s520
        $region40: #{decoder_layer.9} parent=31 // pred_fallthru
          _
      $region32: #{decoder_layer.9} parent=5 // pred_fallthru
        _
      %p543 = scmp.le.s32.totalorder 2, %s14
      // Predicated region
      $region41: #{decoder_layer.9} parent=5 // pred_check
        %p544 = pneg %p543
      $region42: #{decoder_layer.9} parent=5 // pred_check_branch
        %546 = sbr.rel (%p544) target = $region44
      $region43: #{decoder_layer.9} parent=5 // pred_region
        %s547 = ssub.s32 %s14, 2
        // Predicated region
        $region45: #{decoder_layer.9} parent=43 // pred_check
          %p548 = pneg %p152
        $region46: #{decoder_layer.9} parent=43 // pred_check_branch
          %550 = sbr.rel (%p548) target = $region48
        $region47: #{decoder_layer.9} parent=43 // pred_region
          %p551 = scmp.lt.s32.totalorder %s27, 1
          %s552 = scalar_select %p551, %s27, 1
          %p553 = scmp.lt.s32.totalorder %s28, 3
          %s554 = scalar_select %p553, %s28, 3
          %p555 = scmp.lt.s32.totalorder %s29, 0
          %s556 = scalar_select %p555, %s29, 0
          %s557 = sadd.s32 %s556, %s554
          %s558 = smul.addr %s552, 4
          %s559 = sadd.s32 %s557, %s558
          %s560 = smul.addr %s559, 8
          %s561 = scalar_lea.vmem %s3, %s560
        $region48: #{decoder_layer.9} parent=43 // pred_fallthru
          _
        // Predicated region
        $region49: #{decoder_layer.9} parent=43 // pred_check
          %p562 = pneg %p182
        $region50: #{decoder_layer.9} parent=43 // pred_check_branch
          %564 = sbr.rel (%p562) target = $region52
        $region51: #{decoder_layer.9} parent=43 // pred_region
          %s565 = sand.u32 %s167, 1
          %s566 = scalar_lea.sflag [#allocation3], %s565
          %s567 = sand.u32 %s167, 1
          %s568 = smul.addr %s567, 8
          %s569 = scalar_lea.vmem [#allocation2], %s568
          %570 = dma.done %s566, 128
        $region52: #{decoder_layer.9} parent=43 // pred_fallthru
          _
      $region44: #{decoder_layer.9} parent=5 // pred_fallthru
        _
    $region6: #{decoder_layer.9} parent=1 // loop_footer
      %s18 = sadd.s32 1, %s14
    $region7: #{decoder_layer.9} parent=1 // loop_footer_branch
      %13 = sbr.rel target = $region3
    $region8: #{decoder_layer.9} parent=1 // loop_exit
      _
    %571 = vsyncpa [#allocation3], 1
    %s572 = scalar_lea.sflag [#allocation3], 1
    %573 = vsyncpa %s572, 1

// kernel: decoder_layer.8
$region0: #{decoder_layer.8}
  #allocation0 [shape = 'u32[]', space=smem, size = 0x4, offset = 0x4, fixed_abs, tag = 'smem constant byte address 0x4 - core index']
  #allocation1 [shape = 'u32[144,128]{1,0:T(1,128)}', space=vmem, size = 0x12000, scoped, tag = 'internal scratch']
  %s0 = inlined_call_operand.vmem [shape: f32[16,32], index: 0, kind: input, shape index: {}]
  %s1 = inlined_call_operand.hbm [shape: f32[32,96], index: 1, kind: input, shape index: {}]
  %s2 = inlined_call_operand.vmem [shape: f32[1,96], index: 2, kind: input, shape index: {}]
  %s3 = inlined_call_operand.vmem [shape: f32[16,96], index: 3, kind: output, shape index: {}]
  %s4 = sld [smem:[#allocation0]]
  $region34: #{decoder_layer.8} parent=0
    _
  %s6 = ssub.s32 1, %s4
  %s7 = scalar_select 0, %s6, %s4
  $region1: #{decoder_layer.8} parent=0
    #allocation2 [shape = 'u8[16384]{0}', space=vmem, size = 0x4000, scoped, tag = 'input window, operand 1, single buffered']
    #allocation3 [shape = 's32[1]{0}', space=sflag, size = 0x4, scoped, tag = 'scoped memory for decoder_layer.8']
    %8 = vsyncpa [#allocation3], 0
    // Predicated region
    $region2: #{decoder_layer.8} parent=1 // pred_check
      _
    $region3: #{decoder_layer.8} parent=1 // pred_check_branch
      %10 = sbr.rel (0) target = $region5
    $region4: #{decoder_layer.8} parent=1 // pred_region
      _
    $region5: #{decoder_layer.8} parent=1 // pred_fallthru
      _
    // Predicated region
    $region6: #{decoder_layer.8} parent=1 // pred_check
      _
    $region7: #{decoder_layer.8} parent=1 // pred_check_branch
      %12 = sbr.rel (0) target = $region9
    $region8: #{decoder_layer.8} parent=1 // pred_region
      %s14 = ssub.s32 512, 512
      %15 = vsyncadd [#allocation3], %s14
      %s16 = sshll.u32 [#allocation2], 4
      %s17 = int_to_ptr.vmem [resolvable:$true] %s16
      %22 = dma.hbm_to_vmem [thread:$0]  %s1, 512, %s17, [#allocation3], 128, 128, 8
    $region9: #{decoder_layer.8} parent=1 // pred_fallthru
      _
    // Predicated region
    $region10: #{decoder_layer.8} parent=1 // pred_check
      _
    $region11: #{decoder_layer.8} parent=1 // pred_check_branch
      %24 = sbr.rel (0) target = $region13
    $region12: #{decoder_layer.8} parent=1 // pred_region
      _
    $region13: #{decoder_layer.8} parent=1 // pred_fallthru
      _
    // Predicated region
    $region14: #{decoder_layer.8} parent=1 // pred_check
      _
    $region15: #{decoder_layer.8} parent=1 // pred_check_branch
      %26 = sbr.rel (0) target = $region17
    $region16: #{decoder_layer.8} parent=1 // pred_region
      %27 = dma.done [#allocation3], 512
    $region17: #{decoder_layer.8} parent=1 // pred_fallthru
      _
    %p28 = scmp.eq.s32.totalorder 0, 0
    // Predicated region
    $region18: #{decoder_layer.8} parent=1 // pred_check
      %p29 = pneg %p28
    $region19: #{decoder_layer.8} parent=1 // pred_check_branch
      %31 = sbr.rel (%p29) target = $region21
    $region20: #{decoder_layer.8} parent=1 // pred_region
      %vm32 = vcmask 785408
      %33 = vst.msk [vmem:[%s3] sm:$0xff] %vm32, 0.0
      %34 = vst.msk [vmem:[%s3 + $0x8] sm:$0xff] %vm32, 0.0
    $region21: #{decoder_layer.8} parent=1 // pred_fallthru
      _
    %v35 = vld [vmem:[%s3] sm:$0xff]
    %v36 = vld [vmem:[%s3 + $0x8] sm:$0xff]
    %v37 = vld [vmem:[%s0] sm:$0xff]
    %v38 = vld [vmem:[%s0 + $0x8] sm:$0xff]
    %v39 = vld [vmem:[#allocation2] sm:$0xff]
    %v40 = vld [vmem:[#allocation2 + $0x8] sm:$0xff]
    %v41 = vld [vmem:[#allocation2 + $0x10] sm:$0xff]
    %v42 = vld [vmem:[#allocation2 + $0x18] sm:$0xff]
    %vm43 = vcmask 261120
    %v45 = vsel %vm43, %v37, 0
    %v48 = vsel %vm43, %v38, 0
    %50 = vmatprep.subr.mxu0 0.0
    %51 = vmatpush1.msra.mxu0 0.0
    %52 = vmatprep.subr.mxu0 0.0
    %53 = vmatpush1.msra.mxu0 0.0
    %54 = vmatprep.subr.mxu0 0.0
    %55 = vmatpush1.msra.mxu0 0.0
    %56 = vmatprep.subr.mxu0 0.0
    %57 = vmatpush1.msra.mxu0 0.0
    %58 = vmatprep.subr.mxu0 0.0
    %59 = vmatpush1.msra.mxu0 0.0
    %60 = vmatprep.subr.mxu0 0.0
    %61 = vmatpush1.msra.mxu0 0.0
    %62 = vmatprep.subr.mxu0 0.0
    %63 = vmatpush1.msra.mxu0 0.0
    %64 = vmatprep.subr.mxu0 0.0
    %65 = vmatpush1.msra.mxu0 0.0
    %66 = vmatprep.subr.mxu0 0.0
    %67 = vmatpush1.msra.mxu0 0.0
    %68 = vmatprep.subr.mxu0 0.0
    %69 = vmatpush1.msra.mxu0 0.0
    %70 = vmatprep.subr.mxu0 0.0
    %71 = vmatpush1.msra.mxu0 0.0
    %72 = vmatprep.subr.mxu0 0.0
    %73 = vmatpush1.msra.mxu0 0.0
    %74 = vmatprep.subr.mxu0 0.0
    %75 = vmatpush1.msra.mxu0 %v42
    %76 = vmatprep.subr.mxu0 0.0
    %77 = vmatpush1.msra.mxu0 %v41
    %78 = vmatprep.subr.mxu0 0.0
    %79 = vmatpush1.msra.mxu0 %v40
    %80 = vmatprep.subr.mxu0 0.0
    %81 = vmatpush1.msra.mxu0 %v39
    %82 = vmatprep.subr.mxu0 0.0
    %83 = vmatpush2.msra.mxu0 0.0
    %84 = vmatprep.subr.mxu0 0.0
    %85 = vmatpush2.msra.mxu0 0.0
    %86 = vmatprep.subr.mxu0 0.0
    %87 = vmatpush2.msra.mxu0 0.0
    %88 = vmatprep.subr.mxu0 0.0
    %89 = vmatpush2.msra.mxu0 0.0
    %90 = vmatprep.subr.mxu0 0.0
    %91 = vmatpush2.msra.mxu0 0.0
    %92 = vmatprep.subr.mxu0 0.0
    %93 = vmatpush2.msra.mxu0 0.0
    %94 = vmatprep.subr.mxu0 0.0
    %95 = vmatpush2.msra.mxu0 0.0
    %96 = vmatprep.subr.mxu0 0.0
    %97 = vmatpush2.msra.mxu0 0.0
    %98 = vmatprep.subr.mxu0 0.0
    %99 = vmatpush2.msra.mxu0 0.0
    %100 = vmatprep.subr.mxu0 0.0
    %101 = vmatpush2.msra.mxu0 0.0
    %102 = vmatprep.subr.mxu0 0.0
    %103 = vmatpush2.msra.mxu0 0.0
    %104 = vmatprep.subr.mxu0 0.0
    %105 = vmatpush2.msra.mxu0 0.0
    %106 = vmatprep.subr.mxu0 0.0
    %107 = vmatpush2.msra.mxu0 0.0
    %108 = vmatprep.subr.mxu0 0.0
    %109 = vmatpush2.msra.mxu0 0.0
    %110 = vmatprep.subr.mxu0 0.0
    %111 = vmatpush2.msra.mxu0 0.0
    %112 = vmatprep.subr.mxu0 0.0
    %113 = vmatpush2.msra.mxu0 0.0
    %114 = vmatprep.mubr.f32.mxu0 0.0
    %115 = vmatmul.mubr.f32.gmra.mxu0 %v45
    %v116 = vpop.f32.mrf.mxu0
    %v117 = vadd.f32 0.0, %v116
    %v118 = vpop.f32.mrf.mxu0
    %119 = vmatprep.mubr.f32.mxu0 0.0
    %120 = vmatmul.mubr.f32.gmra.mxu0 %v48
    %v121 = vpop.f32.mrf.mxu0
    %v122 = vadd.f32 0.0, %v121
    %v123 = vpop.f32.mrf.mxu0
    %124 = vdwg.mxu0
    %v125 = vadd.f32 %v35, %v117
    %v126 = vadd.f32 %v36, %v122
    %vm127 = vcmask 785408
    %128 = vst.msk [vmem:[%s3] sm:$0xff] %vm127, %v125
    %129 = vst.msk [vmem:[%s3 + $0x8] sm:$0xff] %vm127, %v126
    // Predicated region
    $region22: #{decoder_layer.8} parent=1 // pred_check
      %p130 = pneg %p28
    $region23: #{decoder_layer.8} parent=1 // pred_check_branch
      %132 = sbr.rel (%p130) target = $region25
    $region24: #{decoder_layer.8} parent=1 // pred_region
      %v133 = vld [vmem:[%s3] sm:$0xff]
      %v134 = vld [vmem:[%s3 + $0x8] sm:$0xff]
      %v135 = vld [vmem:[%s2] sm:$0x1]
      %v137 = vlaneseq
      %v138 = vshrl.u32 %v137, 7
      %v139 = vsub.s32 0, %v138
      %v140 = vrot.slane %v135, %v139
      %v142 = vadd.f32 %v133, %v140
      %v143 = vadd.f32 %v134, %v140
      %144 = vst.msk [vmem:[%s3] sm:$0xff] %vm127, %v142
      %145 = vst.msk [vmem:[%s3 + $0x8] sm:$0xff] %vm127, %v143
    $region25: #{decoder_layer.8} parent=1 // pred_fallthru
      _
    // Predicated region
    $region26: #{decoder_layer.8} parent=1 // pred_check
      _
    $region27: #{decoder_layer.8} parent=1 // pred_check_branch
      %147 = sbr.rel (0) target = $region29
    $region28: #{decoder_layer.8} parent=1 // pred_region
      _
    $region29: #{decoder_layer.8} parent=1 // pred_fallthru
      _
    // Predicated region
    $region30: #{decoder_layer.8} parent=1 // pred_check
      _
    $region31: #{decoder_layer.8} parent=1 // pred_check_branch
      %149 = sbr.rel (0) target = $region33
    $region32: #{decoder_layer.8} parent=1 // pred_region
      _
    $region33: #{decoder_layer.8} parent=1 // pred_fallthru
      _
    %150 = vsyncpa [#allocation3], 1

// kernel: decoder_layer.10
$region0: #{decoder_layer.10}
  #allocation0 [shape = 'u32[]', space=smem, size = 0x4, offset = 0x4, fixed_abs, tag = 'smem constant byte address 0x4 - core index']
  #allocation1 [shape = 'u32[144,128]{1,0:T(1,128)}', space=vmem, size = 0x12000, scoped, tag = 'internal scratch']
  #allocation2 [shape = 'f32[16,32]{1,0:T(8,128)}', space=vmem, size = 0x2000, scoped, tag = 'scratch operand']
  %s0 = inlined_call_operand.vmem [shape: f32[16,32], index: 0, kind: input, shape index: {}]
  %s1 = inlined_call_operand.vmem [shape: f32[32,32], index: 1, kind: input, shape index: {}]
  %s2 = inlined_call_operand.vmem [shape: f32[1,32], index: 2, kind: input, shape index: {}]
  %s3 = inlined_call_operand.vmem [shape: f32[16,32], index: 3, kind: input, shape index: {}]
  %s4 = inlined_call_operand.vmem [shape: f32[1,32], index: 4, kind: input, shape index: {}]
  %s5 = inlined_call_operand.vmem [shape: f32[1,32], index: 5, kind: input, shape index: {}]
  %s6 = inlined_call_operand.vmem [shape: f32[16,32], index: 6, kind: output, shape index: {}]
  %s7 = sld [smem:[#allocation0]]
  $region42: #{decoder_layer.10} parent=0
    _
  %s9 = ssub.s32 1, %s7
  %s10 = scalar_select 0, %s9, %s7
  // Predicated region
  $region2: #{decoder_layer.10} parent=0 // pred_check
    _
  $region3: #{decoder_layer.10} parent=0 // pred_check_branch
    %12 = sbr.rel (0) target = $region5
  $region4: #{decoder_layer.10} parent=0 // pred_region
    _
  $region5: #{decoder_layer.10} parent=0 // pred_fallthru
    _
  // Predicated region
  $region6: #{decoder_layer.10} parent=0 // pred_check
    _
  $region7: #{decoder_layer.10} parent=0 // pred_check_branch
    %14 = sbr.rel (0) target = $region9
  $region8: #{decoder_layer.10} parent=0 // pred_region
    _
  $region9: #{decoder_layer.10} parent=0 // pred_fallthru
    _
  // Predicated region
  $region10: #{decoder_layer.10} parent=0 // pred_check
    _
  $region11: #{decoder_layer.10} parent=0 // pred_check_branch
    %16 = sbr.rel (0) target = $region13
  $region12: #{decoder_layer.10} parent=0 // pred_region
    _
  $region13: #{decoder_layer.10} parent=0 // pred_fallthru
    _
  // Predicated region
  $region14: #{decoder_layer.10} parent=0 // pred_check
    _
  $region15: #{decoder_layer.10} parent=0 // pred_check_branch
    %18 = sbr.rel (0) target = $region17
  $region16: #{decoder_layer.10} parent=0 // pred_region
    _
  $region17: #{decoder_layer.10} parent=0 // pred_fallthru
    _
  // Predicated region
  $region18: #{decoder_layer.10} parent=0 // pred_check
    _
  $region19: #{decoder_layer.10} parent=0 // pred_check_branch
    %20 = sbr.rel (0) target = $region21
  $region20: #{decoder_layer.10} parent=0 // pred_region
    _
  $region21: #{decoder_layer.10} parent=0 // pred_fallthru
    _
  // Predicated region
  $region22: #{decoder_layer.10} parent=0 // pred_check
    _
  $region23: #{decoder_layer.10} parent=0 // pred_check_branch
    %22 = sbr.rel (0) target = $region25
  $region24: #{decoder_layer.10} parent=0 // pred_region
    _
  $region25: #{decoder_layer.10} parent=0 // pred_fallthru
    _
  %p23 = scmp.eq.s32.totalorder 0, 0
  // Predicated region
  $region26: #{decoder_layer.10} parent=0 // pred_check
    %p24 = pneg %p23
  $region27: #{decoder_layer.10} parent=0 // pred_check_branch
    %26 = sbr.rel (%p24) target = $region29
  $region28: #{decoder_layer.10} parent=0 // pred_region
    %vm27 = vcmask 261120
    %28 = vst.msk [vmem:[#allocation2] sm:$0xff] %vm27, 0.0
    %29 = vst.msk [vmem:[#allocation2 + $0x8] sm:$0xff] %vm27, 0.0
  $region29: #{decoder_layer.10} parent=0 // pred_fallthru
    _
  %v30 = vld [vmem:[#allocation2] sm:$0xff]
  %v31 = vld [vmem:[#allocation2 + $0x8] sm:$0xff]
  %v32 = vld [vmem:[%s0] sm:$0xff]
  %v33 = vld [vmem:[%s0 + $0x8] sm:$0xff]
  %v34 = vld [vmem:[%s1] sm:$0xff]
  %v35 = vld [vmem:[%s1 + $0x8] sm:$0xff]
  %v36 = vld [vmem:[%s1 + $0x10] sm:$0xff]
  %v37 = vld [vmem:[%s1 + $0x18] sm:$0xff]
  %vm38 = vcmask 261120
  %v40 = vsel %vm38, %v32, 0
  %v43 = vsel %vm38, %v33, 0
  %45 = vmatprep.subr.mxu0 0.0
  %46 = vmatpush1.msra.mxu0 0.0
  %47 = vmatprep.subr.mxu0 0.0
  %48 = vmatpush1.msra.mxu0 0.0
  %49 = vmatprep.subr.mxu0 0.0
  %50 = vmatpush1.msra.mxu0 0.0
  %51 = vmatprep.subr.mxu0 0.0
  %52 = vmatpush1.msra.mxu0 0.0
  %53 = vmatprep.subr.mxu0 0.0
  %54 = vmatpush1.msra.mxu0 0.0
  %55 = vmatprep.subr.mxu0 0.0
  %56 = vmatpush1.msra.mxu0 0.0
  %57 = vmatprep.subr.mxu0 0.0
  %58 = vmatpush1.msra.mxu0 0.0
  %59 = vmatprep.subr.mxu0 0.0
  %60 = vmatpush1.msra.mxu0 0.0
  %61 = vmatprep.subr.mxu0 0.0
  %62 = vmatpush1.msra.mxu0 0.0
  %63 = vmatprep.subr.mxu0 0.0
  %64 = vmatpush1.msra.mxu0 0.0
  %65 = vmatprep.subr.mxu0 0.0
  %66 = vmatpush1.msra.mxu0 0.0
  %67 = vmatprep.subr.mxu0 0.0
  %68 = vmatpush1.msra.mxu0 0.0
  %69 = vmatprep.subr.mxu0 0.0
  %70 = vmatpush1.msra.mxu0 %v37
  %71 = vmatprep.subr.mxu0 0.0
  %72 = vmatpush1.msra.mxu0 %v36
  %73 = vmatprep.subr.mxu0 0.0
  %74 = vmatpush1.msra.mxu0 %v35
  %75 = vmatprep.subr.mxu0 0.0
  %76 = vmatpush1.msra.mxu0 %v34
  %77 = vmatprep.subr.mxu0 0.0
  %78 = vmatpush2.msra.mxu0 0.0
  %79 = vmatprep.subr.mxu0 0.0
  %80 = vmatpush2.msra.mxu0 0.0
  %81 = vmatprep.subr.mxu0 0.0
  %82 = vmatpush2.msra.mxu0 0.0
  %83 = vmatprep.subr.mxu0 0.0
  %84 = vmatpush2.msra.mxu0 0.0
  %85 = vmatprep.subr.mxu0 0.0
  %86 = vmatpush2.msra.mxu0 0.0
  %87 = vmatprep.subr.mxu0 0.0
  %88 = vmatpush2.msra.mxu0 0.0
  %89 = vmatprep.subr.mxu0 0.0
  %90 = vmatpush2.msra.mxu0 0.0
  %91 = vmatprep.subr.mxu0 0.0
  %92 = vmatpush2.msra.mxu0 0.0
  %93 = vmatprep.subr.mxu0 0.0
  %94 = vmatpush2.msra.mxu0 0.0
  %95 = vmatprep.subr.mxu0 0.0
  %96 = vmatpush2.msra.mxu0 0.0
  %97 = vmatprep.subr.mxu0 0.0
  %98 = vmatpush2.msra.mxu0 0.0
  %99 = vmatprep.subr.mxu0 0.0
  %100 = vmatpush2.msra.mxu0 0.0
  %101 = vmatprep.subr.mxu0 0.0
  %102 = vmatpush2.msra.mxu0 0.0
  %103 = vmatprep.subr.mxu0 0.0
  %104 = vmatpush2.msra.mxu0 0.0
  %105 = vmatprep.subr.mxu0 0.0
  %106 = vmatpush2.msra.mxu0 0.0
  %107 = vmatprep.subr.mxu0 0.0
  %108 = vmatpush2.msra.mxu0 0.0
  %109 = vmatprep.mubr.f32.mxu0 0.0
  %110 = vmatmul.mubr.f32.gmra.mxu0 %v40
  %v111 = vpop.f32.mrf.mxu0
  %v112 = vadd.f32 0.0, %v111
  %v113 = vpop.f32.mrf.mxu0
  %114 = vmatprep.mubr.f32.mxu0 0.0
  %115 = vmatmul.mubr.f32.gmra.mxu0 %v43
  %v116 = vpop.f32.mrf.mxu0
  %v117 = vadd.f32 0.0, %v116
  %v118 = vpop.f32.mrf.mxu0
  %119 = vdwg.mxu0
  %v120 = vadd.f32 %v30, %v112
  %v121 = vadd.f32 %v31, %v117
  %122 = vst.msk [vmem:[#allocation2] sm:$0xff] %vm38, %v120
  %123 = vst.msk [vmem:[#allocation2 + $0x8] sm:$0xff] %vm38, %v121
  // Predicated region
  $region30: #{decoder_layer.10} parent=0 // pred_check
    %p124 = pneg %p23
  $region31: #{decoder_layer.10} parent=0 // pred_check_branch
    %126 = sbr.rel (%p124) target = $region33
  $region32: #{decoder_layer.10} parent=0 // pred_region
    %v127 = vld [vmem:[#allocation2] sm:$0xff]
    %v128 = vld [vmem:[#allocation2 + $0x8] sm:$0xff]
    %v129 = vld [vmem:[%s2] sm:$0x1]
    %v131 = vlaneseq
    %v132 = vshrl.u32 %v131, 7
    %v133 = vsub.s32 0, %v132
    %v134 = vrot.slane %v129, %v133
    %v136 = vadd.f32 %v127, %v134
    %v137 = vadd.f32 %v128, %v134
    %v138 = vld [vmem:[%s3] sm:$0xff]
    %v139 = vld [vmem:[%s3 + $0x8] sm:$0xff]
    %v140 = vadd.f32 %v136, %v138
    %v141 = vadd.f32 %v137, %v139
    %v142 = vsel %vm38, %v140, 0.0
    %143 = vadd.xlane.f32.xlu0 %v142
    %v144 = vpop.xlane.xlu0 %143
    %v145 = vsel %vm38, %v141, 0.0
    %146 = vadd.xlane.f32.xlu0 %v145
    %v147 = vpop.xlane.xlu0 %146
    %v148 = vrcp.pop 32.0
    %v149 = vmul.f32 %v144, %v148
    %v150 = vmul.f32 %v147, %v148
    %v151 = vsub.f32 %v140, %v149
    %v152 = vsub.f32 %v141, %v150
    %v153 = vmul.f32 %v151, %v151
    %v154 = vmul.f32 %v152, %v152
    %v155 = vsel %vm38, %v153, 0.0
    %156 = vadd.xlane.f32.xlu0 %v155
    %v157 = vpop.xlane.xlu0 %156
    %v158 = vsel %vm38, %v154, 0.0
    %159 = vadd.xlane.f32.xlu0 %v158
    %v160 = vpop.xlane.xlu0 %159
    %v161 = vmul.f32 %v157, %v148
    %v162 = vmul.f32 %v160, %v148
    %v163 = vadd.f32 %v161, 1e-05
    %v164 = vadd.f32 %v162, 1e-05
    %v165 = vrsqrt.pop %v163
    %v166 = vrsqrt.pop %v164
    %v167 = vmul.f32 %v151, %v165
    %v168 = vmul.f32 %v152, %v166
    %v169 = vld [vmem:[%s4] sm:$0x1]
    %v171 = vlaneseq
    %v172 = vshrl.u32 %v171, 7
    %v173 = vsub.s32 0, %v172
    %v174 = vrot.slane %v169, %v173
    %v176 = vmul.f32 %v167, %v174
    %v177 = vmul.f32 %v168, %v174
    %v178 = vld [vmem:[%s5] sm:$0x1]
    %v180 = vlaneseq
    %v181 = vshrl.u32 %v180, 7
    %v182 = vsub.s32 0, %v181
    %v183 = vrot.slane %v178, %v182
    %v185 = vadd.f32 %v176, %v183
    %v186 = vadd.f32 %v177, %v183
    %187 = vst.msk [vmem:[%s6] sm:$0xff] %vm38, %v185
    %188 = vst.msk [vmem:[%s6 + $0x8] sm:$0xff] %vm38, %v186
  $region33: #{decoder_layer.10} parent=0 // pred_fallthru
    _
  // Predicated region
  $region34: #{decoder_layer.10} parent=0 // pred_check
    _
  $region35: #{decoder_layer.10} parent=0 // pred_check_branch
    %190 = sbr.rel (0) target = $region37
  $region36: #{decoder_layer.10} parent=0 // pred_region
    _
  $region37: #{decoder_layer.10} parent=0 // pred_fallthru
    _
  // Predicated region
  $region38: #{decoder_layer.10} parent=0 // pred_check
    _
  $region39: #{decoder_layer.10} parent=0 // pred_check_branch
    %192 = sbr.rel (0) target = $region41
  $region40: #{decoder_layer.10} parent=0 // pred_region
    _
  $region41: #{decoder_layer.10} parent=0 // pred_fallthru
    _

// kernel: decoder_layer.11
$region0: #{decoder_layer.11}
  #allocation0 [shape = 'u32[]', space=smem, size = 0x4, offset = 0x4, fixed_abs, tag = 'smem constant byte address 0x4 - core index']
  #allocation1 [shape = 'u32[144,128]{1,0:T(1,128)}', space=vmem, size = 0x12000, scoped, tag = 'internal scratch']
  %s0 = inlined_call_operand.vmem [shape: f32[16,32], index: 0, kind: input, shape index: {}]
  %s1 = inlined_call_operand.vmem [shape: f32[32,32], index: 1, kind: input, shape index: {}]
  %s2 = inlined_call_operand.vmem [shape: f32[1,32], index: 2, kind: input, shape index: {}]
  %s3 = inlined_call_operand.vmem [shape: f32[16,32], index: 3, kind: output, shape index: {}]
  %s4 = sld [smem:[#allocation0]]
  $region30: #{decoder_layer.11} parent=0
    _
  %s6 = ssub.s32 1, %s4
  %s7 = scalar_select 0, %s6, %s4
  // Predicated region
  $region2: #{decoder_layer.11} parent=0 // pred_check
    _
  $region3: #{decoder_layer.11} parent=0 // pred_check_branch
    %9 = sbr.rel (0) target = $region5
  $region4: #{decoder_layer.11} parent=0 // pred_region
    _
  $region5: #{decoder_layer.11} parent=0 // pred_fallthru
    _
  // Predicated region
  $region6: #{decoder_layer.11} parent=0 // pred_check
    _
  $region7: #{decoder_layer.11} parent=0 // pred_check_branch
    %11 = sbr.rel (0) target = $region9
  $region8: #{decoder_layer.11} parent=0 // pred_region
    _
  $region9: #{decoder_layer.11} parent=0 // pred_fallthru
    _
  // Predicated region
  $region10: #{decoder_layer.11} parent=0 // pred_check
    _
  $region11: #{decoder_layer.11} parent=0 // pred_check_branch
    %13 = sbr.rel (0) target = $region13
  $region12: #{decoder_layer.11} parent=0 // pred_region
    _
  $region13: #{decoder_layer.11} parent=0 // pred_fallthru
    _
  %p14 = scmp.eq.s32.totalorder 0, 0
  // Predicated region
  $region14: #{decoder_layer.11} parent=0 // pred_check
    %p15 = pneg %p14
  $region15: #{decoder_layer.11} parent=0 // pred_check_branch
    %17 = sbr.rel (%p15) target = $region17
  $region16: #{decoder_layer.11} parent=0 // pred_region
    %vm18 = vcmask 261120
    %19 = vst.msk [vmem:[%s3] sm:$0xff] %vm18, 0.0
    %20 = vst.msk [vmem:[%s3 + $0x8] sm:$0xff] %vm18, 0.0
  $region17: #{decoder_layer.11} parent=0 // pred_fallthru
    _
  %v21 = vld [vmem:[%s3] sm:$0xff]
  %v22 = vld [vmem:[%s3 + $0x8] sm:$0xff]
  %v23 = vld [vmem:[%s0] sm:$0xff]
  %v24 = vld [vmem:[%s0 + $0x8] sm:$0xff]
  %v25 = vld [vmem:[%s1] sm:$0xff]
  %v26 = vld [vmem:[%s1 + $0x8] sm:$0xff]
  %v27 = vld [vmem:[%s1 + $0x10] sm:$0xff]
  %v28 = vld [vmem:[%s1 + $0x18] sm:$0xff]
  %vm29 = vcmask 261120
  %v31 = vsel %vm29, %v23, 0
  %v34 = vsel %vm29, %v24, 0
  %36 = vmatprep.subr.mxu0 0.0
  %37 = vmatpush1.msra.mxu0 0.0
  %38 = vmatprep.subr.mxu0 0.0
  %39 = vmatpush1.msra.mxu0 0.0
  %40 = vmatprep.subr.mxu0 0.0
  %41 = vmatpush1.msra.mxu0 0.0
  %42 = vmatprep.subr.mxu0 0.0
  %43 = vmatpush1.msra.mxu0 0.0
  %44 = vmatprep.subr.mxu0 0.0
  %45 = vmatpush1.msra.mxu0 0.0
  %46 = vmatprep.subr.mxu0 0.0
  %47 = vmatpush1.msra.mxu0 0.0
  %48 = vmatprep.subr.mxu0 0.0
  %49 = vmatpush1.msra.mxu0 0.0
  %50 = vmatprep.subr.mxu0 0.0
  %51 = vmatpush1.msra.mxu0 0.0
  %52 = vmatprep.subr.mxu0 0.0
  %53 = vmatpush1.msra.mxu0 0.0
  %54 = vmatprep.subr.mxu0 0.0
  %55 = vmatpush1.msra.mxu0 0.0
  %56 = vmatprep.subr.mxu0 0.0
  %57 = vmatpush1.msra.mxu0 0.0
  %58 = vmatprep.subr.mxu0 0.0
  %59 = vmatpush1.msra.mxu0 0.0
  %60 = vmatprep.subr.mxu0 0.0
  %61 = vmatpush1.msra.mxu0 %v28
  %62 = vmatprep.subr.mxu0 0.0
  %63 = vmatpush1.msra.mxu0 %v27
  %64 = vmatprep.subr.mxu0 0.0
  %65 = vmatpush1.msra.mxu0 %v26
  %66 = vmatprep.subr.mxu0 0.0
  %67 = vmatpush1.msra.mxu0 %v25
  %68 = vmatprep.subr.mxu0 0.0
  %69 = vmatpush2.msra.mxu0 0.0
  %70 = vmatprep.subr.mxu0 0.0
  %71 = vmatpush2.msra.mxu0 0.0
  %72 = vmatprep.subr.mxu0 0.0
  %73 = vmatpush2.msra.mxu0 0.0
  %74 = vmatprep.subr.mxu0 0.0
  %75 = vmatpush2.msra.mxu0 0.0
  %76 = vmatprep.subr.mxu0 0.0
  %77 = vmatpush2.msra.mxu0 0.0
  %78 = vmatprep.subr.mxu0 0.0
  %79 = vmatpush2.msra.mxu0 0.0
  %80 = vmatprep.subr.mxu0 0.0
  %81 = vmatpush2.msra.mxu0 0.0
  %82 = vmatprep.subr.mxu0 0.0
  %83 = vmatpush2.msra.mxu0 0.0
  %84 = vmatprep.subr.mxu0 0.0
  %85 = vmatpush2.msra.mxu0 0.0
  %86 = vmatprep.subr.mxu0 0.0
  %87 = vmatpush2.msra.mxu0 0.0
  %88 = vmatprep.subr.mxu0 0.0
  %89 = vmatpush2.msra.mxu0 0.0
  %90 = vmatprep.subr.mxu0 0.0
  %91 = vmatpush2.msra.mxu0 0.0
  %92 = vmatprep.subr.mxu0 0.0
  %93 = vmatpush2.msra.mxu0 0.0
  %94 = vmatprep.subr.mxu0 0.0
  %95 = vmatpush2.msra.mxu0 0.0
  %96 = vmatprep.subr.mxu0 0.0
  %97 = vmatpush2.msra.mxu0 0.0
  %98 = vmatprep.subr.mxu0 0.0
  %99 = vmatpush2.msra.mxu0 0.0
  %100 = vmatprep.mubr.f32.mxu0 0.0
  %101 = vmatmul.mubr.f32.gmra.mxu0 %v31
  %v102 = vpop.f32.mrf.mxu0
  %v103 = vadd.f32 0.0, %v102
  %v104 = vpop.f32.mrf.mxu0
  %105 = vmatprep.mubr.f32.mxu0 0.0
  %106 = vmatmul.mubr.f32.gmra.mxu0 %v34
  %v107 = vpop.f32.mrf.mxu0
  %v108 = vadd.f32 0.0, %v107
  %v109 = vpop.f32.mrf.mxu0
  %110 = vdwg.mxu0
  %v111 = vadd.f32 %v21, %v103
  %v112 = vadd.f32 %v22, %v108
  %113 = vst.msk [vmem:[%s3] sm:$0xff] %vm29, %v111
  %114 = vst.msk [vmem:[%s3 + $0x8] sm:$0xff] %vm29, %v112
  // Predicated region
  $region18: #{decoder_layer.11} parent=0 // pred_check
    %p115 = pneg %p14
  $region19: #{decoder_layer.11} parent=0 // pred_check_branch
    %117 = sbr.rel (%p115) target = $region21
  $region20: #{decoder_layer.11} parent=0 // pred_region
    %v118 = vld [vmem:[%s3] sm:$0xff]
    %v119 = vld [vmem:[%s3 + $0x8] sm:$0xff]
    %v120 = vld [vmem:[%s2] sm:$0x1]
    %v122 = vlaneseq
    %v123 = vshrl.u32 %v122, 7
    %v124 = vsub.s32 0, %v123
    %v125 = vrot.slane %v120, %v124
    %v127 = vadd.f32 %v118, %v125
    %v128 = vadd.f32 %v119, %v125
    %129 = vst.msk [vmem:[%s3] sm:$0xff] %vm29, %v127
    %130 = vst.msk [vmem:[%s3 + $0x8] sm:$0xff] %vm29, %v128
  $region21: #{decoder_layer.11} parent=0 // pred_fallthru
    _
  // Predicated region
  $region22: #{decoder_layer.11} parent=0 // pred_check
    _
  $region23: #{decoder_layer.11} parent=0 // pred_check_branch
    %132 = sbr.rel (0) target = $region25
  $region24: #{decoder_layer.11} parent=0 // pred_region
    _
  $region25: #{decoder_layer.11} parent=0 // pred_fallthru
    _
  // Predicated region
  $region26: #{decoder_layer.11} parent=0 // pred_check
    _
  $region27: #{decoder_layer.11} parent=0 // pred_check_branch
    %134 = sbr.rel (0) target = $region29
  $region28: #{decoder_layer.11} parent=0 // pred_region
    _
  $region29: #{decoder_layer.11} parent=0 // pred_fallthru
    _

// kernel: decoder_layer.12
$region0: #{decoder_layer.12}
  #allocation0 [shape = 'u32[]', space=smem, size = 0x4, offset = 0x4, fixed_abs, tag = 'smem constant byte address 0x4 - core index']
  #allocation1 [shape = 'u32[144,128]{1,0:T(1,128)}', space=vmem, size = 0x12000, scoped, tag = 'internal scratch']
  %s0 = inlined_call_operand.vmem [shape: f32[16,32], index: 0, kind: input, shape index: {}]
  %s1 = inlined_call_operand.vmem [shape: f32[32,64], index: 1, kind: input, shape index: {}]
  %s2 = inlined_call_operand.vmem [shape: f32[1,64], index: 2, kind: input, shape index: {}]
  %s3 = inlined_call_operand.vmem [shape: f32[16,64], index: 3, kind: output, shape index: {}]
  %s4 = sld [smem:[#allocation0]]
  $region30: #{decoder_layer.12} parent=0
    _
  %s6 = ssub.s32 1, %s4
  %s7 = scalar_select 0, %s6, %s4
  // Predicated region
  $region2: #{decoder_layer.12} parent=0 // pred_check
    _
  $region3: #{decoder_layer.12} parent=0 // pred_check_branch
    %9 = sbr.rel (0) target = $region5
  $region4: #{decoder_layer.12} parent=0 // pred_region
    _
  $region5: #{decoder_layer.12} parent=0 // pred_fallthru
    _
  // Predicated region
  $region6: #{decoder_layer.12} parent=0 // pred_check
    _
  $region7: #{decoder_layer.12} parent=0 // pred_check_branch
    %11 = sbr.rel (0) target = $region9
  $region8: #{decoder_layer.12} parent=0 // pred_region
    _
  $region9: #{decoder_layer.12} parent=0 // pred_fallthru
    _
  // Predicated region
  $region10: #{decoder_layer.12} parent=0 // pred_check
    _
  $region11: #{decoder_layer.12} parent=0 // pred_check_branch
    %13 = sbr.rel (0) target = $region13
  $region12: #{decoder_layer.12} parent=0 // pred_region
    _
  $region13: #{decoder_layer.12} parent=0 // pred_fallthru
    _
  %p14 = scmp.eq.s32.totalorder 0, 0
  // Predicated region
  $region14: #{decoder_layer.12} parent=0 // pred_check
    %p15 = pneg %p14
  $region15: #{decoder_layer.12} parent=0 // pred_check_branch
    %17 = sbr.rel (%p15) target = $region17
  $region16: #{decoder_layer.12} parent=0 // pred_region
    %vm18 = vcmask 523264
    %19 = vst.msk [vmem:[%s3] sm:$0xff] %vm18, 0.0
    %20 = vst.msk [vmem:[%s3 + $0x8] sm:$0xff] %vm18, 0.0
  $region17: #{decoder_layer.12} parent=0 // pred_fallthru
    _
  %v21 = vld [vmem:[%s3] sm:$0xff]
  %v22 = vld [vmem:[%s3 + $0x8] sm:$0xff]
  %v23 = vld [vmem:[%s0] sm:$0xff]
  %v24 = vld [vmem:[%s0 + $0x8] sm:$0xff]
  %v25 = vld [vmem:[%s1] sm:$0xff]
  %v26 = vld [vmem:[%s1 + $0x8] sm:$0xff]
  %v27 = vld [vmem:[%s1 + $0x10] sm:$0xff]
  %v28 = vld [vmem:[%s1 + $0x18] sm:$0xff]
  %vm29 = vcmask 261120
  %v31 = vsel %vm29, %v23, 0
  %v34 = vsel %vm29, %v24, 0
  %36 = vmatprep.subr.mxu0 0.0
  %37 = vmatpush1.msra.mxu0 0.0
  %38 = vmatprep.subr.mxu0 0.0
  %39 = vmatpush1.msra.mxu0 0.0
  %40 = vmatprep.subr.mxu0 0.0
  %41 = vmatpush1.msra.mxu0 0.0
  %42 = vmatprep.subr.mxu0 0.0
  %43 = vmatpush1.msra.mxu0 0.0
  %44 = vmatprep.subr.mxu0 0.0
  %45 = vmatpush1.msra.mxu0 0.0
  %46 = vmatprep.subr.mxu0 0.0
  %47 = vmatpush1.msra.mxu0 0.0
  %48 = vmatprep.subr.mxu0 0.0
  %49 = vmatpush1.msra.mxu0 0.0
  %50 = vmatprep.subr.mxu0 0.0
  %51 = vmatpush1.msra.mxu0 0.0
  %52 = vmatprep.subr.mxu0 0.0
  %53 = vmatpush1.msra.mxu0 0.0
  %54 = vmatprep.subr.mxu0 0.0
  %55 = vmatpush1.msra.mxu0 0.0
  %56 = vmatprep.subr.mxu0 0.0
  %57 = vmatpush1.msra.mxu0 0.0
  %58 = vmatprep.subr.mxu0 0.0
  %59 = vmatpush1.msra.mxu0 0.0
  %60 = vmatprep.subr.mxu0 0.0
  %61 = vmatpush1.msra.mxu0 %v28
  %62 = vmatprep.subr.mxu0 0.0
  %63 = vmatpush1.msra.mxu0 %v27
  %64 = vmatprep.subr.mxu0 0.0
  %65 = vmatpush1.msra.mxu0 %v26
  %66 = vmatprep.subr.mxu0 0.0
  %67 = vmatpush1.msra.mxu0 %v25
  %68 = vmatprep.subr.mxu0 0.0
  %69 = vmatpush2.msra.mxu0 0.0
  %70 = vmatprep.subr.mxu0 0.0
  %71 = vmatpush2.msra.mxu0 0.0
  %72 = vmatprep.subr.mxu0 0.0
  %73 = vmatpush2.msra.mxu0 0.0
  %74 = vmatprep.subr.mxu0 0.0
  %75 = vmatpush2.msra.mxu0 0.0
  %76 = vmatprep.subr.mxu0 0.0
  %77 = vmatpush2.msra.mxu0 0.0
  %78 = vmatprep.subr.mxu0 0.0
  %79 = vmatpush2.msra.mxu0 0.0
  %80 = vmatprep.subr.mxu0 0.0
  %81 = vmatpush2.msra.mxu0 0.0
  %82 = vmatprep.subr.mxu0 0.0
  %83 = vmatpush2.msra.mxu0 0.0
  %84 = vmatprep.subr.mxu0 0.0
  %85 = vmatpush2.msra.mxu0 0.0
  %86 = vmatprep.subr.mxu0 0.0
  %87 = vmatpush2.msra.mxu0 0.0
  %88 = vmatprep.subr.mxu0 0.0
  %89 = vmatpush2.msra.mxu0 0.0
  %90 = vmatprep.subr.mxu0 0.0
  %91 = vmatpush2.msra.mxu0 0.0
  %92 = vmatprep.subr.mxu0 0.0
  %93 = vmatpush2.msra.mxu0 0.0
  %94 = vmatprep.subr.mxu0 0.0
  %95 = vmatpush2.msra.mxu0 0.0
  %96 = vmatprep.subr.mxu0 0.0
  %97 = vmatpush2.msra.mxu0 0.0
  %98 = vmatprep.subr.mxu0 0.0
  %99 = vmatpush2.msra.mxu0 0.0
  %100 = vmatprep.mubr.f32.mxu0 0.0
  %101 = vmatmul.mubr.f32.gmra.mxu0 %v31
  %v102 = vpop.f32.mrf.mxu0
  %v103 = vadd.f32 0.0, %v102
  %v104 = vpop.f32.mrf.mxu0
  %105 = vmatprep.mubr.f32.mxu0 0.0
  %106 = vmatmul.mubr.f32.gmra.mxu0 %v34
  %v107 = vpop.f32.mrf.mxu0
  %v108 = vadd.f32 0.0, %v107
  %v109 = vpop.f32.mrf.mxu0
  %110 = vdwg.mxu0
  %v111 = vadd.f32 %v21, %v103
  %v112 = vadd.f32 %v22, %v108
  %vm113 = vcmask 523264
  %114 = vst.msk [vmem:[%s3] sm:$0xff] %vm113, %v111
  %115 = vst.msk [vmem:[%s3 + $0x8] sm:$0xff] %vm113, %v112
  // Predicated region
  $region18: #{decoder_layer.12} parent=0 // pred_check
    %p116 = pneg %p14
  $region19: #{decoder_layer.12} parent=0 // pred_check_branch
    %118 = sbr.rel (%p116) target = $region21
  $region20: #{decoder_layer.12} parent=0 // pred_region
    %v119 = vld [vmem:[%s3] sm:$0xff]
    %v120 = vld [vmem:[%s3 + $0x8] sm:$0xff]
    %v121 = vld [vmem:[%s2] sm:$0x1]
    %v123 = vlaneseq
    %v124 = vshrl.u32 %v123, 7
    %v125 = vsub.s32 0, %v124
    %v126 = vrot.slane %v121, %v125
    %v128 = vadd.f32 %v119, %v126
    %v129 = vadd.f32 %v120, %v126
    %130 = vst.msk [vmem:[%s3] sm:$0xff] %vm113, %v128
    %131 = vst.msk [vmem:[%s3 + $0x8] sm:$0xff] %vm113, %v129
  $region21: #{decoder_layer.12} parent=0 // pred_fallthru
    _
  // Predicated region
  $region22: #{decoder_layer.12} parent=0 // pred_check
    _
  $region23: #{decoder_layer.12} parent=0 // pred_check_branch
    %133 = sbr.rel (0) target = $region25
  $region24: #{decoder_layer.12} parent=0 // pred_region
    _
  $region25: #{decoder_layer.12} parent=0 // pred_fallthru
    _
  // Predicated region
  $region26: #{decoder_layer.12} parent=0 // pred_check
    _
  $region27: #{decoder_layer.12} parent=0 // pred_check_branch
    %135 = sbr.rel (0) target = $region29
  $region28: #{decoder_layer.12} parent=0 // pred_region
    _
  $region29: #{decoder_layer.12} parent=0 // pred_fallthru
    _

// kernel: decoder_layer.13
$region0: #{decoder_layer.13}
  #allocation0 [shape = 'u32[]', space=smem, size = 0x4, offset = 0x4, fixed_abs, tag = 'smem constant byte address 0x4 - core index']
  #allocation1 [shape = 'u32[144,128]{1,0:T(1,128)}', space=vmem, size = 0x12000, scoped, tag = 'internal scratch']
  %s0 = inlined_call_operand.vmem [shape: f32[2,4,8,8], index: 0, kind: input, shape index: {}]
  %s1 = inlined_call_operand.vmem [shape: f32[2,4,8,8], index: 1, kind: input, shape index: {}]
  %s2 = inlined_call_operand.vmem [shape: f32[2,4,8,8], index: 2, kind: input, shape index: {}]
  %s3 = inlined_call_operand.vmem [shape: f32[2,4,8,8], index: 3, kind: output, shape index: {0}]
  %s4 = inlined_call_operand.hbm [shape: f32[2,4,8,8], index: 4, kind: output, shape index: {1}]
  %5 = xla_tuple %s3, %s4
  %s6 = sld [smem:[#allocation0]]
  $region53: #{decoder_layer.13} parent=0
    _
  %s8 = ssub.s32 1, %s6
  %s9 = scalar_select 0, %s8, %s6
  $region1: #{decoder_layer.13} parent=0
    #allocation2 [shape = 'u8[8192]{0}', space=vmem, size = 0x2000, scoped, tag = 'output window, operand 1']
    #allocation3 [shape = 's32[2]{0}', space=sflag, size = 0x8, scoped, tag = 'scoped memory for decoder_layer.13']
    %10 = vsyncpa [#allocation3], 0
    %s11 = scalar_lea.sflag [#allocation3], 1
    %12 = vsyncpa %s11, 0
    loop: start=0, step=1, limit=10
    $region2: #{decoder_layer.13} parent=1 // loop_pre_header
      _
    $region3: #{decoder_layer.13} parent=1 // loop_header
      %s14 = sphi 0, %s18
      %p15 = scmp.ge.s32.totalorder %s14, 10
      %s21 = sphi 0, %s40
      %s22 = sphi 0, %s36
      %s23 = sphi 0, %s32
      %s24 = sphi 0, %s21
      %s25 = sphi 0, %s22
      %s26 = sphi 0, %s23
      %s27 = sphi 0, %s24
      %s28 = sphi 0, %s25
      %s29 = sphi 0, %s26
      %s47 = sphi 0, %s49
      %s50 = sphi 0, %s47
      %s51 = sphi 0, %s50
      %s67 = sphi 0, %s51
      %s75 = sphi 0, %s77
      %s78 = sphi 0, %s75
      %s79 = sphi 0, %s78
      %s95 = sphi 0, %s79
      %s103 = sphi 0, %s105
      %s106 = sphi 0, %s103
      %s107 = sphi 0, %s106
      %s123 = sphi 0, %s107
      %s133 = sphi 0, %s135
      %s136 = sphi 0, %s133
      %s137 = sphi 0, %s136
      %s153 = sphi 0, %s137
      %s163 = sphi 0, %s165
      %s166 = sphi 0, %s163
      %s167 = sphi 0, %s166
      %s183 = sphi 0, %s167
    $region4: #{decoder_layer.13} parent=1 // loop_header_branch
      %17 = sbr.rel (%p15) target = $region8
    $region5: #{decoder_layer.13} parent=1 // loop_body
      %s19 = ssub.s32 %s14, 1
      %s20 = ssub.s32 %s14, 2
      %s30 = sadd.s32 1, %s23
      %p31 = scmp.ge.s32.totalorder %s30, 1
      %s32 = scalar_select %p31, 0, %s30
      %s33 = sadd.s32 1, %s22
      %s34 = scalar_select %p31, %s33, %s22
      %p35 = scmp.ge.s32.totalorder %s34, 4
      %s36 = scalar_select %p35, 0, %s34
      %s37 = sadd.s32 1, %s21
      %s38 = scalar_select %p35, %s37, %s21
      %p39 = scmp.ge.s32.totalorder %s38, 2
      %s40 = scalar_select %p39, 0, %s38
      %s41 = ssub.s32 %s21, %s40
      %s42 = ssub.s32 %s22, %s36
      %s43 = sor.u32 %s41, %s42
      %s44 = ssub.s32 %s23, %s32
      %s45 = sor.u32 %s43, %s44
      %p46 = scmp.eq.s32.totalorder %s45, 0
      %s48 = sadd.s32 %s47, 1
      %s49 = scalar_select %p46, %s47, %s48
      %p52 = pneg %p46
      %p53 = scmp.eq.s32.totalorder %s14, 7
      %p54 = por %p52, %p53
      %p55 = scmp.ne.s32.totalorder %s47, %s50
      %p56 = scmp.eq.s32.totalorder %s14, 0
      %p57 = por %p55, %p56
      %p58 = scmp.ne.s32.totalorder %s47, %s50
      %p59 = scmp.eq.s32.totalorder %s19, 7
      %p60 = por %p58, %p59
      %p61 = scmp.ne.s32.totalorder %s50, %s51
      %p62 = scmp.eq.s32.totalorder %s19, 0
      %p63 = por %p61, %p62
      %p64 = scmp.ne.s32.totalorder %s50, %s51
      %p65 = scmp.eq.s32.totalorder %s20, 7
      %p66 = por %p64, %p65
      %p68 = scmp.ne.s32.totalorder %s51, %s67
      %p69 = scmp.eq.s32.totalorder %s20, 0
      %p70 = por %p68, %p69
      %s71 = ssub.s32 %s21, %s40
      %s72 = ssub.s32 %s22, %s36
      %s73 = sor.u32 %s71, %s72
      %p74 = scmp.eq.s32.totalorder %s73, 0
      %s76 = sadd.s32 %s75, 1
      %s77 = scalar_select %p74, %s75, %s76
      %p80 = pneg %p74
      %p81 = scmp.eq.s32.totalorder %s14, 7
      %p82 = por %p80, %p81
      %p83 = scmp.ne.s32.totalorder %s75, %s78
      %p84 = scmp.eq.s32.totalorder %s14, 0
      %p85 = por %p83, %p84
      %p86 = scmp.ne.s32.totalorder %s75, %s78
      %p87 = scmp.eq.s32.totalorder %s19, 7
      %p88 = por %p86, %p87
      %p89 = scmp.ne.s32.totalorder %s78, %s79
      %p90 = scmp.eq.s32.totalorder %s19, 0
      %p91 = por %p89, %p90
      %p92 = scmp.ne.s32.totalorder %s78, %s79
      %p93 = scmp.eq.s32.totalorder %s20, 7
      %p94 = por %p92, %p93
      %p96 = scmp.ne.s32.totalorder %s79, %s95
      %p97 = scmp.eq.s32.totalorder %s20, 0
      %p98 = por %p96, %p97
      %s99 = ssub.s32 %s21, %s40
      %s100 = ssub.s32 %s22, %s36
      %s101 = sor.u32 %s99, %s100
      %p102 = scmp.eq.s32.totalorder %s101, 0
      %s104 = sadd.s32 %s103, 1
      %s105 = scalar_select %p102, %s103, %s104
      %p108 = pneg %p102
      %p109 = scmp.eq.s32.totalorder %s14, 7
      %p110 = por %p108, %p109
      %p111 = scmp.ne.s32.totalorder %s103, %s106
      %p112 = scmp.eq.s32.totalorder %s14, 0
      %p113 = por %p111, %p112
      %p114 = scmp.ne.s32.totalorder %s103, %s106
      %p115 = scmp.eq.s32.totalorder %s19, 7
      %p116 = por %p114, %p115
      %p117 = scmp.ne.s32.totalorder %s106, %s107
      %p118 = scmp.eq.s32.totalorder %s19, 0
      %p119 = por %p117, %p118
      %p120 = scmp.ne.s32.totalorder %s106, %s107
      %p121 = scmp.eq.s32.totalorder %s20, 7
      %p122 = por %p120, %p121
      %p124 = scmp.ne.s32.totalorder %s107, %s123
      %p125 = scmp.eq.s32.totalorder %s20, 0
      %p126 = por %p124, %p125
      %s127 = ssub.s32 %s21, %s40
      %s128 = ssub.s32 %s22, %s36
      %s129 = sor.u32 %s127, %s128
      %s130 = ssub.s32 %s23, %s32
      %s131 = sor.u32 %s129, %s130
      %p132 = scmp.eq.s32.totalorder %s131, 0
      %s134 = sadd.s32 %s133, 1
      %s135 = scalar_select %p132, %s133, %s134
      %p138 = pneg %p132
      %p139 = scmp.eq.s32.totalorder %s14, 7
      %p140 = por %p138, %p139
      %p141 = scmp.ne.s32.totalorder %s133, %s136
      %p142 = scmp.eq.s32.totalorder %s14, 0
      %p143 = por %p141, %p142
      %p144 = scmp.ne.s32.totalorder %s133, %s136
      %p145 = scmp.eq.s32.totalorder %s19, 7
      %p146 = por %p144, %p145
      %p147 = scmp.ne.s32.totalorder %s136, %s137
      %p148 = scmp.eq.s32.totalorder %s19, 0
      %p149 = por %p147, %p148
      %p150 = scmp.ne.s32.totalorder %s136, %s137
      %p151 = scmp.eq.s32.totalorder %s20, 7
      %p152 = por %p150, %p151
      %p154 = scmp.ne.s32.totalorder %s137, %s153
      %p155 = scmp.eq.s32.totalorder %s20, 0
      %p156 = por %p154, %p155
      %s157 = ssub.s32 %s21, %s40
      %s158 = ssub.s32 %s22, %s36
      %s159 = sor.u32 %s157, %s158
      %s160 = ssub.s32 %s23, %s32
      %s161 = sor.u32 %s159, %s160
      %p162 = scmp.eq.s32.totalorder %s161, 0
      %s164 = sadd.s32 %s163, 1
      %s165 = scalar_select %p162, %s163, %s164
      %p168 = pneg %p162
      %p169 = scmp.eq.s32.totalorder %s14, 7
      %p170 = por %p168, %p169
      %p171 = scmp.ne.s32.totalorder %s163, %s166
      %p172 = scmp.eq.s32.totalorder %s14, 0
      %p173 = por %p171, %p172
      %p174 = scmp.ne.s32.totalorder %s163, %s166
      %p175 = scmp.eq.s32.totalorder %s19, 7
      %p176 = por %p174, %p175
      %p177 = scmp.ne.s32.totalorder %s166, %s167
      %p178 = scmp.eq.s32.totalorder %s19, 0
      %p179 = por %p177, %p178
      %p180 = scmp.ne.s32.totalorder %s166, %s167
      %p181 = scmp.eq.s32.totalorder %s20, 7
      %p182 = por %p180, %p181
      %p184 = scmp.ne.s32.totalorder %s167, %s183
      %p185 = scmp.eq.s32.totalorder %s20, 0
      %p186 = por %p184, %p185
      %p187 = scmp.le.s32.totalorder 1, %s14
      %p188 = scmp.lt.s32.totalorder %s14, 9
      %p189 = pnand %p187, %p188
      %p190 = pneg %p189
      // Predicated region
      $region9: #{decoder_layer.13} parent=5 // pred_check
        _
      $region10: #{decoder_layer.13} parent=5 // pred_check_branch
        %192 = sbr.rel (%p189) target = $region12
      $region11: #{decoder_layer.13} parent=5 // pred_region
        %s193 = ssub.s32 %s14, 1
      $region12: #{decoder_layer.13} parent=5 // pred_fallthru
        _
      %p194 = scmp.lt.s32.totalorder %s14, 8
      // Predicated region
      $region13: #{decoder_layer.13} parent=5 // pred_check
        %p195 = pneg %p194
      $region14: #{decoder_layer.13} parent=5 // pred_check_branch
        %197 = sbr.rel (%p195) target = $region16
      $region15: #{decoder_layer.13} parent=5 // pred_region
        // Predicated region
        $region17: #{decoder_layer.13} parent=15 // pred_check
          %p198 = pneg %p57
        $region18: #{decoder_layer.13} parent=15 // pred_check_branch
          %200 = sbr.rel (%p198) target = $region20
        $region19: #{decoder_layer.13} parent=15 // pred_region
          %p201 = scmp.lt.s32.totalorder %s21, 1
          %s202 = scalar_select %p201, %s21, 1
          %p203 = scmp.lt.s32.totalorder %s22, 3
          %s204 = scalar_select %p203, %s22, 3
          %p205 = scmp.lt.s32.totalorder %s23, 0
          %s206 = scalar_select %p205, %s23, 0
          %s207 = sadd.s32 %s206, %s204
          %s208 = smul.addr %s202, 4
          %s209 = sadd.s32 %s207, %s208
          %s210 = smul.addr %s209, 8
          %s211 = scalar_lea.vmem %s0, %s210
        $region20: #{decoder_layer.13} parent=15 // pred_fallthru
          _
        // Predicated region
        $region21: #{decoder_layer.13} parent=15 // pred_check
          %p212 = pneg %p85
        $region22: #{decoder_layer.13} parent=15 // pred_check_branch
          %214 = sbr.rel (%p212) target = $region24
        $region23: #{decoder_layer.13} parent=15 // pred_region
          %p215 = scmp.lt.s32.totalorder %s21, 1
          %s216 = scalar_select %p215, %s21, 1
          %p217 = scmp.lt.s32.totalorder %s22, 3
          %s218 = scalar_select %p217, %s22, 3
          %s219 = smul.addr %s216, 4
          %s220 = sadd.s32 %s218, %s219
          %s221 = smul.addr %s220, 8
          %s222 = scalar_lea.vmem %s1, %s221
        $region24: #{decoder_layer.13} parent=15 // pred_fallthru
          _
        // Predicated region
        $region25: #{decoder_layer.13} parent=15 // pred_check
          %p223 = pneg %p113
        $region26: #{decoder_layer.13} parent=15 // pred_check_branch
          %225 = sbr.rel (%p223) target = $region28
        $region27: #{decoder_layer.13} parent=15 // pred_region
          %p226 = scmp.lt.s32.totalorder %s21, 1
          %s227 = scalar_select %p226, %s21, 1
          %p228 = scmp.lt.s32.totalorder %s22, 3
          %s229 = scalar_select %p228, %s22, 3
          %s230 = smul.addr %s227, 4
          %s231 = sadd.s32 %s229, %s230
          %s232 = smul.addr %s231, 8
          %s233 = scalar_lea.vmem %s2, %s232
        $region28: #{decoder_layer.13} parent=15 // pred_fallthru
          _
      $region16: #{decoder_layer.13} parent=5 // pred_fallthru
        _
      %p234 = scmp.le.s32.totalorder 1, %s14
      %p235 = scmp.lt.s32.totalorder %s14, 9
      %p236 = pnand %p234, %p235
      %p237 = pneg %p236
      // Predicated region
      $region29: #{decoder_layer.13} parent=5 // pred_check
        _
      $region30: #{decoder_layer.13} parent=5 // pred_check_branch
        %239 = sbr.rel (%p236) target = $region32
      $region31: #{decoder_layer.13} parent=5 // pred_region
        %s240 = ssub.s32 %s14, 1
        %p241 = scmp.lt.s32.totalorder %s24, 1
        %s242 = scalar_select %p241, %s24, 1
        %p243 = scmp.lt.s32.totalorder %s25, 3
        %s244 = scalar_select %p243, %s25, 3
        %p245 = scmp.lt.s32.totalorder %s26, 0
        %s246 = scalar_select %p245, %s26, 0
        %s247 = sadd.s32 %s246, %s244
        %s248 = smul.addr %s242, 4
        %s249 = sadd.s32 %s247, %s248
        %s250 = smul.addr %s249, 8
        %s251 = scalar_lea.vmem %s0, %s250
        %p252 = pneg %p63
        %p253 = pneg %p60
        %p254 = scmp.lt.s32.totalorder %s24, 1
        %s255 = scalar_select %p254, %s24, 1
        %p256 = scmp.lt.s32.totalorder %s25, 3
        %s257 = scalar_select %p256, %s25, 3
        %s258 = smul.addr %s255, 4
        %s259 = sadd.s32 %s257, %s258
        %s260 = smul.addr %s259, 8
        %s261 = scalar_lea.vmem %s1, %s260
        %p262 = pneg %p91
        %p263 = pneg %p88
        %p264 = scmp.lt.s32.totalorder %s24, 1
        %s265 = scalar_select %p264, %s24, 1
        %p266 = scmp.lt.s32.totalorder %s25, 3
        %s267 = scalar_select %p266, %s25, 3
        %s268 = smul.addr %s265, 4
        %s269 = sadd.s32 %s267, %s268
        %s270 = smul.addr %s269, 8
        %s271 = scalar_lea.vmem %s2, %s270
        %p272 = pneg %p119
        %p273 = pneg %p116
        %p274 = pneg %p149
        %p275 = pneg %p146
        %p276 = scmp.lt.s32.totalorder %s24, 1
        %s277 = scalar_select %p276, %s24, 1
        %p278 = scmp.lt.s32.totalorder %s25, 3
        %s279 = scalar_select %p278, %s25, 3
        %p280 = scmp.lt.s32.totalorder %s26, 0
        %s281 = scalar_select %p280, %s26, 0
        %s282 = sadd.s32 %s281, %s279
        %s283 = smul.addr %s277, 4
        %s284 = sadd.s32 %s282, %s283
        %s285 = smul.addr %s284, 8
        %s286 = scalar_lea.vmem %s3, %s285
        %p287 = pneg %p179
        %p288 = pneg %p176
        %s289 = sand.u32 %s166, 1
        %s290 = scalar_lea.sflag [#allocation3], %s289
        %s291 = sand.u32 %s166, 1
        %s292 = smul.addr %s291, 8
        %s293 = scalar_lea.vmem [#allocation2], %s292
        %p294 = scmp.lt.s32.totalorder %s24, 1
        %s295 = scalar_select %p294, %s24, 1
        %p296 = scmp.lt.s32.totalorder %s25, 3
        %s297 = scalar_select %p296, %s25, 3
        %p298 = scmp.lt.s32.totalorder %s26, 0
        %s299 = scalar_select %p298, %s26, 0
        %s300 = sadd.s32 %s299, %s297
        %s301 = smul.addr %s295, 4
        %s302 = sadd.s32 %s300, %s301
        %s303 = smul.addr %s302, 8
        %s304 = scalar_lea.vmem %s0, %s303
        %p305 = scmp.lt.s32.totalorder %s24, 1
        %s306 = scalar_select %p305, %s24, 1
        %p307 = scmp.lt.s32.totalorder %s25, 3
        %s308 = scalar_select %p307, %s25, 3
        %s309 = smul.addr %s306, 4
        %s310 = sadd.s32 %s308, %s309
        %s311 = smul.addr %s310, 8
        %s312 = scalar_lea.vmem %s1, %s311
        %p313 = scmp.lt.s32.totalorder %s24, 1
        %s314 = scalar_select %p313, %s24, 1
        %p315 = scmp.lt.s32.totalorder %s25, 3
        %s316 = scalar_select %p315, %s25, 3
        %s317 = smul.addr %s314, 4
        %s318 = sadd.s32 %s316, %s317
        %s319 = smul.addr %s318, 8
        %s320 = scalar_lea.vmem %s2, %s319
        %p321 = scmp.lt.s32.totalorder %s24, 1
        %s322 = scalar_select %p321, %s24, 1
        %p323 = scmp.lt.s32.totalorder %s25, 3
        %s324 = scalar_select %p323, %s25, 3
        %p325 = scmp.lt.s32.totalorder %s26, 0
        %s326 = scalar_select %p325, %s26, 0
        %s327 = sadd.s32 %s326, %s324
        %s328 = smul.addr %s322, 4
        %s329 = sadd.s32 %s327, %s328
        %s330 = smul.addr %s329, 8
        %s331 = scalar_lea.vmem %s3, %s330
        %v332 = vld [vmem:[%s304] sm:$0xff]
        %v333 = vmul.f32 %v332, 0.35355338
        %v334 = vld [vmem:[%s312] sm:$0xff]
        %v335 = vld [vmem:[%s320] sm:$0xff]
        %vm336 = vcmask 64512
        %v338 = vsel %vm336, %v333, 0
        %v341 = vsel %vm336, %v334, 0
        %343 = vmatprep.subr.mxu0 0.0
        %344 = vmatpush1.xpose.msra.mxu0 0.0
        %345 = vmatprep.subr.mxu0 0.0
        %346 = vmatpush1.xpose.msra.mxu0 0.0
        %347 = vmatprep.subr.mxu0 0.0
        %348 = vmatpush1.xpose.msra.mxu0 0.0
        %349 = vmatprep.subr.mxu0 0.0
        %350 = vmatpush1.xpose.msra.mxu0 0.0
        %351 = vmatprep.subr.mxu0 0.0
        %352 = vmatpush1.xpose.msra.mxu0 0.0
        %353 = vmatprep.subr.mxu0 0.0
        %354 = vmatpush1.xpose.msra.mxu0 0.0
        %355 = vmatprep.subr.mxu0 0.0
        %356 = vmatpush1.xpose.msra.mxu0 0.0
        %357 = vmatprep.subr.mxu0 0.0
        %358 = vmatpush1.xpose.msra.mxu0 0.0
        %359 = vmatprep.subr.mxu0 0.0
        %360 = vmatpush1.xpose.msra.mxu0 0.0
        %361 = vmatprep.subr.mxu0 0.0
        %362 = vmatpush1.xpose.msra.mxu0 0.0
        %363 = vmatprep.subr.mxu0 0.0
        %364 = vmatpush1.xpose.msra.mxu0 0.0
        %365 = vmatprep.subr.mxu0 0.0
        %366 = vmatpush1.xpose.msra.mxu0 0.0
        %367 = vmatprep.subr.mxu0 0.0
        %368 = vmatpush1.xpose.msra.mxu0 0.0
        %369 = vmatprep.subr.mxu0 0.0
        %370 = vmatpush1.xpose.msra.mxu0 0.0
        %371 = vmatprep.subr.mxu0 0.0
        %372 = vmatpush1.xpose.msra.mxu0 0.0
        %373 = vmatprep.subr.mxu0 0.0
        %374 = vmatpush1.xpose.msra.mxu0 %v341
        %375 = vmatprep.subr.mxu0 0.0
        %376 = vmatpush2.xpose.msra.mxu0 0.0
        %377 = vmatprep.subr.mxu0 0.0
        %378 = vmatpush2.xpose.msra.mxu0 0.0
        %379 = vmatprep.subr.mxu0 0.0
        %380 = vmatpush2.xpose.msra.mxu0 0.0
        %381 = vmatprep.subr.mxu0 0.0
        %382 = vmatpush2.xpose.msra.mxu0 0.0
        %383 = vmatprep.subr.mxu0 0.0
        %384 = vmatpush2.xpose.msra.mxu0 0.0
        %385 = vmatprep.subr.mxu0 0.0
        %386 = vmatpush2.xpose.msra.mxu0 0.0
        %387 = vmatprep.subr.mxu0 0.0
        %388 = vmatpush2.xpose.msra.mxu0 0.0
        %389 = vmatprep.subr.mxu0 0.0
        %390 = vmatpush2.xpose.msra.mxu0 0.0
        %391 = vmatprep.subr.mxu0 0.0
        %392 = vmatpush2.xpose.msra.mxu0 0.0
        %393 = vmatprep.subr.mxu0 0.0
        %394 = vmatpush2.xpose.msra.mxu0 0.0
        %395 = vmatprep.subr.mxu0 0.0
        %396 = vmatpush2.xpose.msra.mxu0 0.0
        %397 = vmatprep.subr.mxu0 0.0
        %398 = vmatpush2.xpose.msra.mxu0 0.0
        %399 = vmatprep.subr.mxu0 0.0
        %400 = vmatpush2.xpose.msra.mxu0 0.0
        %401 = vmatprep.subr.mxu0 0.0
        %402 = vmatpush2.xpose.msra.mxu0 0.0
        %403 = vmatprep.subr.mxu0 0.0
        %404 = vmatpush2.xpose.msra.mxu0 0.0
        %405 = vmatprep.subr.mxu0 0.0
        %406 = vmatpush2.xpose.msra.mxu0 0.0
        %407 = vmatprep.mubr.f32.mxu0 0.0
        %408 = vmatmul.mubr.f32.gmra.mxu0 %v338
        %v409 = vpop.f32.mrf.mxu0
        %v410 = vadd.f32 0.0, %v409
        %v411 = vpop.f32.mrf.mxu0
        %412 = vdwg.mxu0
        %v413 = vsel %vm336, %v410, -inf
        %414 = vmax.xlane.f32.xlu0 %v413
        %v415 = vpop.xlane.xlu0 %414
        %v416 = vsub.f32 %v410, %v415
        %v417 = vmul.f32 %v416, 1.442695
        %v418 = vpow.pop %v417
        %v419 = vsel %vm336, %v418, 0.0
        %420 = vadd.xlane.f32.xlu0 %v419
        %v421 = vpop.xlane.xlu0 %420
        %v422 = vrcp.pop %v421
        %v423 = vmul.f32 %v418, %v422
        %424 = vst.msk [vmem:[%s293] sm:$0xff] %vm336, %v423
        %v426 = vsel %vm336, %v423, 0
        %428 = vmatprep.subr.mxu0 0.0
        %429 = vmatpush1.msra.mxu0 0.0
        %430 = vmatprep.subr.mxu0 0.0
        %431 = vmatpush1.msra.mxu0 0.0
        %432 = vmatprep.subr.mxu0 0.0
        %433 = vmatpush1.msra.mxu0 0.0
        %434 = vmatprep.subr.mxu0 0.0
        %435 = vmatpush1.msra.mxu0 0.0
        %436 = vmatprep.subr.mxu0 0.0
        %437 = vmatpush1.msra.mxu0 0.0
        %438 = vmatprep.subr.mxu0 0.0
        %439 = vmatpush1.msra.mxu0 0.0
        %440 = vmatprep.subr.mxu0 0.0
        %441 = vmatpush1.msra.mxu0 0.0
        %442 = vmatprep.subr.mxu0 0.0
        %443 = vmatpush1.msra.mxu0 0.0
        %444 = vmatprep.subr.mxu0 0.0
        %445 = vmatpush1.msra.mxu0 0.0
        %446 = vmatprep.subr.mxu0 0.0
        %447 = vmatpush1.msra.mxu0 0.0
        %448 = vmatprep.subr.mxu0 0.0
        %449 = vmatpush1.msra.mxu0 0.0
        %450 = vmatprep.subr.mxu0 0.0
        %451 = vmatpush1.msra.mxu0 0.0
        %452 = vmatprep.subr.mxu0 0.0
        %453 = vmatpush1.msra.mxu0 0.0
        %454 = vmatprep.subr.mxu0 0.0
        %455 = vmatpush1.msra.mxu0 0.0
        %456 = vmatprep.subr.mxu0 0.0
        %457 = vmatpush1.msra.mxu0 0.0
        %458 = vmatprep.subr.mxu0 0.0
        %459 = vmatpush1.msra.mxu0 %v335
        %460 = vmatprep.subr.mxu0 0.0
        %461 = vmatpush2.msra.mxu0 0.0
        %462 = vmatprep.subr.mxu0 0.0
        %463 = vmatpush2.msra.mxu0 0.0
        %464 = vmatprep.subr.mxu0 0.0
        %465 = vmatpush2.msra.mxu0 0.0
        %466 = vmatprep.subr.mxu0 0.0
        %467 = vmatpush2.msra.mxu0 0.0
        %468 = vmatprep.subr.mxu0 0.0
        %469 = vmatpush2.msra.mxu0 0.0
        %470 = vmatprep.subr.mxu0 0.0
        %471 = vmatpush2.msra.mxu0 0.0
        %472 = vmatprep.subr.mxu0 0.0
        %473 = vmatpush2.msra.mxu0 0.0
        %474 = vmatprep.subr.mxu0 0.0
        %475 = vmatpush2.msra.mxu0 0.0
        %476 = vmatprep.subr.mxu0 0.0
        %477 = vmatpush2.msra.mxu0 0.0
        %478 = vmatprep.subr.mxu0 0.0
        %479 = vmatpush2.msra.mxu0 0.0
        %480 = vmatprep.subr.mxu0 0.0
        %481 = vmatpush2.msra.mxu0 0.0
        %482 = vmatprep.subr.mxu0 0.0
        %483 = vmatpush2.msra.mxu0 0.0
        %484 = vmatprep.subr.mxu0 0.0
        %485 = vmatpush2.msra.mxu0 0.0
        %486 = vmatprep.subr.mxu0 0.0
        %487 = vmatpush2.msra.mxu0 0.0
        %488 = vmatprep.subr.mxu0 0.0
        %489 = vmatpush2.msra.mxu0 0.0
        %490 = vmatprep.subr.mxu0 0.0
        %491 = vmatpush2.msra.mxu0 0.0
        %492 = vmatprep.mubr.f32.mxu0 0.0
        %493 = vmatmul.mubr.f32.gmra.mxu0 %v426
        %v494 = vpop.f32.mrf.mxu0
        %v495 = vadd.f32 0.0, %v494
        %v496 = vpop.f32.mrf.mxu0
        %497 = vdwg.mxu0
        %498 = vst.msk [vmem:[%s331] sm:$0xff] %vm336, %v495
        %p499 = scmp.lt.s32.totalorder %s24, 1
        %s500 = scalar_select %p499, %s24, 1
        %p501 = scmp.lt.s32.totalorder %s25, 3
        %s502 = scalar_select %p501, %s25, 3
        %p503 = scmp.lt.s32.totalorder %s26, 0
        %s504 = scalar_select %p503, %s26, 0
        %s505 = sadd.s32 %s504, %s502
        %s506 = smul.addr %s500, 4
        %s507 = sadd.s32 %s505, %s506
        %s508 = smul.addr %s507, 8
        %s509 = scalar_lea.vmem %s3, %s508
        %s510 = sand.u32 %s166, 1
        %s511 = scalar_lea.sflag [#allocation3], %s510
        %s512 = sand.u32 %s166, 1
        %s513 = smul.addr %s512, 8
        %s514 = scalar_lea.vmem [#allocation2], %s513
        // Predicated region
        $region33: #{decoder_layer.13} parent=31 // pred_check
          %p515 = pneg %p146
        $region34: #{decoder_layer.13} parent=31 // pred_check_branch
          %517 = sbr.rel (%p515) target = $region36
        $region35: #{decoder_layer.13} parent=31 // pred_region
          _
        $region36: #{decoder_layer.13} parent=31 // pred_fallthru
          _
        // Predicated region
        $region37: #{decoder_layer.13} parent=31 // pred_check
          %p518 = pneg %p176
        $region38: #{decoder_layer.13} parent=31 // pred_check_branch
          %520 = sbr.rel (%p518) target = $region40
        $region39: #{decoder_layer.13} parent=31 // pred_region
          %s522 = ssub.s32 128, 128
          %523 = vsyncadd %s511, %s522
          %s524 = sadd.s32 %s26, %s25
          %s525 = smul.addr %s24, 4
          %s526 = sadd.s32 %s524, %s525
          %s527 = smul.addr %s526, 128
          %s528 = scalar_lea.hbm %s4, %s527
          %s530 = sshll.u32 %s514, 4
          %s531 = int_to_ptr.vmem [resolvable:$true] %s530
          %533 = dma.vmem_to_hbm [thread:$0]  %s531, 128, %s528, %s511
        $region40: #{decoder_layer.13} parent=31 // pred_fallthru
          _
      $region32: #{decoder_layer.13} parent=5 // pred_fallthru
        _
      %p534 = scmp.le.s32.totalorder 2, %s14
      // Predicated region
      $region41: #{decoder_layer.13} parent=5 // pred_check
        %p535 = pneg %p534
      $region42: #{decoder_layer.13} parent=5 // pred_check_branch
        %537 = sbr.rel (%p535) target = $region44
      $region43: #{decoder_layer.13} parent=5 // pred_region
        %s538 = ssub.s32 %s14, 2
        // Predicated region
        $region45: #{decoder_layer.13} parent=43 // pred_check
          %p539 = pneg %p152
        $region46: #{decoder_layer.13} parent=43 // pred_check_branch
          %541 = sbr.rel (%p539) target = $region48
        $region47: #{decoder_layer.13} parent=43 // pred_region
          %p542 = scmp.lt.s32.totalorder %s27, 1
          %s543 = scalar_select %p542, %s27, 1
          %p544 = scmp.lt.s32.totalorder %s28, 3
          %s545 = scalar_select %p544, %s28, 3
          %p546 = scmp.lt.s32.totalorder %s29, 0
          %s547 = scalar_select %p546, %s29, 0
          %s548 = sadd.s32 %s547, %s545
          %s549 = smul.addr %s543, 4
          %s550 = sadd.s32 %s548, %s549
          %s551 = smul.addr %s550, 8
          %s552 = scalar_lea.vmem %s3, %s551
        $region48: #{decoder_layer.13} parent=43 // pred_fallthru
          _
        // Predicated region
        $region49: #{decoder_layer.13} parent=43 // pred_check
          %p553 = pneg %p182
        $region50: #{decoder_layer.13} parent=43 // pred_check_branch
          %555 = sbr.rel (%p553) target = $region52
        $region51: #{decoder_layer.13} parent=43 // pred_region
          %s556 = sand.u32 %s167, 1
          %s557 = scalar_lea.sflag [#allocation3], %s556
          %s558 = sand.u32 %s167, 1
          %s559 = smul.addr %s558, 8
          %s560 = scalar_lea.vmem [#allocation2], %s559
          %561 = dma.done %s557, 128
        $region52: #{decoder_layer.13} parent=43 // pred_fallthru
          _
      $region44: #{decoder_layer.13} parent=5 // pred_fallthru
        _
    $region6: #{decoder_layer.13} parent=1 // loop_footer
      %s18 = sadd.s32 1, %s14
    $region7: #{decoder_layer.13} parent=1 // loop_footer_branch
      %13 = sbr.rel target = $region3
    $region8: #{decoder_layer.13} parent=1 // loop_exit
      _
    %562 = vsyncpa [#allocation3], 1
    %s563 = scalar_lea.sflag [#allocation3], 1
    %564 = vsyncpa %s563, 1

// kernel: decoder_layer.15
$region0: #{decoder_layer.15}
  #allocation0 [shape = 'u32[]', space=smem, size = 0x4, offset = 0x4, fixed_abs, tag = 'smem constant byte address 0x4 - core index']
  #allocation1 [shape = 'u32[144,128]{1,0:T(1,128)}', space=vmem, size = 0x12000, scoped, tag = 'internal scratch']
  #allocation2 [shape = 'f32[16,32]{1,0:T(8,128)}', space=vmem, size = 0x2000, scoped, tag = 'scratch operand']
  %s0 = inlined_call_operand.vmem [shape: f32[16,32], index: 0, kind: input, shape index: {}, may-alias: {0,5}]
  %s1 = inlined_call_operand.vmem [shape: f32[32,64], index: 1, kind: input, shape index: {}]
  %s2 = inlined_call_operand.vmem [shape: f32[1,64], index: 2, kind: input, shape index: {}]
  %s3 = inlined_call_operand.vmem [shape: f32[64,32], index: 3, kind: input, shape index: {}]
  %s4 = inlined_call_operand.vmem [shape: f32[1,32], index: 4, kind: input, shape index: {}]
  %s5 = inlined_call_operand.vmem [shape: f32[16,32], index: 5, kind: input, shape index: {}, may-alias: {0,5}]
  %s6 = inlined_call_operand.vmem [shape: f32[1,32], index: 6, kind: input, shape index: {}]
  %s7 = inlined_call_operand.vmem [shape: f32[1,32], index: 7, kind: input, shape index: {}]
  %s8 = inlined_call_operand.hbm [shape: f32[16,32], index: 8, kind: output, shape index: {}]
  %s9 = sld [smem:[#allocation0]]
  $region50: #{decoder_layer.15} parent=0
    _
  %s11 = ssub.s32 1, %s9
  %s12 = scalar_select 0, %s11, %s9
  $region1: #{decoder_layer.15} parent=0
    #allocation3 [shape = 'u8[8192]{0}', space=vmem, size = 0x2000, scoped, tag = 'output window, operand 0, single buffered']
    #allocation4 [shape = 's32[1]{0}', space=sflag, size = 0x4, scoped, tag = 'scoped memory for decoder_layer.15']
    %13 = vsyncpa [#allocation4], 0
    // Predicated region
    $region2: #{decoder_layer.15} parent=1 // pred_check
      _
    $region3: #{decoder_layer.15} parent=1 // pred_check_branch
      %15 = sbr.rel (0) target = $region5
    $region4: #{decoder_layer.15} parent=1 // pred_region
      _
    $region5: #{decoder_layer.15} parent=1 // pred_fallthru
      _
    // Predicated region
    $region6: #{decoder_layer.15} parent=1 // pred_check
      _
    $region7: #{decoder_layer.15} parent=1 // pred_check_branch
      %17 = sbr.rel (0) target = $region9
    $region8: #{decoder_layer.15} parent=1 // pred_region
      _
    $region9: #{decoder_layer.15} parent=1 // pred_fallthru
      _
    // Predicated region
    $region10: #{decoder_layer.15} parent=1 // pred_check
      _
    $region11: #{decoder_layer.15} parent=1 // pred_check_branch
      %19 = sbr.rel (0) target = $region13
    $region12: #{decoder_layer.15} parent=1 // pred_region
      _
    $region13: #{decoder_layer.15} parent=1 // pred_fallthru
      _
    // Predicated region
    $region14: #{decoder_layer.15} parent=1 // pred_check
      _
    $region15: #{decoder_layer.15} parent=1 // pred_check_branch
      %21 = sbr.rel (0) target = $region17
    $region16: #{decoder_layer.15} parent=1 // pred_region
      _
    $region17: #{decoder_layer.15} parent=1 // pred_fallthru
      _
    // Predicated region
    $region18: #{decoder_layer.15} parent=1 // pred_check
      _
    $region19: #{decoder_layer.15} parent=1 // pred_check_branch
      %23 = sbr.rel (0) target = $region21
    $region20: #{decoder_layer.15} parent=1 // pred_region
      _
    $region21: #{decoder_layer.15} parent=1 // pred_fallthru
      _
    // Predicated region
    $region22: #{decoder_layer.15} parent=1 // pred_check
      _
    $region23: #{decoder_layer.15} parent=1 // pred_check_branch
      %25 = sbr.rel (0) target = $region25
    $region24: #{decoder_layer.15} parent=1 // pred_region
      _
    $region25: #{decoder_layer.15} parent=1 // pred_fallthru
      _
    // Predicated region
    $region26: #{decoder_layer.15} parent=1 // pred_check
      _
    $region27: #{decoder_layer.15} parent=1 // pred_check_branch
      %27 = sbr.rel (0) target = $region29
    $region28: #{decoder_layer.15} parent=1 // pred_region
      _
    $region29: #{decoder_layer.15} parent=1 // pred_fallthru
      _
    // Predicated region
    $region30: #{decoder_layer.15} parent=1 // pred_check
      _
    $region31: #{decoder_layer.15} parent=1 // pred_check_branch
      %29 = sbr.rel (0) target = $region33
    $region32: #{decoder_layer.15} parent=1 // pred_region
      _
    $region33: #{decoder_layer.15} parent=1 // pred_fallthru
      _
    %p30 = scmp.eq.s32.totalorder 0, 0
    // Predicated region
    $region34: #{decoder_layer.15} parent=1 // pred_check
      %p31 = pneg %p30
    $region35: #{decoder_layer.15} parent=1 // pred_check_branch
      %33 = sbr.rel (%p31) target = $region37
    $region36: #{decoder_layer.15} parent=1 // pred_region
      %vm34 = vcmask 261120
      %35 = vst.msk [vmem:[#allocation2] sm:$0xff] %vm34, 0.0
      %36 = vst.msk [vmem:[#allocation2 + $0x8] sm:$0xff] %vm34, 0.0
    $region37: #{decoder_layer.15} parent=1 // pred_fallthru
      _
    %v37 = vld [vmem:[%s0] sm:$0xff]
    %v38 = vld [vmem:[%s0 + $0x8] sm:$0xff]
    %v39 = vld [vmem:[%s1] sm:$0xff]
    %v40 = vld [vmem:[%s1 + $0x8] sm:$0xff]
    %v41 = vld [vmem:[%s1 + $0x10] sm:$0xff]
    %v42 = vld [vmem:[%s1 + $0x18] sm:$0xff]
    %v43 = vld [vmem:[%s2] sm:$0x1]
    %v45 = vlaneseq
    %v46 = vshrl.u32 %v45, 7
    %v47 = vsub.s32 0, %v46
    %v48 = vrot.slane %v43, %v47
    %vm50 = vcmask 261120
    %v52 = vsel %vm50, %v37, 0
    %v55 = vsel %vm50, %v38, 0
    %57 = vmatprep.subr.mxu0 0.0
    %58 = vmatpush1.msra.mxu0 0.0
    %59 = vmatprep.subr.mxu0 0.0
    %60 = vmatpush1.msra.mxu0 0.0
    %61 = vmatprep.subr.mxu0 0.0
    %62 = vmatpush1.msra.mxu0 0.0
    %63 = vmatprep.subr.mxu0 0.0
    %64 = vmatpush1.msra.mxu0 0.0
    %65 = vmatprep.subr.mxu0 0.0
    %66 = vmatpush1.msra.mxu0 0.0
    %67 = vmatprep.subr.mxu0 0.0
    %68 = vmatpush1.msra.mxu0 0.0
    %69 = vmatprep.subr.mxu0 0.0
    %70 = vmatpush1.msra.mxu0 0.0
    %71 = vmatprep.subr.mxu0 0.0
    %72 = vmatpush1.msra.mxu0 0.0
    %73 = vmatprep.subr.mxu0 0.0
    %74 = vmatpush1.msra.mxu0 0.0
    %75 = vmatprep.subr.mxu0 0.0
    %76 = vmatpush1.msra.mxu0 0.0
    %77 = vmatprep.subr.mxu0 0.0
    %78 = vmatpush1.msra.mxu0 0.0
    %79 = vmatprep.subr.mxu0 0.0
    %80 = vmatpush1.msra.mxu0 0.0
    %81 = vmatprep.subr.mxu0 0.0
    %82 = vmatpush1.msra.mxu0 %v42
    %83 = vmatprep.subr.mxu0 0.0
    %84 = vmatpush1.msra.mxu0 %v41
    %85 = vmatprep.subr.mxu0 0.0
    %86 = vmatpush1.msra.mxu0 %v40
    %87 = vmatprep.subr.mxu0 0.0
    %88 = vmatpush1.msra.mxu0 %v39
    %89 = vmatprep.subr.mxu0 0.0
    %90 = vmatpush2.msra.mxu0 0.0
    %91 = vmatprep.subr.mxu0 0.0
    %92 = vmatpush2.msra.mxu0 0.0
    %93 = vmatprep.subr.mxu0 0.0
    %94 = vmatpush2.msra.mxu0 0.0
    %95 = vmatprep.subr.mxu0 0.0
    %96 = vmatpush2.msra.mxu0 0.0
    %97 = vmatprep.subr.mxu0 0.0
    %98 = vmatpush2.msra.mxu0 0.0
    %99 = vmatprep.subr.mxu0 0.0
    %100 = vmatpush2.msra.mxu0 0.0
    %101 = vmatprep.subr.mxu0 0.0
    %102 = vmatpush2.msra.mxu0 0.0
    %103 = vmatprep.subr.mxu0 0.0
    %104 = vmatpush2.msra.mxu0 0.0
    %105 = vmatprep.subr.mxu0 0.0
    %106 = vmatpush2.msra.mxu0 0.0
    %107 = vmatprep.subr.mxu0 0.0
    %108 = vmatpush2.msra.mxu0 0.0
    %109 = vmatprep.subr.mxu0 0.0
    %110 = vmatpush2.msra.mxu0 0.0
    %111 = vmatprep.subr.mxu0 0.0
    %112 = vmatpush2.msra.mxu0 0.0
    %113 = vmatprep.subr.mxu0 0.0
    %114 = vmatpush2.msra.mxu0 0.0
    %115 = vmatprep.subr.mxu0 0.0
    %116 = vmatpush2.msra.mxu0 0.0
    %117 = vmatprep.subr.mxu0 0.0
    %118 = vmatpush2.msra.mxu0 0.0
    %119 = vmatprep.subr.mxu0 0.0
    %120 = vmatpush2.msra.mxu0 0.0
    %121 = vmatprep.mubr.f32.mxu0 0.0
    %122 = vmatmul.mubr.f32.gmra.mxu0 %v52
    %v123 = vpop.f32.mrf.mxu0
    %v124 = vadd.f32 %v48, %v123
    %v125 = vpop.f32.mrf.mxu0
    %126 = vmatprep.mubr.f32.mxu0 0.0
    %127 = vmatmul.mubr.f32.gmra.mxu0 %v55
    %v128 = vpop.f32.mrf.mxu0
    %v129 = vadd.f32 %v48, %v128
    %v130 = vpop.f32.mrf.mxu0
    %131 = vdwg.mxu0
    %v132 = vmax.f32 %v124, 0.0
    %v133 = vmax.f32 %v129, 0.0
    %v134 = vld [vmem:[#allocation2] sm:$0xff]
    %v135 = vld [vmem:[#allocation2 + $0x8] sm:$0xff]
    %v136 = vld [vmem:[%s3] sm:$0xff]
    %v137 = vld [vmem:[%s3 + $0x8] sm:$0xff]
    %v138 = vld [vmem:[%s3 + $0x10] sm:$0xff]
    %v139 = vld [vmem:[%s3 + $0x18] sm:$0xff]
    %v140 = vld [vmem:[%s3 + $0x20] sm:$0xff]
    %v141 = vld [vmem:[%s3 + $0x28] sm:$0xff]
    %v142 = vld [vmem:[%s3 + $0x30] sm:$0xff]
    %v143 = vld [vmem:[%s3 + $0x38] sm:$0xff]
    %vm144 = vcmask 523264
    %v146 = vsel %vm144, %v132, 0
    %v149 = vsel %vm144, %v133, 0
    %151 = vmatprep.subr.mxu0 0.0
    %152 = vmatpush1.msra.mxu0 0.0
    %153 = vmatprep.subr.mxu0 0.0
    %154 = vmatpush1.msra.mxu0 0.0
    %155 = vmatprep.subr.mxu0 0.0
    %156 = vmatpush1.msra.mxu0 0.0
    %157 = vmatprep.subr.mxu0 0.0
    %158 = vmatpush1.msra.mxu0 0.0
    %159 = vmatprep.subr.mxu0 0.0
    %160 = vmatpush1.msra.mxu0 0.0
    %161 = vmatprep.subr.mxu0 0.0
    %162 = vmatpush1.msra.mxu0 0.0
    %163 = vmatprep.subr.mxu0 0.0
    %164 = vmatpush1.msra.mxu0 0.0
    %165 = vmatprep.subr.mxu0 0.0
    %166 = vmatpush1.msra.mxu0 0.0
    %167 = vmatprep.subr.mxu0 0.0
    %168 = vmatpush1.msra.mxu0 %v143
    %169 = vmatprep.subr.mxu0 0.0
    %170 = vmatpush1.msra.mxu0 %v142
    %171 = vmatprep.subr.mxu0 0.0
    %172 = vmatpush1.msra.mxu0 %v141
    %173 = vmatprep.subr.mxu0 0.0
    %174 = vmatpush1.msra.mxu0 %v140
    %175 = vmatprep.subr.mxu0 0.0
    %176 = vmatpush1.msra.mxu0 %v139
    %177 = vmatprep.subr.mxu0 0.0
    %178 = vmatpush1.msra.mxu0 %v138
    %179 = vmatprep.subr.mxu0 0.0
    %180 = vmatpush1.msra.mxu0 %v137
    %181 = vmatprep.subr.mxu0 0.0
    %182 = vmatpush1.msra.mxu0 %v136
    %183 = vmatprep.subr.mxu0 0.0
    %184 = vmatpush2.msra.mxu0 0.0
    %185 = vmatprep.subr.mxu0 0.0
    %186 = vmatpush2.msra.mxu0 0.0
    %187 = vmatprep.subr.mxu0 0.0
    %188 = vmatpush2.msra.mxu0 0.0
    %189 = vmatprep.subr.mxu0 0.0
    %190 = vmatpush2.msra.mxu0 0.0
    %191 = vmatprep.subr.mxu0 0.0
    %192 = vmatpush2.msra.mxu0 0.0
    %193 = vmatprep.subr.mxu0 0.0
    %194 = vmatpush2.msra.mxu0 0.0
    %195 = vmatprep.subr.mxu0 0.0
    %196 = vmatpush2.msra.mxu0 0.0
    %197 = vmatprep.subr.mxu0 0.0
    %198 = vmatpush2.msra.mxu0 0.0
    %199 = vmatprep.subr.mxu0 0.0
    %200 = vmatpush2.msra.mxu0 0.0
    %201 = vmatprep.subr.mxu0 0.0
    %202 = vmatpush2.msra.mxu0 0.0
    %203 = vmatprep.subr.mxu0 0.0
    %204 = vmatpush2.msra.mxu0 0.0
    %205 = vmatprep.subr.mxu0 0.0
    %206 = vmatpush2.msra.mxu0 0.0
    %207 = vmatprep.subr.mxu0 0.0
    %208 = vmatpush2.msra.mxu0 0.0
    %209 = vmatprep.subr.mxu0 0.0
    %210 = vmatpush2.msra.mxu0 0.0
    %211 = vmatprep.subr.mxu0 0.0
    %212 = vmatpush2.msra.mxu0 0.0
    %213 = vmatprep.subr.mxu0 0.0
    %214 = vmatpush2.msra.mxu0 0.0
    %215 = vmatprep.mubr.f32.mxu0 0.0
    %216 = vmatmul.mubr.f32.gmra.mxu0 %v146
    %v217 = vpop.f32.mrf.mxu0
    %v218 = vadd.f32 0.0, %v217
    %v219 = vpop.f32.mrf.mxu0
    %220 = vmatprep.mubr.f32.mxu0 0.0
    %221 = vmatmul.mubr.f32.gmra.mxu0 %v149
    %v222 = vpop.f32.mrf.mxu0
    %v223 = vadd.f32 0.0, %v222
    %v224 = vpop.f32.mrf.mxu0
    %225 = vdwg.mxu0
    %v226 = vadd.f32 %v134, %v218
    %v227 = vadd.f32 %v135, %v223
    %228 = vst.msk [vmem:[#allocation2] sm:$0xff] %vm50, %v226
    %229 = vst.msk [vmem:[#allocation2 + $0x8] sm:$0xff] %vm50, %v227
    // Predicated region
    $region38: #{decoder_layer.15} parent=1 // pred_check
      %p230 = pneg %p30
    $region39: #{decoder_layer.15} parent=1 // pred_check_branch
      %232 = sbr.rel (%p230) target = $region41
    $region40: #{decoder_layer.15} parent=1 // pred_region
      %v233 = vld [vmem:[#allocation2] sm:$0xff]
      %v234 = vld [vmem:[#allocation2 + $0x8] sm:$0xff]
      %v235 = vld [vmem:[%s4] sm:$0x1]
      %v237 = vlaneseq
      %v238 = vshrl.u32 %v237, 7
      %v239 = vsub.s32 0, %v238
      %v240 = vrot.slane %v235, %v239
      %v242 = vadd.f32 %v233, %v240
      %v243 = vadd.f32 %v234, %v240
      %v244 = vld [vmem:[%s5] sm:$0xff]
      %v245 = vld [vmem:[%s5 + $0x8] sm:$0xff]
      %v246 = vadd.f32 %v242, %v244
      %v247 = vadd.f32 %v243, %v245
      %v248 = vsel %vm50, %v246, 0.0
      %249 = vadd.xlane.f32.xlu0 %v248
      %v250 = vpop.xlane.xlu0 %249
      %v251 = vsel %vm50, %v247, 0.0
      %252 = vadd.xlane.f32.xlu0 %v251
      %v253 = vpop.xlane.xlu0 %252
      %v254 = vrcp.pop 32.0
      %v255 = vmul.f32 %v250, %v254
      %v256 = vmul.f32 %v253, %v254
      %v257 = vsub.f32 %v246, %v255
      %v258 = vsub.f32 %v247, %v256
      %v259 = vmul.f32 %v257, %v257
      %v260 = vmul.f32 %v258, %v258
      %v261 = vsel %vm50, %v259, 0.0
      %262 = vadd.xlane.f32.xlu0 %v261
      %v263 = vpop.xlane.xlu0 %262
      %v264 = vsel %vm50, %v260, 0.0
      %265 = vadd.xlane.f32.xlu0 %v264
      %v266 = vpop.xlane.xlu0 %265
      %v267 = vmul.f32 %v263, %v254
      %v268 = vmul.f32 %v266, %v254
      %v269 = vadd.f32 %v267, 1e-05
      %v270 = vadd.f32 %v268, 1e-05
      %v271 = vrsqrt.pop %v269
      %v272 = vrsqrt.pop %v270
      %v273 = vmul.f32 %v257, %v271
      %v274 = vmul.f32 %v258, %v272
      %v275 = vld [vmem:[%s6] sm:$0x1]
      %v277 = vlaneseq
      %v278 = vshrl.u32 %v277, 7
      %v279 = vsub.s32 0, %v278
      %v280 = vrot.slane %v275, %v279
      %v282 = vmul.f32 %v273, %v280
      %v283 = vmul.f32 %v274, %v280
      %v284 = vld [vmem:[%s7] sm:$0x1]
      %v286 = vlaneseq
      %v287 = vshrl.u32 %v286, 7
      %v288 = vsub.s32 0, %v287
      %v289 = vrot.slane %v284, %v288
      %v291 = vadd.f32 %v282, %v289
      %v292 = vadd.f32 %v283, %v289
      %293 = vst.msk [vmem:[#allocation3] sm:$0xff] %vm50, %v291
      %294 = vst.msk [vmem:[#allocation3 + $0x8] sm:$0xff] %vm50, %v292
    $region41: #{decoder_layer.15} parent=1 // pred_fallthru
      _
    // Predicated region
    $region42: #{decoder_layer.15} parent=1 // pred_check
      _
    $region43: #{decoder_layer.15} parent=1 // pred_check_branch
      %296 = sbr.rel (0) target = $region45
    $region44: #{decoder_layer.15} parent=1 // pred_region
      %s298 = ssub.s32 256, 256
      %299 = vsyncadd [#allocation4], %s298
      %s300 = sshll.u32 [#allocation3], 4
      %s301 = int_to_ptr.vmem [resolvable:$true] %s300
      %306 = dma.vmem_to_hbm [thread:$0]  %s301, 256, %s8, [#allocation4], 128, 128, 8
    $region45: #{decoder_layer.15} parent=1 // pred_fallthru
      _
    // Predicated region
    $region46: #{decoder_layer.15} parent=1 // pred_check
      _
    $region47: #{decoder_layer.15} parent=1 // pred_check_branch
      %308 = sbr.rel (0) target = $region49
    $region48: #{decoder_layer.15} parent=1 // pred_region
      %309 = dma.done [#allocation4], 256
    $region49: #{decoder_layer.15} parent=1 // pred_fallthru
      _
    %310 = vsyncpa [#allocation4], 1

</llo_original>
